<compile_context>
chip_gen: v5e
topology: v5e:2x2
jax: 0.10.0
libtpu: 0.0.40
codegen_flags: <defaults>
</compile_context>

<pallas_src>
import jax
import jax.numpy as jnp
from jax.experimental import pallas as pl
from jax.experimental.pallas import tpu as pltpu

# ---------------- scaled-down CLIP vision config ----------------
BATCH = 2
CHANNELS = 3
IMG = 16
PATCH = 8
GRID_HW = IMG // PATCH                      # 2
NUM_PATCHES = GRID_HW * GRID_HW             # 4
SEQ = NUM_PATCHES + 1                       # 5 = CLS + patches
HIDDEN = 32                                 # vision hidden_size (768 in real CLIP)
NUM_HEADS = 4
HEAD_DIM = HIDDEN // NUM_HEADS              # 8
INTERMEDIATE = 64
NUM_LAYERS = 2
FC1_OUT = 64
NUM_CLASSES = 10
LN_EPS = 1e-5
BN_EPS = 1e-5

PAD = 128                                   # lane-dense feature width
CPP = CHANNELS * PATCH * PATCH              # 192 = im2col patch length
QKV_SLABS = 3 * NUM_HEADS                   # q/k/v x heads
QKV_W = QKV_SLABS * PAD                     # 1536: per-head q/k/v 128-lane slabs
HSLAB = NUM_HEADS * PAD                     # 512: concat of per-head attn outputs
I_PAD = 128                                 # INTERMEDIATE padded to a full lane tile
FC1_PAD = 128                               # FC1_OUT padded to a full lane tile


# ---------------- in-kernel helpers ----------------
def _ln(x, g, b, eps=LN_EPS):
    """LayerNorm over the first HIDDEN lanes of a 128-lane-padded tile.

    Relies on the invariant that padded lanes of x are exactly zero and that g/b are
    zero-padded, so padded lanes of the result stay zero (g=0 kills the -mean term).
    """
    xf = x.astype(jnp.float32)
    mean = jnp.sum(xf, axis=-1, keepdims=True) * (1.0 / HIDDEN)
    var = jnp.sum(xf * xf, axis=-1, keepdims=True) * (1.0 / HIDDEN) - mean * mean
    var = jnp.maximum(var, 0.0)
    return (xf - mean) * jax.lax.rsqrt(var + eps) * g + b


def _encoder_layer(x, ln1g, ln1b, qkvw, qkvb, ow, ob, ln2g, ln2b, f1w, f1b, f2w, f2b):
    """One pre-LN CLIP encoder layer on a (SEQ, PAD) tile (pads zero in/out)."""
    # --- self-attention block ---
    h = _ln(x, ln1g, ln1b)                                           # (SEQ, PAD) f32
    qkv = jnp.dot(h.astype(jnp.bfloat16), qkvw,
                  preferred_element_type=jnp.float32) + qkvb         # (SEQ, QKV_W)

    scale = 1.0 / (HEAD_DIM ** 0.5)                                  # HF CLIP: q * Dh**-0.5
    heads = []
    for hh in range(NUM_HEADS):                                      # static unroll, tiny
        q = qkv[:, hh * PAD:(hh + 1) * PAD] * scale                  # 128-lane aligned slabs
        k = qkv[:, (NUM_HEADS + hh) * PAD:(NUM_HEADS + hh + 1) * PAD]
        v = qkv[:, (2 * NUM_HEADS + hh) * PAD:(2 * NUM_HEADS + hh + 1) * PAD]
        s = jax.lax.dot_general(q.astype(jnp.bfloat16), k.astype(jnp.bfloat16),
                                (((1,), (1,)), ((), ())),
                                preferred_element_type=jnp.float32)  # (SEQ, SEQ)
        s = s - jnp.max(s, axis=-1, keepdims=True)
        p = jnp.exp(s)
        p = p * pl.reciprocal(jnp.sum(p, axis=-1, keepdims=True), approx=True)
        heads.append(jnp.dot(p.astype(jnp.bfloat16), v.astype(jnp.bfloat16),
                             preferred_element_type=jnp.float32))    # (SEQ, PAD)
    # concat along lane blocks (layout move) + single out-proj matmul
    attn = jnp.concatenate(heads, axis=1)                            # (SEQ, HSLAB)
    attn = jnp.dot(attn.astype(jnp.bfloat16), ow,
                   preferred_element_type=jnp.float32)               # (SEQ, PAD), pads 0
    x1 = x + attn + ob                                               # residual

    # --- MLP block ---
    h2 = _ln(x1, ln2g, ln2b)
    m = jnp.dot(h2.astype(jnp.bfloat16), f1w,
                preferred_element_type=jnp.float32) + f1b            # (SEQ, I_PAD), pads 0
    m = m * jax.nn.sigmoid(1.702 * m)                                # quick_gelu (0 -> 0)
    m = jnp.dot(m.astype(jnp.bfloat16), f2w,
                preferred_element_type=jnp.float32) + f2b            # (SEQ, PAD), pads 0
    return x1 + m


# ---------------- the single fused Pallas kernel ----------------
def _fused_forward_kernel(x_ref, pw_ref, add_ref, preg_ref, preb_ref,
                          ln1g_ref, ln1b_ref, qkvw_ref, qkvb_ref, ow_ref, ob_ref,
                          ln2g_ref, ln2b_ref, f1w_ref, f1b_ref, f2w_ref, f2b_ref,
                          postg_ref, postb_ref, hw1_ref, hb1_ref, hw2_ref, hb2_ref,
                          o_ref):
    # ---- patch embed matmul + (CLS + position) embeddings + pre_layrnorm ----
    xin = x_ref[0]                                                   # (SEQ, CPP); CLS row = 0
    h = jnp.dot(xin.astype(jnp.bfloat16), pw_ref[...],
                preferred_element_type=jnp.float32) + add_ref[...]   # (SEQ, PAD), pads 0
    x = _ln(h, preg_ref[...], preb_ref[...])

    # ---- encoder layers (static unroll; weights VMEM-resident) ----
    for l in range(NUM_LAYERS):
        x = _encoder_layer(x, ln1g_ref[l], ln1b_ref[l], qkvw_ref[l], qkvb_ref[l],
                           ow_ref[l], ob_ref[l], ln2g_ref[l], ln2b_ref[l],
                           f1w_ref[l], f1b_ref[l], f2w_ref[l], f2b_ref[l])

    # ---- post_layernorm(CLS) -> fc1 -> relu -> [BN folded into fc2] -> fc2 ----
    cls = x[0:1, :]                                                  # (1, PAD)
    hc = _ln(cls, postg_ref[...], postb_ref[...])
    y = jnp.dot(hc.astype(jnp.bfloat16), hw1_ref[...],
                preferred_element_type=jnp.float32) + hb1_ref[...]   # (1, FC1_PAD)
    y = jnp.maximum(y, 0.0)
    # Dropout(p=0.25) is identity in eval mode; eval BatchNorm1d folded into hw2/hb2.
    z = jnp.dot(y.astype(jnp.bfloat16), hw2_ref[...],
                preferred_element_type=jnp.float32) + hb2_ref[...]   # (1, PAD)
    o_ref[0] = z.astype(o_ref.dtype)


# ---------------- pallas_call wrapper ----------------
def clip_forward_fused(x_in, w):
    b = x_in.shape[0]
    L = NUM_LAYERS
    const2 = lambda i: (0, 0)
    const3 = lambda i: (0, 0, 0)
    in_specs = [
        pl.BlockSpec((1, SEQ, CPP), lambda i: (i, 0, 0)),        # x_in (per batch elem)
        pl.BlockSpec((CPP, PAD), const2),                        # patch_w
        pl.BlockSpec((SEQ, PAD), const2),                        # add_emb (class+pos)
        pl.BlockSpec((1, PAD), const2),                          # pre_ln_g
        pl.BlockSpec((1, PAD), const2),                          # pre_ln_b
        pl.BlockSpec((L, 1, PAD), const3),                       # ln1_g
        pl.BlockSpec((L, 1, PAD), const3),                       # ln1_b
        pl.BlockSpec((L, PAD, QKV_W), const3),                   # qkv_w (per-head slabs)
        pl.BlockSpec((L, 1, QKV_W), const3),                     # qkv_b
        pl.BlockSpec((L, HSLAB, PAD), const3),                   # o_w (slab layout)
        pl.BlockSpec((L, 1, PAD), const3),                       # o_b
        pl.BlockSpec((L, 1, PAD), const3),                       # ln2_g
        pl.BlockSpec((L, 1, PAD), const3),                       # ln2_b
        pl.BlockSpec((L, PAD, I_PAD), const3),                   # fc1_w
        pl.BlockSpec((L, 1, I_PAD), const3),                     # fc1_b
        pl.BlockSpec((L, I_PAD, PAD), const3),                   # fc2_w
        pl.BlockSpec((L, 1, PAD), const3),                       # fc2_b
        pl.BlockSpec((1, PAD), const2),                          # post_ln_g
        pl.BlockSpec((1, PAD), const2),                          # post_ln_b
        pl.BlockSpec((PAD, FC1_PAD), const2),                    # head_fc1_w
        pl.BlockSpec((1, FC1_PAD), const2),                      # head_fc1_b
        pl.BlockSpec((FC1_PAD, PAD), const2),                    # head_fc2_w (BN folded)
        pl.BlockSpec((1, PAD), const2),                          # head_fc2_b (BN folded)
    ]
    out = pl.pallas_call(
        _fused_forward_kernel,
        out_shape=jax.ShapeDtypeStruct((b, 1, PAD), jnp.float32),
        grid=(b,),
        in_specs=in_specs,
        out_specs=pl.BlockSpec((1, 1, PAD), lambda i: (i, 0, 0)),
        compiler_params=pltpu.CompilerParams(dimension_semantics=("parallel",)),
    )(x_in, w["patch_w"], w["add_emb"], w["pre_ln_g"], w["pre_ln_b"],
      w["ln1_g"], w["ln1_b"], w["qkv_w"], w["qkv_b"], w["o_w"], w["o_b"],
      w["ln2_g"], w["ln2_b"], w["fc1_w"], w["fc1_b"], w["fc2_w"], w["fc2_b"],
      w["post_ln_g"], w["post_ln_b"], w["head_fc1_w"], w["head_fc1_b"],
      w["head_fc2_w"], w["head_fc2_b"])
    return out[:, 0, :NUM_CLASSES]


# ---------------- plain-JAX glue ----------------
def build_patch_rows(images):
    """NCHW -> (B, SEQ, C*p*p) where row 0 (CLS slot) is zeros; flatten order (c,u,v)."""
    b, c, h, w = images.shape
    gh, gw = h // PATCH, w // PATCH
    x = images.reshape(b, c, gh, PATCH, gw, PATCH)
    x = x.transpose(0, 2, 4, 1, 3, 5)                 # (B, gh, gw, C, p, p)
    patches = x.reshape(b, gh * gw, CPP)
    zeros = jnp.zeros((b, 1, CPP), patches.dtype)     # CLS "patch" = 0 (no conv bias)
    return jnp.concatenate([zeros, patches], axis=1)  # (B, SEQ, CPP)


def clip_fashion_mnist_forward(images, prep):
    x_in = build_patch_rows(images)
    return clip_forward_fused(x_in, prep)


# ---------------- parameter prep: slab layouts, BN fold, bf16 weights ----------------
# Invariant (required by _ln and the residual chain): padded lanes / rows / cols of every
# prepared tensor are exactly zero.
def prepare_params(p):
    def vec(v):
        return jnp.pad(v.reshape(1, -1), ((0, 0), (0, PAD - v.shape[-1])))

    def pad2(a, rows, cols):
        return jnp.pad(a, ((0, rows - a.shape[0]), (0, cols - a.shape[1])))

    prep = {
        "patch_w": pad2(p["patch_w"], CPP, PAD).astype(jnp.bfloat16),       # (CPP, PAD)
        # additive embedding per position: row0 = class_emb + pos[0], rows>=1 = pos[s]
        "add_emb": pad2(p["pos_emb"].at[0].add(p["class_emb"]), SEQ, PAD),  # (SEQ, PAD)
        "pre_ln_g": vec(p["pre_ln_g"]), "pre_ln_b": vec(p["pre_ln_b"]),
        "post_ln_g": vec(p["post_ln_g"]), "post_ln_b": vec(p["post_ln_b"]),
        "head_fc1_w": pad2(p["head_fc1_w"], PAD, FC1_PAD).astype(jnp.bfloat16),
        "head_fc1_b": vec(p["head_fc1_b"]),
    }
    # Fold eval-mode BatchNorm1d into fc2 (BN sits AFTER the ReLU, so fold into fc2):
    #   BN(y) = y*scale + shift;  fc2(BN(y)) = y @ (scale[:,None]*W2) + (shift @ W2 + b2)
    scale = p["bn_g"] * jax.lax.rsqrt(p["bn_var"] + BN_EPS)
    shift = p["bn_b"] - p["bn_mean"] * scale
    w2 = p["head_fc2_w"] * scale[:, None]
    b2 = p["head_fc2_b"] + shift @ p["head_fc2_w"]
    prep["head_fc2_w"] = pad2(w2, FC1_PAD, PAD).astype(jnp.bfloat16)
    prep["head_fc2_b"] = vec(b2)

    acc = {k: [] for k in ("ln1_g", "ln1_b", "qkv_w", "qkv_b", "o_w", "o_b",
                           "ln2_g", "ln2_b", "fc1_w", "fc1_b", "fc2_w", "fc2_b")}
    for lp in p["layers"]:
        # QKV: each head's q/k/v goes into its own zero-padded 128-lane slab.
        # Slab order: q_h0..q_h3, k_h0..k_h3, v_h0..v_h3 (matches in-kernel slicing).
        qkv_w = jnp.zeros((PAD, QKV_W), jnp.float32)
        qkv_b = jnp.zeros((1, QKV_W), jnp.float32)
        for idx, (wm, bv) in enumerate(((lp["q_w"], lp["q_b"]),
                                        (lp["k_w"], lp["k_b"]),
                                        (lp["v_w"], lp["v_b"]))):
            for h in range(NUM_HEADS):
                col = (idx * NUM_HEADS + h) * PAD
                qkv_w = qkv_w.at[:HIDDEN, col:col + HEAD_DIM].set(
                    wm[:, h * HEAD_DIM:(h + 1) * HEAD_DIM])
                qkv_b = qkv_b.at[0, col:col + HEAD_DIM].set(
                    bv[h * HEAD_DIM:(h + 1) * HEAD_DIM])
        # out_proj laid out to match the lane-block-concatenated head outputs.
        o_w = jnp.zeros((HSLAB, PAD), jnp.float32)
        for h in range(NUM_HEADS):
            o_w = o_w.at[h * PAD:h * PAD + HEAD_DIM, :HIDDEN].set(
                lp["o_w"][h * HEAD_DIM:(h + 1) * HEAD_DIM, :])

        acc["ln1_g"].append(vec(lp["ln1_g"])); acc["ln1_b"].append(vec(lp["ln1_b"]))
        acc["qkv_w"].append(qkv_w.astype(jnp.bfloat16))
        acc["qkv_b"].append(qkv_b)
        acc["o_w"].append(o_w.astype(jnp.bfloat16))
        acc["o_b"].append(vec(lp["o_b"]))
        acc["ln2_g"].append(vec(lp["ln2_g"])); acc["ln2_b"].append(vec(lp["ln2_b"]))
        acc["fc1_w"].append(pad2(lp["mlp_fc1_w"], PAD, I_PAD).astype(jnp.bfloat16))
        acc["fc1_b"].append(vec(lp["mlp_fc1_b"]))
        acc["fc2_w"].append(pad2(lp["mlp_fc2_w"], I_PAD, PAD).astype(jnp.bfloat16))
        acc["fc2_b"].append(vec(lp["mlp_fc2_b"]))
    for k, vlist in acc.items():
        prep[k] = jnp.stack(vlist, axis=0)
    return prep


def init_params(key):
    keys = iter(jax.random.split(key, 32))
    nrm = lambda shape, s=0.02: (s * jax.random.normal(next(keys), shape)).astype(jnp.float32)
    zeros = lambda shape: jnp.zeros(shape, jnp.float32)
    ones = lambda shape: jnp.ones(shape, jnp.float32)

    layers = []
    for _ in range(NUM_LAYERS):
        layers.append(dict(
            ln1_g=ones((HIDDEN,)), ln1_b=zeros((HIDDEN,)),
            q_w=nrm((HIDDEN, HIDDEN)), q_b=zeros((HIDDEN,)),
            k_w=nrm((HIDDEN, HIDDEN)), k_b=zeros((HIDDEN,)),
            v_w=nrm((HIDDEN, HIDDEN)), v_b=zeros((HIDDEN,)),
            o_w=nrm((HIDDEN, HIDDEN)), o_b=zeros((HIDDEN,)),
            ln2_g=ones((HIDDEN,)), ln2_b=zeros((HIDDEN,)),
            mlp_fc1_w=nrm((HIDDEN, INTERMEDIATE)), mlp_fc1_b=zeros((INTERMEDIATE,)),
            mlp_fc2_w=nrm((INTERMEDIATE, HIDDEN)), mlp_fc2_b=zeros((HIDDEN,)),
        ))

    return dict(
        patch_w=nrm((CPP, HIDDEN)),
        class_emb=nrm((HIDDEN,)),
        pos_emb=nrm((SEQ, HIDDEN)),
        pre_ln_g=ones((HIDDEN,)), pre_ln_b=zeros((HIDDEN,)),
        post_ln_g=ones((HIDDEN,)), post_ln_b=zeros((HIDDEN,)),
        layers=layers,
        head_fc1_w=nrm((HIDDEN, FC1_OUT)), head_fc1_b=zeros((FC1_OUT,)),
        bn_g=ones((FC1_OUT,)), bn_b=zeros((FC1_OUT,)),
        bn_mean=zeros((FC1_OUT,)), bn_var=ones((FC1_OUT,)),
        head_fc2_w=nrm((FC1_OUT, NUM_CLASSES)), head_fc2_b=zeros((NUM_CLASSES,)),
    )


# TODO(synk): training-mode Dropout(p=0.25) and BatchNorm batch statistics are not
# implemented (eval/inference semantics only); pretrained CLIP weights are replaced by
# random init since no file/network access is allowed.

if __name__ == "__main__":
    key = jax.random.PRNGKey(0)
    pkey, xkey = jax.random.split(key)
    params = init_params(pkey)
    prep = prepare_params(params)
    images = jax.random.normal(xkey, (BATCH, CHANNELS, IMG, IMG), jnp.float32)

    logits = jax.jit(clip_fashion_mnist_forward)(images, prep)
    jax.block_until_ready(logits)
    assert logits.shape == (BATCH, NUM_CLASSES), logits.shape
    assert bool(jnp.all(jnp.isfinite(logits)))
    print("KERNEL_OK")
</pallas_src>

<mosaic_0001>
module attributes {stable_mosaic.version = 11 : i64} {
  func.func @_fused_forward_kernel(%arg0: i32, %arg1: memref<1x5x192xf32, #tpu.memory_space<vmem>>, %arg2: memref<192x128xbf16, #tpu.memory_space<vmem>>, %arg3: memref<5x128xf32, #tpu.memory_space<vmem>>, %arg4: memref<1x128xf32, #tpu.memory_space<vmem>>, %arg5: memref<1x128xf32, #tpu.memory_space<vmem>>, %arg6: memref<2x1x128xf32, #tpu.memory_space<vmem>>, %arg7: memref<2x1x128xf32, #tpu.memory_space<vmem>>, %arg8: memref<2x128x1536xbf16, #tpu.memory_space<vmem>>, %arg9: memref<2x1x1536xf32, #tpu.memory_space<vmem>>, %arg10: memref<2x512x128xbf16, #tpu.memory_space<vmem>>, %arg11: memref<2x1x128xf32, #tpu.memory_space<vmem>>, %arg12: memref<2x1x128xf32, #tpu.memory_space<vmem>>, %arg13: memref<2x1x128xf32, #tpu.memory_space<vmem>>, %arg14: memref<2x128x128xbf16, #tpu.memory_space<vmem>>, %arg15: memref<2x1x128xf32, #tpu.memory_space<vmem>>, %arg16: memref<2x128x128xbf16, #tpu.memory_space<vmem>>, %arg17: memref<2x1x128xf32, #tpu.memory_space<vmem>>, %arg18: memref<1x128xf32, #tpu.memory_space<vmem>>, %arg19: memref<1x128xf32, #tpu.memory_space<vmem>>, %arg20: memref<128x128xbf16, #tpu.memory_space<vmem>>, %arg21: memref<1x128xf32, #tpu.memory_space<vmem>>, %arg22: memref<128x128xbf16, #tpu.memory_space<vmem>>, %arg23: memref<1x128xf32, #tpu.memory_space<vmem>>, %arg24: memref<1x1x128xf32, #tpu.memory_space<vmem>>) attributes {dimension_semantics = [#tpu.dimension_semantics<parallel>], iteration_bounds = array<i64: 2>, scalar_prefetch = 0 : i64, scratch_operands = 0 : i64, tpu.core_type = #tpu.core_type<tc>, window_params = [{transform_indices = @transform_0, window_bounds = array<i64: 1, 5, 192>}, {pipeline_mode = #tpu.pipeline_mode<synchronous>, transform_indices = @transform_1, window_bounds = array<i64: 192, 128>}, {pipeline_mode = #tpu.pipeline_mode<synchronous>, transform_indices = @transform_2, window_bounds = array<i64: 5, 128>}, {pipeline_mode = #tpu.pipeline_mode<synchronous>, transform_indices = @transform_3, window_bounds = array<i64: 1, 128>}, {pipeline_mode = #tpu.pipeline_mode<synchronous>, transform_indices = @transform_4, window_bounds = array<i64: 1, 128>}, {pipeline_mode = #tpu.pipeline_mode<synchronous>, transform_indices = @transform_5, window_bounds = array<i64: 2, 1, 128>}, {pipeline_mode = #tpu.pipeline_mode<synchronous>, transform_indices = @transform_6, window_bounds = array<i64: 2, 1, 128>}, {pipeline_mode = #tpu.pipeline_mode<synchronous>, transform_indices = @transform_7, window_bounds = array<i64: 2, 128, 1536>}, {pipeline_mode = #tpu.pipeline_mode<synchronous>, transform_indices = @transform_8, window_bounds = array<i64: 2, 1, 1536>}, {pipeline_mode = #tpu.pipeline_mode<synchronous>, transform_indices = @transform_9, window_bounds = array<i64: 2, 512, 128>}, {pipeline_mode = #tpu.pipeline_mode<synchronous>, transform_indices = @transform_10, window_bounds = array<i64: 2, 1, 128>}, {pipeline_mode = #tpu.pipeline_mode<synchronous>, transform_indices = @transform_11, window_bounds = array<i64: 2, 1, 128>}, {pipeline_mode = #tpu.pipeline_mode<synchronous>, transform_indices = @transform_12, window_bounds = array<i64: 2, 1, 128>}, {pipeline_mode = #tpu.pipeline_mode<synchronous>, transform_indices = @transform_13, window_bounds = array<i64: 2, 128, 128>}, {pipeline_mode = #tpu.pipeline_mode<synchronous>, transform_indices = @transform_14, window_bounds = array<i64: 2, 1, 128>}, {pipeline_mode = #tpu.pipeline_mode<synchronous>, transform_indices = @transform_15, window_bounds = array<i64: 2, 128, 128>}, {pipeline_mode = #tpu.pipeline_mode<synchronous>, transform_indices = @transform_16, window_bounds = array<i64: 2, 1, 128>}, {pipeline_mode = #tpu.pipeline_mode<synchronous>, transform_indices = @transform_17, window_bounds = array<i64: 1, 128>}, {pipeline_mode = #tpu.pipeline_mode<synchronous>, transform_indices = @transform_18, window_bounds = array<i64: 1, 128>}, {pipeline_mode = #tpu.pipeline_mode<synchronous>, transform_indices = @transform_19, window_bounds = array<i64: 128, 128>}, {pipeline_mode = #tpu.pipeline_mode<synchronous>, transform_indices = @transform_20, window_bounds = array<i64: 1, 128>}, {pipeline_mode = #tpu.pipeline_mode<synchronous>, transform_indices = @transform_21, window_bounds = array<i64: 128, 128>}, {pipeline_mode = #tpu.pipeline_mode<synchronous>, transform_indices = @transform_22, window_bounds = array<i64: 1, 128>}, {transform_indices = @transform_23, window_bounds = array<i64: 1, 1, 128>}]} {
    %c0 = arith.constant 0 : index
    %c0_0 = arith.constant 0 : index
    %c0_1 = arith.constant 0 : index
    %0 = vector.load %arg1[%c0, %c0_0, %c0_1] : memref<1x5x192xf32, #tpu.memory_space<vmem>>, vector<1x5x192xf32>
    %1 = vector.shape_cast %0 : vector<1x5x192xf32> to vector<5x192xf32>
    %2 = arith.truncf %1 : vector<5x192xf32> to vector<5x192xbf16>
    %c0_2 = arith.constant 0 : index
    %c0_3 = arith.constant 0 : index
    %3 = vector.load %arg2[%c0_2, %c0_3] : memref<192x128xbf16, #tpu.memory_space<vmem>>, vector<192x128xbf16>
    %cst = arith.constant dense<0.000000e+00> : vector<5x128xf32>
    %4 = tpu.matmul %2, %3, %cst {dimension_numbers = #tpu.dot_dimension_numbers<[1], [0], [0], [1], [0, 0, 1, 1], [], []>} : vector<5x192xbf16>, vector<192x128xbf16>, vector<5x128xf32> -> vector<5x128xf32>
    %c0_4 = arith.constant 0 : index
    %c0_5 = arith.constant 0 : index
    %5 = vector.load %arg3[%c0_4, %c0_5] : memref<5x128xf32, #tpu.memory_space<vmem>>, vector<5x128xf32>
    %6 = arith.addf %4, %5 : vector<5x128xf32>
    %c0_6 = arith.constant 0 : index
    %c0_7 = arith.constant 0 : index
    %7 = vector.load %arg4[%c0_6, %c0_7] : memref<1x128xf32, #tpu.memory_space<vmem>>, vector<1x128xf32>
    %c0_8 = arith.constant 0 : index
    %c0_9 = arith.constant 0 : index
    %8 = vector.load %arg5[%c0_8, %c0_9] : memref<1x128xf32, #tpu.memory_space<vmem>>, vector<1x128xf32>
    %cst_10 = arith.constant dense<0.000000e+00> : vector<5xf32>
    %9 = vector.multi_reduction <add>, %6, %cst_10 [1] : vector<5x128xf32> to vector<5xf32>
    %10 = vector.shape_cast %9 : vector<5xf32> to vector<5x1xf32>
    %cst_11 = arith.constant 3.125000e-02 : f32
    %11 = vector.broadcast %cst_11 : f32 to vector<5x1xf32>
    %12 = arith.mulf %10, %11 : vector<5x1xf32>
    %13 = arith.mulf %6, %6 : vector<5x128xf32>
    %cst_12 = arith.constant dense<0.000000e+00> : vector<5xf32>
    %14 = vector.multi_reduction <add>, %13, %cst_12 [1] : vector<5x128xf32> to vector<5xf32>
    %15 = vector.shape_cast %14 : vector<5xf32> to vector<5x1xf32>
    %cst_13 = arith.constant 3.125000e-02 : f32
    %16 = vector.broadcast %cst_13 : f32 to vector<5x1xf32>
    %17 = arith.mulf %15, %16 : vector<5x1xf32>
    %18 = arith.mulf %12, %12 : vector<5x1xf32>
    %19 = arith.subf %17, %18 : vector<5x1xf32>
    %cst_14 = arith.constant 0.000000e+00 : f32
    %20 = vector.broadcast %cst_14 : f32 to vector<5x1xf32>
    %21 = arith.maximumf %19, %20 : vector<5x1xf32>
    %22 = vector.broadcast %12 : vector<5x1xf32> to vector<5x128xf32>
    %23 = arith.subf %6, %22 : vector<5x128xf32>
    %cst_15 = arith.constant 9.99999974E-6 : f32
    %24 = vector.broadcast %cst_15 : f32 to vector<5x1xf32>
    %25 = arith.addf %21, %24 : vector<5x1xf32>
    %26 = math.rsqrt %25 : vector<5x1xf32>
    %27 = vector.broadcast %26 : vector<5x1xf32> to vector<5x128xf32>
    %28 = arith.mulf %23, %27 : vector<5x128xf32>
    %29 = vector.broadcast %7 : vector<1x128xf32> to vector<5x128xf32>
    %30 = arith.mulf %28, %29 : vector<5x128xf32>
    %31 = vector.broadcast %8 : vector<1x128xf32> to vector<5x128xf32>
    %32 = arith.addf %30, %31 : vector<5x128xf32>
    %c0_16 = arith.constant 0 : index
    %c0_17 = arith.constant 0 : index
    %c0_18 = arith.constant 0 : index
    %33 = vector.load %arg6[%c0_16, %c0_17, %c0_18] : memref<2x1x128xf32, #tpu.memory_space<vmem>>, vector<1x1x128xf32>
    %34 = vector.shape_cast %33 : vector<1x1x128xf32> to vector<1x128xf32>
    %c0_19 = arith.constant 0 : index
    %c0_20 = arith.constant 0 : index
    %c0_21 = arith.constant 0 : index
    %35 = vector.load %arg7[%c0_19, %c0_20, %c0_21] : memref<2x1x128xf32, #tpu.memory_space<vmem>>, vector<1x1x128xf32>
    %36 = vector.shape_cast %35 : vector<1x1x128xf32> to vector<1x128xf32>
    %c0_22 = arith.constant 0 : index
    %c0_23 = arith.constant 0 : index
    %c0_24 = arith.constant 0 : index
    %37 = vector.load %arg8[%c0_22, %c0_23, %c0_24] : memref<2x128x1536xbf16, #tpu.memory_space<vmem>>, vector<1x128x1536xbf16>
    %38 = vector.shape_cast %37 : vector<1x128x1536xbf16> to vector<128x1536xbf16>
    %c0_25 = arith.constant 0 : index
    %c0_26 = arith.constant 0 : index
    %c0_27 = arith.constant 0 : index
    %39 = vector.load %arg9[%c0_25, %c0_26, %c0_27] : memref<2x1x1536xf32, #tpu.memory_space<vmem>>, vector<1x1x1536xf32>
    %40 = vector.shape_cast %39 : vector<1x1x1536xf32> to vector<1x1536xf32>
    %c0_28 = arith.constant 0 : index
    %c0_29 = arith.constant 0 : index
    %c0_30 = arith.constant 0 : index
    %41 = vector.load %arg10[%c0_28, %c0_29, %c0_30] : memref<2x512x128xbf16, #tpu.memory_space<vmem>>, vector<1x512x128xbf16>
    %42 = vector.shape_cast %41 : vector<1x512x128xbf16> to vector<512x128xbf16>
    %c0_31 = arith.constant 0 : index
    %c0_32 = arith.constant 0 : index
    %c0_33 = arith.constant 0 : index
    %43 = vector.load %arg11[%c0_31, %c0_32, %c0_33] : memref<2x1x128xf32, #tpu.memory_space<vmem>>, vector<1x1x128xf32>
    %44 = vector.shape_cast %43 : vector<1x1x128xf32> to vector<1x128xf32>
    %c0_34 = arith.constant 0 : index
    %c0_35 = arith.constant 0 : index
    %c0_36 = arith.constant 0 : index
    %45 = vector.load %arg12[%c0_34, %c0_35, %c0_36] : memref<2x1x128xf32, #tpu.memory_space<vmem>>, vector<1x1x128xf32>
    %46 = vector.shape_cast %45 : vector<1x1x128xf32> to vector<1x128xf32>
    %c0_37 = arith.constant 0 : index
    %c0_38 = arith.constant 0 : index
    %c0_39 = arith.constant 0 : index
    %47 = vector.load %arg13[%c0_37, %c0_38, %c0_39] : memref<2x1x128xf32, #tpu.memory_space<vmem>>, vector<1x1x128xf32>
    %48 = vector.shape_cast %47 : vector<1x1x128xf32> to vector<1x128xf32>
    %c0_40 = arith.constant 0 : index
    %c0_41 = arith.constant 0 : index
    %c0_42 = arith.constant 0 : index
    %49 = vector.load %arg14[%c0_40, %c0_41, %c0_42] : memref<2x128x128xbf16, #tpu.memory_space<vmem>>, vector<1x128x128xbf16>
    %50 = vector.shape_cast %49 : vector<1x128x128xbf16> to vector<128x128xbf16>
    %c0_43 = arith.constant 0 : index
    %c0_44 = arith.constant 0 : index
    %c0_45 = arith.constant 0 : index
    %51 = vector.load %arg15[%c0_43, %c0_44, %c0_45] : memref<2x1x128xf32, #tpu.memory_space<vmem>>, vector<1x1x128xf32>
    %52 = vector.shape_cast %51 : vector<1x1x128xf32> to vector<1x128xf32>
    %c0_46 = arith.constant 0 : index
    %c0_47 = arith.constant 0 : index
    %c0_48 = arith.constant 0 : index
    %53 = vector.load %arg16[%c0_46, %c0_47, %c0_48] : memref<2x128x128xbf16, #tpu.memory_space<vmem>>, vector<1x128x128xbf16>
    %54 = vector.shape_cast %53 : vector<1x128x128xbf16> to vector<128x128xbf16>
    %c0_49 = arith.constant 0 : index
    %c0_50 = arith.constant 0 : index
    %c0_51 = arith.constant 0 : index
    %55 = vector.load %arg17[%c0_49, %c0_50, %c0_51] : memref<2x1x128xf32, #tpu.memory_space<vmem>>, vector<1x1x128xf32>
    %56 = vector.shape_cast %55 : vector<1x1x128xf32> to vector<1x128xf32>
    %cst_52 = arith.constant dense<0.000000e+00> : vector<5xf32>
    %57 = vector.multi_reduction <add>, %32, %cst_52 [1] : vector<5x128xf32> to vector<5xf32>
    %58 = vector.shape_cast %57 : vector<5xf32> to vector<5x1xf32>
    %cst_53 = arith.constant 3.125000e-02 : f32
    %59 = vector.broadcast %cst_53 : f32 to vector<5x1xf32>
    %60 = arith.mulf %58, %59 : vector<5x1xf32>
    %61 = arith.mulf %32, %32 : vector<5x128xf32>
    %cst_54 = arith.constant dense<0.000000e+00> : vector<5xf32>
    %62 = vector.multi_reduction <add>, %61, %cst_54 [1] : vector<5x128xf32> to vector<5xf32>
    %63 = vector.shape_cast %62 : vector<5xf32> to vector<5x1xf32>
    %cst_55 = arith.constant 3.125000e-02 : f32
    %64 = vector.broadcast %cst_55 : f32 to vector<5x1xf32>
    %65 = arith.mulf %63, %64 : vector<5x1xf32>
    %66 = arith.mulf %60, %60 : vector<5x1xf32>
    %67 = arith.subf %65, %66 : vector<5x1xf32>
    %cst_56 = arith.constant 0.000000e+00 : f32
    %68 = vector.broadcast %cst_56 : f32 to vector<5x1xf32>
    %69 = arith.maximumf %67, %68 : vector<5x1xf32>
    %70 = vector.broadcast %60 : vector<5x1xf32> to vector<5x128xf32>
    %71 = arith.subf %32, %70 : vector<5x128xf32>
    %cst_57 = arith.constant 9.99999974E-6 : f32
    %72 = vector.broadcast %cst_57 : f32 to vector<5x1xf32>
    %73 = arith.addf %69, %72 : vector<5x1xf32>
    %74 = math.rsqrt %73 : vector<5x1xf32>
    %75 = vector.broadcast %74 : vector<5x1xf32> to vector<5x128xf32>
    %76 = arith.mulf %71, %75 : vector<5x128xf32>
    %77 = vector.broadcast %34 : vector<1x128xf32> to vector<5x128xf32>
    %78 = arith.mulf %76, %77 : vector<5x128xf32>
    %79 = vector.broadcast %36 : vector<1x128xf32> to vector<5x128xf32>
    %80 = arith.addf %78, %79 : vector<5x128xf32>
    %81 = arith.truncf %80 : vector<5x128xf32> to vector<5x128xbf16>
    %cst_58 = arith.constant dense<0.000000e+00> : vector<5x1536xf32>
    %82 = tpu.matmul %81, %38, %cst_58 {dimension_numbers = #tpu.dot_dimension_numbers<[1], [0], [0], [1], [0, 0, 1, 1], [], []>} : vector<5x128xbf16>, vector<128x1536xbf16>, vector<5x1536xf32> -> vector<5x1536xf32>
    %83 = vector.broadcast %40 : vector<1x1536xf32> to vector<5x1536xf32>
    %84 = arith.addf %82, %83 : vector<5x1536xf32>
    %85 = vector.extract_strided_slice %84 {offsets = [0, 0], sizes = [5, 128], strides = [1, 1]} : vector<5x1536xf32> to vector<5x128xf32>
    %cst_59 = arith.constant 0.353553385 : f32
    %86 = vector.broadcast %cst_59 : f32 to vector<5x128xf32>
    %87 = arith.mulf %85, %86 : vector<5x128xf32>
    %88 = vector.extract_strided_slice %84 {offsets = [0, 512], sizes = [5, 128], strides = [1, 1]} : vector<5x1536xf32> to vector<5x128xf32>
    %89 = vector.extract_strided_slice %84 {offsets = [0, 1024], sizes = [5, 128], strides = [1, 1]} : vector<5x1536xf32> to vector<5x128xf32>
    %90 = arith.truncf %87 : vector<5x128xf32> to vector<5x128xbf16>
    %91 = arith.truncf %88 : vector<5x128xf32> to vector<5x128xbf16>
    %cst_60 = arith.constant dense<0.000000e+00> : vector<5x5xf32>
    %92 = tpu.matmul %90, %91, %cst_60 {dimension_numbers = #tpu.dot_dimension_numbers<[1], [1], [0], [0], [0, 0, 1, 0], [], []>} : vector<5x128xbf16>, vector<5x128xbf16>, vector<5x5xf32> -> vector<5x5xf32>
    %cst_61 = arith.constant dense<0xFF800000> : vector<5xf32>
    %93 = vector.multi_reduction <maximumf>, %92, %cst_61 [1] : vector<5x5xf32> to vector<5xf32>
    %94 = vector.shape_cast %93 : vector<5xf32> to vector<5x1xf32>
    %95 = vector.broadcast %94 : vector<5x1xf32> to vector<5x5xf32>
    %96 = arith.subf %92, %95 : vector<5x5xf32>
    %97 = math.exp %96 : vector<5x5xf32>
    %cst_62 = arith.constant dense<0.000000e+00> : vector<5xf32>
    %98 = vector.multi_reduction <add>, %97, %cst_62 [1] : vector<5x5xf32> to vector<5xf32>
    %99 = vector.shape_cast %98 : vector<5xf32> to vector<5x1xf32>
    %100 = tpu.reciprocal %99 {approx = true} : vector<5x1xf32> -> vector<5x1xf32>
    %101 = vector.broadcast %100 : vector<5x1xf32> to vector<5x5xf32>
    %102 = arith.mulf %97, %101 : vector<5x5xf32>
    %103 = arith.truncf %102 : vector<5x5xf32> to vector<5x5xbf16>
    %104 = arith.truncf %89 : vector<5x128xf32> to vector<5x128xbf16>
    %cst_63 = arith.constant dense<0.000000e+00> : vector<5x128xf32>
    %105 = tpu.matmul %103, %104, %cst_63 {dimension_numbers = #tpu.dot_dimension_numbers<[1], [0], [0], [1], [0, 0, 1, 1], [], []>} : vector<5x5xbf16>, vector<5x128xbf16>, vector<5x128xf32> -> vector<5x128xf32>
    %106 = vector.extract_strided_slice %84 {offsets = [0, 128], sizes = [5, 128], strides = [1, 1]} : vector<5x1536xf32> to vector<5x128xf32>
    %cst_64 = arith.constant 0.353553385 : f32
    %107 = vector.broadcast %cst_64 : f32 to vector<5x128xf32>
    %108 = arith.mulf %106, %107 : vector<5x128xf32>
    %109 = vector.extract_strided_slice %84 {offsets = [0, 640], sizes = [5, 128], strides = [1, 1]} : vector<5x1536xf32> to vector<5x128xf32>
    %110 = vector.extract_strided_slice %84 {offsets = [0, 1152], sizes = [5, 128], strides = [1, 1]} : vector<5x1536xf32> to vector<5x128xf32>
    %111 = arith.truncf %108 : vector<5x128xf32> to vector<5x128xbf16>
    %112 = arith.truncf %109 : vector<5x128xf32> to vector<5x128xbf16>
    %cst_65 = arith.constant dense<0.000000e+00> : vector<5x5xf32>
    %113 = tpu.matmul %111, %112, %cst_65 {dimension_numbers = #tpu.dot_dimension_numbers<[1], [1], [0], [0], [0, 0, 1, 0], [], []>} : vector<5x128xbf16>, vector<5x128xbf16>, vector<5x5xf32> -> vector<5x5xf32>
    %cst_66 = arith.constant dense<0xFF800000> : vector<5xf32>
    %114 = vector.multi_reduction <maximumf>, %113, %cst_66 [1] : vector<5x5xf32> to vector<5xf32>
    %115 = vector.shape_cast %114 : vector<5xf32> to vector<5x1xf32>
    %116 = vector.broadcast %115 : vector<5x1xf32> to vector<5x5xf32>
    %117 = arith.subf %113, %116 : vector<5x5xf32>
    %118 = math.exp %117 : vector<5x5xf32>
    %cst_67 = arith.constant dense<0.000000e+00> : vector<5xf32>
    %119 = vector.multi_reduction <add>, %118, %cst_67 [1] : vector<5x5xf32> to vector<5xf32>
    %120 = vector.shape_cast %119 : vector<5xf32> to vector<5x1xf32>
    %121 = tpu.reciprocal %120 {approx = true} : vector<5x1xf32> -> vector<5x1xf32>
    %122 = vector.broadcast %121 : vector<5x1xf32> to vector<5x5xf32>
    %123 = arith.mulf %118, %122 : vector<5x5xf32>
    %124 = arith.truncf %123 : vector<5x5xf32> to vector<5x5xbf16>
    %125 = arith.truncf %110 : vector<5x128xf32> to vector<5x128xbf16>
    %cst_68 = arith.constant dense<0.000000e+00> : vector<5x128xf32>
    %126 = tpu.matmul %124, %125, %cst_68 {dimension_numbers = #tpu.dot_dimension_numbers<[1], [0], [0], [1], [0, 0, 1, 1], [], []>} : vector<5x5xbf16>, vector<5x128xbf16>, vector<5x128xf32> -> vector<5x128xf32>
    %127 = vector.extract_strided_slice %84 {offsets = [0, 256], sizes = [5, 128], strides = [1, 1]} : vector<5x1536xf32> to vector<5x128xf32>
    %cst_69 = arith.constant 0.353553385 : f32
    %128 = vector.broadcast %cst_69 : f32 to vector<5x128xf32>
    %129 = arith.mulf %127, %128 : vector<5x128xf32>
    %130 = vector.extract_strided_slice %84 {offsets = [0, 768], sizes = [5, 128], strides = [1, 1]} : vector<5x1536xf32> to vector<5x128xf32>
    %131 = vector.extract_strided_slice %84 {offsets = [0, 1280], sizes = [5, 128], strides = [1, 1]} : vector<5x1536xf32> to vector<5x128xf32>
    %132 = arith.truncf %129 : vector<5x128xf32> to vector<5x128xbf16>
    %133 = arith.truncf %130 : vector<5x128xf32> to vector<5x128xbf16>
    %cst_70 = arith.constant dense<0.000000e+00> : vector<5x5xf32>
    %134 = tpu.matmul %132, %133, %cst_70 {dimension_numbers = #tpu.dot_dimension_numbers<[1], [1], [0], [0], [0, 0, 1, 0], [], []>} : vector<5x128xbf16>, vector<5x128xbf16>, vector<5x5xf32> -> vector<5x5xf32>
    %cst_71 = arith.constant dense<0xFF800000> : vector<5xf32>
    %135 = vector.multi_reduction <maximumf>, %134, %cst_71 [1] : vector<5x5xf32> to vector<5xf32>
    %136 = vector.shape_cast %135 : vector<5xf32> to vector<5x1xf32>
    %137 = vector.broadcast %136 : vector<5x1xf32> to vector<5x5xf32>
    %138 = arith.subf %134, %137 : vector<5x5xf32>
    %139 = math.exp %138 : vector<5x5xf32>
    %cst_72 = arith.constant dense<0.000000e+00> : vector<5xf32>
    %140 = vector.multi_reduction <add>, %139, %cst_72 [1] : vector<5x5xf32> to vector<5xf32>
    %141 = vector.shape_cast %140 : vector<5xf32> to vector<5x1xf32>
    %142 = tpu.reciprocal %141 {approx = true} : vector<5x1xf32> -> vector<5x1xf32>
    %143 = vector.broadcast %142 : vector<5x1xf32> to vector<5x5xf32>
    %144 = arith.mulf %139, %143 : vector<5x5xf32>
    %145 = arith.truncf %144 : vector<5x5xf32> to vector<5x5xbf16>
    %146 = arith.truncf %131 : vector<5x128xf32> to vector<5x128xbf16>
    %cst_73 = arith.constant dense<0.000000e+00> : vector<5x128xf32>
    %147 = tpu.matmul %145, %146, %cst_73 {dimension_numbers = #tpu.dot_dimension_numbers<[1], [0], [0], [1], [0, 0, 1, 1], [], []>} : vector<5x5xbf16>, vector<5x128xbf16>, vector<5x128xf32> -> vector<5x128xf32>
    %148 = vector.extract_strided_slice %84 {offsets = [0, 384], sizes = [5, 128], strides = [1, 1]} : vector<5x1536xf32> to vector<5x128xf32>
    %cst_74 = arith.constant 0.353553385 : f32
    %149 = vector.broadcast %cst_74 : f32 to vector<5x128xf32>
    %150 = arith.mulf %148, %149 : vector<5x128xf32>
    %151 = vector.extract_strided_slice %84 {offsets = [0, 896], sizes = [5, 128], strides = [1, 1]} : vector<5x1536xf32> to vector<5x128xf32>
    %152 = vector.extract_strided_slice %84 {offsets = [0, 1408], sizes = [5, 128], strides = [1, 1]} : vector<5x1536xf32> to vector<5x128xf32>
    %153 = arith.truncf %150 : vector<5x128xf32> to vector<5x128xbf16>
    %154 = arith.truncf %151 : vector<5x128xf32> to vector<5x128xbf16>
    %cst_75 = arith.constant dense<0.000000e+00> : vector<5x5xf32>
    %155 = tpu.matmul %153, %154, %cst_75 {dimension_numbers = #tpu.dot_dimension_numbers<[1], [1], [0], [0], [0, 0, 1, 0], [], []>} : vector<5x128xbf16>, vector<5x128xbf16>, vector<5x5xf32> -> vector<5x5xf32>
    %cst_76 = arith.constant dense<0xFF800000> : vector<5xf32>
    %156 = vector.multi_reduction <maximumf>, %155, %cst_76 [1] : vector<5x5xf32> to vector<5xf32>
    %157 = vector.shape_cast %156 : vector<5xf32> to vector<5x1xf32>
    %158 = vector.broadcast %157 : vector<5x1xf32> to vector<5x5xf32>
    %159 = arith.subf %155, %158 : vector<5x5xf32>
    %160 = math.exp %159 : vector<5x5xf32>
    %cst_77 = arith.constant dense<0.000000e+00> : vector<5xf32>
    %161 = vector.multi_reduction <add>, %160, %cst_77 [1] : vector<5x5xf32> to vector<5xf32>
    %162 = vector.shape_cast %161 : vector<5xf32> to vector<5x1xf32>
    %163 = tpu.reciprocal %162 {approx = true} : vector<5x1xf32> -> vector<5x1xf32>
    %164 = vector.broadcast %163 : vector<5x1xf32> to vector<5x5xf32>
    %165 = arith.mulf %160, %164 : vector<5x5xf32>
    %166 = arith.truncf %165 : vector<5x5xf32> to vector<5x5xbf16>
    %167 = arith.truncf %152 : vector<5x128xf32> to vector<5x128xbf16>
    %cst_78 = arith.constant dense<0.000000e+00> : vector<5x128xf32>
    %168 = tpu.matmul %166, %167, %cst_78 {dimension_numbers = #tpu.dot_dimension_numbers<[1], [0], [0], [1], [0, 0, 1, 1], [], []>} : vector<5x5xbf16>, vector<5x128xbf16>, vector<5x128xf32> -> vector<5x128xf32>
    %169 = tpu.concatenate %105, %126, %147, %168 in 1 : vector<5x128xf32>, vector<5x128xf32>, vector<5x128xf32>, vector<5x128xf32> -> vector<5x512xf32>
    %170 = arith.truncf %169 : vector<5x512xf32> to vector<5x512xbf16>
    %cst_79 = arith.constant dense<0.000000e+00> : vector<5x128xf32>
    %171 = tpu.matmul %170, %42, %cst_79 {dimension_numbers = #tpu.dot_dimension_numbers<[1], [0], [0], [1], [0, 0, 1, 1], [], []>} : vector<5x512xbf16>, vector<512x128xbf16>, vector<5x128xf32> -> vector<5x128xf32>
    %172 = arith.addf %32, %171 : vector<5x128xf32>
    %173 = vector.broadcast %44 : vector<1x128xf32> to vector<5x128xf32>
    %174 = arith.addf %172, %173 : vector<5x128xf32>
    %cst_80 = arith.constant dense<0.000000e+00> : vector<5xf32>
    %175 = vector.multi_reduction <add>, %174, %cst_80 [1] : vector<5x128xf32> to vector<5xf32>
    %176 = vector.shape_cast %175 : vector<5xf32> to vector<5x1xf32>
    %cst_81 = arith.constant 3.125000e-02 : f32
    %177 = vector.broadcast %cst_81 : f32 to vector<5x1xf32>
    %178 = arith.mulf %176, %177 : vector<5x1xf32>
    %179 = arith.mulf %174, %174 : vector<5x128xf32>
    %cst_82 = arith.constant dense<0.000000e+00> : vector<5xf32>
    %180 = vector.multi_reduction <add>, %179, %cst_82 [1] : vector<5x128xf32> to vector<5xf32>
    %181 = vector.shape_cast %180 : vector<5xf32> to vector<5x1xf32>
    %cst_83 = arith.constant 3.125000e-02 : f32
    %182 = vector.broadcast %cst_83 : f32 to vector<5x1xf32>
    %183 = arith.mulf %181, %182 : vector<5x1xf32>
    %184 = arith.mulf %178, %178 : vector<5x1xf32>
    %185 = arith.subf %183, %184 : vector<5x1xf32>
    %cst_84 = arith.constant 0.000000e+00 : f32
    %186 = vector.broadcast %cst_84 : f32 to vector<5x1xf32>
    %187 = arith.maximumf %185, %186 : vector<5x1xf32>
    %188 = vector.broadcast %178 : vector<5x1xf32> to vector<5x128xf32>
    %189 = arith.subf %174, %188 : vector<5x128xf32>
    %cst_85 = arith.constant 9.99999974E-6 : f32
    %190 = vector.broadcast %cst_85 : f32 to vector<5x1xf32>
    %191 = arith.addf %187, %190 : vector<5x1xf32>
    %192 = math.rsqrt %191 : vector<5x1xf32>
    %193 = vector.broadcast %192 : vector<5x1xf32> to vector<5x128xf32>
    %194 = arith.mulf %189, %193 : vector<5x128xf32>
    %195 = vector.broadcast %46 : vector<1x128xf32> to vector<5x128xf32>
    %196 = arith.mulf %194, %195 : vector<5x128xf32>
    %197 = vector.broadcast %48 : vector<1x128xf32> to vector<5x128xf32>
    %198 = arith.addf %196, %197 : vector<5x128xf32>
    %199 = arith.truncf %198 : vector<5x128xf32> to vector<5x128xbf16>
    %cst_86 = arith.constant dense<0.000000e+00> : vector<5x128xf32>
    %200 = tpu.matmul %199, %50, %cst_86 {dimension_numbers = #tpu.dot_dimension_numbers<[1], [0], [0], [1], [0, 0, 1, 1], [], []>} : vector<5x128xbf16>, vector<128x128xbf16>, vector<5x128xf32> -> vector<5x128xf32>
    %201 = vector.broadcast %52 : vector<1x128xf32> to vector<5x128xf32>
    %202 = arith.addf %200, %201 : vector<5x128xf32>
    %cst_87 = arith.constant 1.702000e+00 : f32
    %203 = vector.broadcast %cst_87 : f32 to vector<5x128xf32>
    %204 = arith.mulf %203, %202 : vector<5x128xf32>
    %205 = arith.negf %204 : vector<5x128xf32>
    %206 = math.exp %205 : vector<5x128xf32>
    %cst_88 = arith.constant 1.000000e+00 : f32
    %207 = vector.broadcast %cst_88 : f32 to vector<5x128xf32>
    %208 = arith.addf %207, %206 : vector<5x128xf32>
    %209 = arith.divf %207, %208 : vector<5x128xf32>
    %210 = arith.mulf %202, %209 : vector<5x128xf32>
    %211 = arith.truncf %210 : vector<5x128xf32> to vector<5x128xbf16>
    %cst_89 = arith.constant dense<0.000000e+00> : vector<5x128xf32>
    %212 = tpu.matmul %211, %54, %cst_89 {dimension_numbers = #tpu.dot_dimension_numbers<[1], [0], [0], [1], [0, 0, 1, 1], [], []>} : vector<5x128xbf16>, vector<128x128xbf16>, vector<5x128xf32> -> vector<5x128xf32>
    %213 = vector.broadcast %56 : vector<1x128xf32> to vector<5x128xf32>
    %214 = arith.addf %212, %213 : vector<5x128xf32>
    %215 = arith.addf %174, %214 : vector<5x128xf32>
    %c1 = arith.constant 1 : index
    %c0_90 = arith.constant 0 : index
    %c0_91 = arith.constant 0 : index
    %216 = vector.load %arg6[%c1, %c0_90, %c0_91] : memref<2x1x128xf32, #tpu.memory_space<vmem>>, vector<1x1x128xf32>
    %217 = vector.shape_cast %216 : vector<1x1x128xf32> to vector<1x128xf32>
    %c1_92 = arith.constant 1 : index
    %c0_93 = arith.constant 0 : index
    %c0_94 = arith.constant 0 : index
    %218 = vector.load %arg7[%c1_92, %c0_93, %c0_94] : memref<2x1x128xf32, #tpu.memory_space<vmem>>, vector<1x1x128xf32>
    %219 = vector.shape_cast %218 : vector<1x1x128xf32> to vector<1x128xf32>
    %c1_95 = arith.constant 1 : index
    %c0_96 = arith.constant 0 : index
    %c0_97 = arith.constant 0 : index
    %220 = vector.load %arg8[%c1_95, %c0_96, %c0_97] : memref<2x128x1536xbf16, #tpu.memory_space<vmem>>, vector<1x128x1536xbf16>
    %221 = vector.shape_cast %220 : vector<1x128x1536xbf16> to vector<128x1536xbf16>
    %c1_98 = arith.constant 1 : index
    %c0_99 = arith.constant 0 : index
    %c0_100 = arith.constant 0 : index
    %222 = vector.load %arg9[%c1_98, %c0_99, %c0_100] : memref<2x1x1536xf32, #tpu.memory_space<vmem>>, vector<1x1x1536xf32>
    %223 = vector.shape_cast %222 : vector<1x1x1536xf32> to vector<1x1536xf32>
    %c1_101 = arith.constant 1 : index
    %c0_102 = arith.constant 0 : index
    %c0_103 = arith.constant 0 : index
    %224 = vector.load %arg10[%c1_101, %c0_102, %c0_103] : memref<2x512x128xbf16, #tpu.memory_space<vmem>>, vector<1x512x128xbf16>
    %225 = vector.shape_cast %224 : vector<1x512x128xbf16> to vector<512x128xbf16>
    %c1_104 = arith.constant 1 : index
    %c0_105 = arith.constant 0 : index
    %c0_106 = arith.constant 0 : index
    %226 = vector.load %arg11[%c1_104, %c0_105, %c0_106] : memref<2x1x128xf32, #tpu.memory_space<vmem>>, vector<1x1x128xf32>
    %227 = vector.shape_cast %226 : vector<1x1x128xf32> to vector<1x128xf32>
    %c1_107 = arith.constant 1 : index
    %c0_108 = arith.constant 0 : index
    %c0_109 = arith.constant 0 : index
    %228 = vector.load %arg12[%c1_107, %c0_108, %c0_109] : memref<2x1x128xf32, #tpu.memory_space<vmem>>, vector<1x1x128xf32>
    %229 = vector.shape_cast %228 : vector<1x1x128xf32> to vector<1x128xf32>
    %c1_110 = arith.constant 1 : index
    %c0_111 = arith.constant 0 : index
    %c0_112 = arith.constant 0 : index
    %230 = vector.load %arg13[%c1_110, %c0_111, %c0_112] : memref<2x1x128xf32, #tpu.memory_space<vmem>>, vector<1x1x128xf32>
    %231 = vector.shape_cast %230 : vector<1x1x128xf32> to vector<1x128xf32>
    %c1_113 = arith.constant 1 : index
    %c0_114 = arith.constant 0 : index
    %c0_115 = arith.constant 0 : index
    %232 = vector.load %arg14[%c1_113, %c0_114, %c0_115] : memref<2x128x128xbf16, #tpu.memory_space<vmem>>, vector<1x128x128xbf16>
    %233 = vector.shape_cast %232 : vector<1x128x128xbf16> to vector<128x128xbf16>
    %c1_116 = arith.constant 1 : index
    %c0_117 = arith.constant 0 : index
    %c0_118 = arith.constant 0 : index
    %234 = vector.load %arg15[%c1_116, %c0_117, %c0_118] : memref<2x1x128xf32, #tpu.memory_space<vmem>>, vector<1x1x128xf32>
    %235 = vector.shape_cast %234 : vector<1x1x128xf32> to vector<1x128xf32>
    %c1_119 = arith.constant 1 : index
    %c0_120 = arith.constant 0 : index
    %c0_121 = arith.constant 0 : index
    %236 = vector.load %arg16[%c1_119, %c0_120, %c0_121] : memref<2x128x128xbf16, #tpu.memory_space<vmem>>, vector<1x128x128xbf16>
    %237 = vector.shape_cast %236 : vector<1x128x128xbf16> to vector<128x128xbf16>
    %c1_122 = arith.constant 1 : index
    %c0_123 = arith.constant 0 : index
    %c0_124 = arith.constant 0 : index
    %238 = vector.load %arg17[%c1_122, %c0_123, %c0_124] : memref<2x1x128xf32, #tpu.memory_space<vmem>>, vector<1x1x128xf32>
    %239 = vector.shape_cast %238 : vector<1x1x128xf32> to vector<1x128xf32>
    %cst_125 = arith.constant dense<0.000000e+00> : vector<5xf32>
    %240 = vector.multi_reduction <add>, %215, %cst_125 [1] : vector<5x128xf32> to vector<5xf32>
    %241 = vector.shape_cast %240 : vector<5xf32> to vector<5x1xf32>
    %cst_126 = arith.constant 3.125000e-02 : f32
    %242 = vector.broadcast %cst_126 : f32 to vector<5x1xf32>
    %243 = arith.mulf %241, %242 : vector<5x1xf32>
    %244 = arith.mulf %215, %215 : vector<5x128xf32>
    %cst_127 = arith.constant dense<0.000000e+00> : vector<5xf32>
    %245 = vector.multi_reduction <add>, %244, %cst_127 [1] : vector<5x128xf32> to vector<5xf32>
    %246 = vector.shape_cast %245 : vector<5xf32> to vector<5x1xf32>
    %cst_128 = arith.constant 3.125000e-02 : f32
    %247 = vector.broadcast %cst_128 : f32 to vector<5x1xf32>
    %248 = arith.mulf %246, %247 : vector<5x1xf32>
    %249 = arith.mulf %243, %243 : vector<5x1xf32>
    %250 = arith.subf %248, %249 : vector<5x1xf32>
    %cst_129 = arith.constant 0.000000e+00 : f32
    %251 = vector.broadcast %cst_129 : f32 to vector<5x1xf32>
    %252 = arith.maximumf %250, %251 : vector<5x1xf32>
    %253 = vector.broadcast %243 : vector<5x1xf32> to vector<5x128xf32>
    %254 = arith.subf %215, %253 : vector<5x128xf32>
    %cst_130 = arith.constant 9.99999974E-6 : f32
    %255 = vector.broadcast %cst_130 : f32 to vector<5x1xf32>
    %256 = arith.addf %252, %255 : vector<5x1xf32>
    %257 = math.rsqrt %256 : vector<5x1xf32>
    %258 = vector.broadcast %257 : vector<5x1xf32> to vector<5x128xf32>
    %259 = arith.mulf %254, %258 : vector<5x128xf32>
    %260 = vector.broadcast %217 : vector<1x128xf32> to vector<5x128xf32>
    %261 = arith.mulf %259, %260 : vector<5x128xf32>
    %262 = vector.broadcast %219 : vector<1x128xf32> to vector<5x128xf32>
    %263 = arith.addf %261, %262 : vector<5x128xf32>
    %264 = arith.truncf %263 : vector<5x128xf32> to vector<5x128xbf16>
    %cst_131 = arith.constant dense<0.000000e+00> : vector<5x1536xf32>
    %265 = tpu.matmul %264, %221, %cst_131 {dimension_numbers = #tpu.dot_dimension_numbers<[1], [0], [0], [1], [0, 0, 1, 1], [], []>} : vector<5x128xbf16>, vector<128x1536xbf16>, vector<5x1536xf32> -> vector<5x1536xf32>
    %266 = vector.broadcast %223 : vector<1x1536xf32> to vector<5x1536xf32>
    %267 = arith.addf %265, %266 : vector<5x1536xf32>
    %268 = vector.extract_strided_slice %267 {offsets = [0, 0], sizes = [5, 128], strides = [1, 1]} : vector<5x1536xf32> to vector<5x128xf32>
    %cst_132 = arith.constant 0.353553385 : f32
    %269 = vector.broadcast %cst_132 : f32 to vector<5x128xf32>
    %270 = arith.mulf %268, %269 : vector<5x128xf32>
    %271 = vector.extract_strided_slice %267 {offsets = [0, 512], sizes = [5, 128], strides = [1, 1]} : vector<5x1536xf32> to vector<5x128xf32>
    %272 = vector.extract_strided_slice %267 {offsets = [0, 1024], sizes = [5, 128], strides = [1, 1]} : vector<5x1536xf32> to vector<5x128xf32>
    %273 = arith.truncf %270 : vector<5x128xf32> to vector<5x128xbf16>
    %274 = arith.truncf %271 : vector<5x128xf32> to vector<5x128xbf16>
    %cst_133 = arith.constant dense<0.000000e+00> : vector<5x5xf32>
    %275 = tpu.matmul %273, %274, %cst_133 {dimension_numbers = #tpu.dot_dimension_numbers<[1], [1], [0], [0], [0, 0, 1, 0], [], []>} : vector<5x128xbf16>, vector<5x128xbf16>, vector<5x5xf32> -> vector<5x5xf32>
    %cst_134 = arith.constant dense<0xFF800000> : vector<5xf32>
    %276 = vector.multi_reduction <maximumf>, %275, %cst_134 [1] : vector<5x5xf32> to vector<5xf32>
    %277 = vector.shape_cast %276 : vector<5xf32> to vector<5x1xf32>
    %278 = vector.broadcast %277 : vector<5x1xf32> to vector<5x5xf32>
    %279 = arith.subf %275, %278 : vector<5x5xf32>
    %280 = math.exp %279 : vector<5x5xf32>
    %cst_135 = arith.constant dense<0.000000e+00> : vector<5xf32>
    %281 = vector.multi_reduction <add>, %280, %cst_135 [1] : vector<5x5xf32> to vector<5xf32>
    %282 = vector.shape_cast %281 : vector<5xf32> to vector<5x1xf32>
    %283 = tpu.reciprocal %282 {approx = true} : vector<5x1xf32> -> vector<5x1xf32>
    %284 = vector.broadcast %283 : vector<5x1xf32> to vector<5x5xf32>
    %285 = arith.mulf %280, %284 : vector<5x5xf32>
    %286 = arith.truncf %285 : vector<5x5xf32> to vector<5x5xbf16>
    %287 = arith.truncf %272 : vector<5x128xf32> to vector<5x128xbf16>
    %cst_136 = arith.constant dense<0.000000e+00> : vector<5x128xf32>
    %288 = tpu.matmul %286, %287, %cst_136 {dimension_numbers = #tpu.dot_dimension_numbers<[1], [0], [0], [1], [0, 0, 1, 1], [], []>} : vector<5x5xbf16>, vector<5x128xbf16>, vector<5x128xf32> -> vector<5x128xf32>
    %289 = vector.extract_strided_slice %267 {offsets = [0, 128], sizes = [5, 128], strides = [1, 1]} : vector<5x1536xf32> to vector<5x128xf32>
    %cst_137 = arith.constant 0.353553385 : f32
    %290 = vector.broadcast %cst_137 : f32 to vector<5x128xf32>
    %291 = arith.mulf %289, %290 : vector<5x128xf32>
    %292 = vector.extract_strided_slice %267 {offsets = [0, 640], sizes = [5, 128], strides = [1, 1]} : vector<5x1536xf32> to vector<5x128xf32>
    %293 = vector.extract_strided_slice %267 {offsets = [0, 1152], sizes = [5, 128], strides = [1, 1]} : vector<5x1536xf32> to vector<5x128xf32>
    %294 = arith.truncf %291 : vector<5x128xf32> to vector<5x128xbf16>
    %295 = arith.truncf %292 : vector<5x128xf32> to vector<5x128xbf16>
    %cst_138 = arith.constant dense<0.000000e+00> : vector<5x5xf32>
    %296 = tpu.matmul %294, %295, %cst_138 {dimension_numbers = #tpu.dot_dimension_numbers<[1], [1], [0], [0], [0, 0, 1, 0], [], []>} : vector<5x128xbf16>, vector<5x128xbf16>, vector<5x5xf32> -> vector<5x5xf32>
    %cst_139 = arith.constant dense<0xFF800000> : vector<5xf32>
    %297 = vector.multi_reduction <maximumf>, %296, %cst_139 [1] : vector<5x5xf32> to vector<5xf32>
    %298 = vector.shape_cast %297 : vector<5xf32> to vector<5x1xf32>
    %299 = vector.broadcast %298 : vector<5x1xf32> to vector<5x5xf32>
    %300 = arith.subf %296, %299 : vector<5x5xf32>
    %301 = math.exp %300 : vector<5x5xf32>
    %cst_140 = arith.constant dense<0.000000e+00> : vector<5xf32>
    %302 = vector.multi_reduction <add>, %301, %cst_140 [1] : vector<5x5xf32> to vector<5xf32>
    %303 = vector.shape_cast %302 : vector<5xf32> to vector<5x1xf32>
    %304 = tpu.reciprocal %303 {approx = true} : vector<5x1xf32> -> vector<5x1xf32>
    %305 = vector.broadcast %304 : vector<5x1xf32> to vector<5x5xf32>
    %306 = arith.mulf %301, %305 : vector<5x5xf32>
    %307 = arith.truncf %306 : vector<5x5xf32> to vector<5x5xbf16>
    %308 = arith.truncf %293 : vector<5x128xf32> to vector<5x128xbf16>
    %cst_141 = arith.constant dense<0.000000e+00> : vector<5x128xf32>
    %309 = tpu.matmul %307, %308, %cst_141 {dimension_numbers = #tpu.dot_dimension_numbers<[1], [0], [0], [1], [0, 0, 1, 1], [], []>} : vector<5x5xbf16>, vector<5x128xbf16>, vector<5x128xf32> -> vector<5x128xf32>
    %310 = vector.extract_strided_slice %267 {offsets = [0, 256], sizes = [5, 128], strides = [1, 1]} : vector<5x1536xf32> to vector<5x128xf32>
    %cst_142 = arith.constant 0.353553385 : f32
    %311 = vector.broadcast %cst_142 : f32 to vector<5x128xf32>
    %312 = arith.mulf %310, %311 : vector<5x128xf32>
    %313 = vector.extract_strided_slice %267 {offsets = [0, 768], sizes = [5, 128], strides = [1, 1]} : vector<5x1536xf32> to vector<5x128xf32>
    %314 = vector.extract_strided_slice %267 {offsets = [0, 1280], sizes = [5, 128], strides = [1, 1]} : vector<5x1536xf32> to vector<5x128xf32>
    %315 = arith.truncf %312 : vector<5x128xf32> to vector<5x128xbf16>
    %316 = arith.truncf %313 : vector<5x128xf32> to vector<5x128xbf16>
    %cst_143 = arith.constant dense<0.000000e+00> : vector<5x5xf32>
    %317 = tpu.matmul %315, %316, %cst_143 {dimension_numbers = #tpu.dot_dimension_numbers<[1], [1], [0], [0], [0, 0, 1, 0], [], []>} : vector<5x128xbf16>, vector<5x128xbf16>, vector<5x5xf32> -> vector<5x5xf32>
    %cst_144 = arith.constant dense<0xFF800000> : vector<5xf32>
    %318 = vector.multi_reduction <maximumf>, %317, %cst_144 [1] : vector<5x5xf32> to vector<5xf32>
    %319 = vector.shape_cast %318 : vector<5xf32> to vector<5x1xf32>
    %320 = vector.broadcast %319 : vector<5x1xf32> to vector<5x5xf32>
    %321 = arith.subf %317, %320 : vector<5x5xf32>
    %322 = math.exp %321 : vector<5x5xf32>
    %cst_145 = arith.constant dense<0.000000e+00> : vector<5xf32>
    %323 = vector.multi_reduction <add>, %322, %cst_145 [1] : vector<5x5xf32> to vector<5xf32>
    %324 = vector.shape_cast %323 : vector<5xf32> to vector<5x1xf32>
    %325 = tpu.reciprocal %324 {approx = true} : vector<5x1xf32> -> vector<5x1xf32>
    %326 = vector.broadcast %325 : vector<5x1xf32> to vector<5x5xf32>
    %327 = arith.mulf %322, %326 : vector<5x5xf32>
    %328 = arith.truncf %327 : vector<5x5xf32> to vector<5x5xbf16>
    %329 = arith.truncf %314 : vector<5x128xf32> to vector<5x128xbf16>
    %cst_146 = arith.constant dense<0.000000e+00> : vector<5x128xf32>
    %330 = tpu.matmul %328, %329, %cst_146 {dimension_numbers = #tpu.dot_dimension_numbers<[1], [0], [0], [1], [0, 0, 1, 1], [], []>} : vector<5x5xbf16>, vector<5x128xbf16>, vector<5x128xf32> -> vector<5x128xf32>
    %331 = vector.extract_strided_slice %267 {offsets = [0, 384], sizes = [5, 128], strides = [1, 1]} : vector<5x1536xf32> to vector<5x128xf32>
    %cst_147 = arith.constant 0.353553385 : f32
    %332 = vector.broadcast %cst_147 : f32 to vector<5x128xf32>
    %333 = arith.mulf %331, %332 : vector<5x128xf32>
    %334 = vector.extract_strided_slice %267 {offsets = [0, 896], sizes = [5, 128], strides = [1, 1]} : vector<5x1536xf32> to vector<5x128xf32>
    %335 = vector.extract_strided_slice %267 {offsets = [0, 1408], sizes = [5, 128], strides = [1, 1]} : vector<5x1536xf32> to vector<5x128xf32>
    %336 = arith.truncf %333 : vector<5x128xf32> to vector<5x128xbf16>
    %337 = arith.truncf %334 : vector<5x128xf32> to vector<5x128xbf16>
    %cst_148 = arith.constant dense<0.000000e+00> : vector<5x5xf32>
    %338 = tpu.matmul %336, %337, %cst_148 {dimension_numbers = #tpu.dot_dimension_numbers<[1], [1], [0], [0], [0, 0, 1, 0], [], []>} : vector<5x128xbf16>, vector<5x128xbf16>, vector<5x5xf32> -> vector<5x5xf32>
    %cst_149 = arith.constant dense<0xFF800000> : vector<5xf32>
    %339 = vector.multi_reduction <maximumf>, %338, %cst_149 [1] : vector<5x5xf32> to vector<5xf32>
    %340 = vector.shape_cast %339 : vector<5xf32> to vector<5x1xf32>
    %341 = vector.broadcast %340 : vector<5x1xf32> to vector<5x5xf32>
    %342 = arith.subf %338, %341 : vector<5x5xf32>
    %343 = math.exp %342 : vector<5x5xf32>
    %cst_150 = arith.constant dense<0.000000e+00> : vector<5xf32>
    %344 = vector.multi_reduction <add>, %343, %cst_150 [1] : vector<5x5xf32> to vector<5xf32>
    %345 = vector.shape_cast %344 : vector<5xf32> to vector<5x1xf32>
    %346 = tpu.reciprocal %345 {approx = true} : vector<5x1xf32> -> vector<5x1xf32>
    %347 = vector.broadcast %346 : vector<5x1xf32> to vector<5x5xf32>
    %348 = arith.mulf %343, %347 : vector<5x5xf32>
    %349 = arith.truncf %348 : vector<5x5xf32> to vector<5x5xbf16>
    %350 = arith.truncf %335 : vector<5x128xf32> to vector<5x128xbf16>
    %cst_151 = arith.constant dense<0.000000e+00> : vector<5x128xf32>
    %351 = tpu.matmul %349, %350, %cst_151 {dimension_numbers = #tpu.dot_dimension_numbers<[1], [0], [0], [1], [0, 0, 1, 1], [], []>} : vector<5x5xbf16>, vector<5x128xbf16>, vector<5x128xf32> -> vector<5x128xf32>
    %352 = tpu.concatenate %288, %309, %330, %351 in 1 : vector<5x128xf32>, vector<5x128xf32>, vector<5x128xf32>, vector<5x128xf32> -> vector<5x512xf32>
    %353 = arith.truncf %352 : vector<5x512xf32> to vector<5x512xbf16>
    %cst_152 = arith.constant dense<0.000000e+00> : vector<5x128xf32>
    %354 = tpu.matmul %353, %225, %cst_152 {dimension_numbers = #tpu.dot_dimension_numbers<[1], [0], [0], [1], [0, 0, 1, 1], [], []>} : vector<5x512xbf16>, vector<512x128xbf16>, vector<5x128xf32> -> vector<5x128xf32>
    %355 = arith.addf %215, %354 : vector<5x128xf32>
    %356 = vector.broadcast %227 : vector<1x128xf32> to vector<5x128xf32>
    %357 = arith.addf %355, %356 : vector<5x128xf32>
    %cst_153 = arith.constant dense<0.000000e+00> : vector<5xf32>
    %358 = vector.multi_reduction <add>, %357, %cst_153 [1] : vector<5x128xf32> to vector<5xf32>
    %359 = vector.shape_cast %358 : vector<5xf32> to vector<5x1xf32>
    %cst_154 = arith.constant 3.125000e-02 : f32
    %360 = vector.broadcast %cst_154 : f32 to vector<5x1xf32>
    %361 = arith.mulf %359, %360 : vector<5x1xf32>
    %362 = arith.mulf %357, %357 : vector<5x128xf32>
    %cst_155 = arith.constant dense<0.000000e+00> : vector<5xf32>
    %363 = vector.multi_reduction <add>, %362, %cst_155 [1] : vector<5x128xf32> to vector<5xf32>
    %364 = vector.shape_cast %363 : vector<5xf32> to vector<5x1xf32>
    %cst_156 = arith.constant 3.125000e-02 : f32
    %365 = vector.broadcast %cst_156 : f32 to vector<5x1xf32>
    %366 = arith.mulf %364, %365 : vector<5x1xf32>
    %367 = arith.mulf %361, %361 : vector<5x1xf32>
    %368 = arith.subf %366, %367 : vector<5x1xf32>
    %cst_157 = arith.constant 0.000000e+00 : f32
    %369 = vector.broadcast %cst_157 : f32 to vector<5x1xf32>
    %370 = arith.maximumf %368, %369 : vector<5x1xf32>
    %371 = vector.broadcast %361 : vector<5x1xf32> to vector<5x128xf32>
    %372 = arith.subf %357, %371 : vector<5x128xf32>
    %cst_158 = arith.constant 9.99999974E-6 : f32
    %373 = vector.broadcast %cst_158 : f32 to vector<5x1xf32>
    %374 = arith.addf %370, %373 : vector<5x1xf32>
    %375 = math.rsqrt %374 : vector<5x1xf32>
    %376 = vector.broadcast %375 : vector<5x1xf32> to vector<5x128xf32>
    %377 = arith.mulf %372, %376 : vector<5x128xf32>
    %378 = vector.broadcast %229 : vector<1x128xf32> to vector<5x128xf32>
    %379 = arith.mulf %377, %378 : vector<5x128xf32>
    %380 = vector.broadcast %231 : vector<1x128xf32> to vector<5x128xf32>
    %381 = arith.addf %379, %380 : vector<5x128xf32>
    %382 = arith.truncf %381 : vector<5x128xf32> to vector<5x128xbf16>
    %cst_159 = arith.constant dense<0.000000e+00> : vector<5x128xf32>
    %383 = tpu.matmul %382, %233, %cst_159 {dimension_numbers = #tpu.dot_dimension_numbers<[1], [0], [0], [1], [0, 0, 1, 1], [], []>} : vector<5x128xbf16>, vector<128x128xbf16>, vector<5x128xf32> -> vector<5x128xf32>
    %384 = vector.broadcast %235 : vector<1x128xf32> to vector<5x128xf32>
    %385 = arith.addf %383, %384 : vector<5x128xf32>
    %cst_160 = arith.constant 1.702000e+00 : f32
    %386 = vector.broadcast %cst_160 : f32 to vector<5x128xf32>
    %387 = arith.mulf %386, %385 : vector<5x128xf32>
    %388 = arith.negf %387 : vector<5x128xf32>
    %389 = math.exp %388 : vector<5x128xf32>
    %cst_161 = arith.constant 1.000000e+00 : f32
    %390 = vector.broadcast %cst_161 : f32 to vector<5x128xf32>
    %391 = arith.addf %390, %389 : vector<5x128xf32>
    %392 = arith.divf %390, %391 : vector<5x128xf32>
    %393 = arith.mulf %385, %392 : vector<5x128xf32>
    %394 = arith.truncf %393 : vector<5x128xf32> to vector<5x128xbf16>
    %cst_162 = arith.constant dense<0.000000e+00> : vector<5x128xf32>
    %395 = tpu.matmul %394, %237, %cst_162 {dimension_numbers = #tpu.dot_dimension_numbers<[1], [0], [0], [1], [0, 0, 1, 1], [], []>} : vector<5x128xbf16>, vector<128x128xbf16>, vector<5x128xf32> -> vector<5x128xf32>
    %396 = vector.broadcast %239 : vector<1x128xf32> to vector<5x128xf32>
    %397 = arith.addf %395, %396 : vector<5x128xf32>
    %398 = arith.addf %357, %397 : vector<5x128xf32>
    %399 = vector.extract_strided_slice %398 {offsets = [0, 0], sizes = [1, 128], strides = [1, 1]} : vector<5x128xf32> to vector<1x128xf32>
    %c0_163 = arith.constant 0 : index
    %c0_164 = arith.constant 0 : index
    %400 = vector.load %arg18[%c0_163, %c0_164] : memref<1x128xf32, #tpu.memory_space<vmem>>, vector<1x128xf32>
    %c0_165 = arith.constant 0 : index
    %c0_166 = arith.constant 0 : index
    %401 = vector.load %arg19[%c0_165, %c0_166] : memref<1x128xf32, #tpu.memory_space<vmem>>, vector<1x128xf32>
    %cst_167 = arith.constant dense<0.000000e+00> : vector<1xf32>
    %402 = vector.multi_reduction <add>, %399, %cst_167 [1] : vector<1x128xf32> to vector<1xf32>
    %403 = vector.shape_cast %402 : vector<1xf32> to vector<1x1xf32>
    %cst_168 = arith.constant 3.125000e-02 : f32
    %404 = vector.broadcast %cst_168 : f32 to vector<1x1xf32>
    %405 = arith.mulf %403, %404 : vector<1x1xf32>
    %406 = arith.mulf %399, %399 : vector<1x128xf32>
    %cst_169 = arith.constant dense<0.000000e+00> : vector<1xf32>
    %407 = vector.multi_reduction <add>, %406, %cst_169 [1] : vector<1x128xf32> to vector<1xf32>
    %408 = vector.shape_cast %407 : vector<1xf32> to vector<1x1xf32>
    %cst_170 = arith.constant 3.125000e-02 : f32
    %409 = vector.broadcast %cst_170 : f32 to vector<1x1xf32>
    %410 = arith.mulf %408, %409 : vector<1x1xf32>
    %411 = arith.mulf %405, %405 : vector<1x1xf32>
    %412 = arith.subf %410, %411 : vector<1x1xf32>
    %cst_171 = arith.constant 0.000000e+00 : f32
    %413 = vector.broadcast %cst_171 : f32 to vector<1x1xf32>
    %414 = arith.maximumf %412, %413 : vector<1x1xf32>
    %415 = vector.broadcast %405 : vector<1x1xf32> to vector<1x128xf32>
    %416 = arith.subf %399, %415 : vector<1x128xf32>
    %cst_172 = arith.constant 9.99999974E-6 : f32
    %417 = vector.broadcast %cst_172 : f32 to vector<1x1xf32>
    %418 = arith.addf %414, %417 : vector<1x1xf32>
    %419 = math.rsqrt %418 : vector<1x1xf32>
    %420 = vector.broadcast %419 : vector<1x1xf32> to vector<1x128xf32>
    %421 = arith.mulf %416, %420 : vector<1x128xf32>
    %422 = arith.mulf %421, %400 : vector<1x128xf32>
    %423 = arith.addf %422, %401 : vector<1x128xf32>
    %424 = arith.truncf %423 : vector<1x128xf32> to vector<1x128xbf16>
    %c0_173 = arith.constant 0 : index
    %c0_174 = arith.constant 0 : index
    %425 = vector.load %arg20[%c0_173, %c0_174] : memref<128x128xbf16, #tpu.memory_space<vmem>>, vector<128x128xbf16>
    %cst_175 = arith.constant dense<0.000000e+00> : vector<1x128xf32>
    %426 = tpu.matmul %424, %425, %cst_175 {dimension_numbers = #tpu.dot_dimension_numbers<[1], [0], [0], [1], [0, 0, 1, 1], [], []>} : vector<1x128xbf16>, vector<128x128xbf16>, vector<1x128xf32> -> vector<1x128xf32>
    %c0_176 = arith.constant 0 : index
    %c0_177 = arith.constant 0 : index
    %427 = vector.load %arg21[%c0_176, %c0_177] : memref<1x128xf32, #tpu.memory_space<vmem>>, vector<1x128xf32>
    %428 = arith.addf %426, %427 : vector<1x128xf32>
    %cst_178 = arith.constant 0.000000e+00 : f32
    %429 = vector.broadcast %cst_178 : f32 to vector<1x128xf32>
    %430 = arith.maximumf %428, %429 : vector<1x128xf32>
    %431 = arith.truncf %430 : vector<1x128xf32> to vector<1x128xbf16>
    %c0_179 = arith.constant 0 : index
    %c0_180 = arith.constant 0 : index
    %432 = vector.load %arg22[%c0_179, %c0_180] : memref<128x128xbf16, #tpu.memory_space<vmem>>, vector<128x128xbf16>
    %cst_181 = arith.constant dense<0.000000e+00> : vector<1x128xf32>
    %433 = tpu.matmul %431, %432, %cst_181 {dimension_numbers = #tpu.dot_dimension_numbers<[1], [0], [0], [1], [0, 0, 1, 1], [], []>} : vector<1x128xbf16>, vector<128x128xbf16>, vector<1x128xf32> -> vector<1x128xf32>
    %c0_182 = arith.constant 0 : index
    %c0_183 = arith.constant 0 : index
    %434 = vector.load %arg23[%c0_182, %c0_183] : memref<1x128xf32, #tpu.memory_space<vmem>>, vector<1x128xf32>
    %435 = arith.addf %433, %434 : vector<1x128xf32>
    %c0_184 = arith.constant 0 : index
    %c0_185 = arith.constant 0 : index
    %c0_186 = arith.constant 0 : index
    %436 = vector.load %arg24[%c0_184, %c0_185, %c0_186] : memref<1x1x128xf32, #tpu.memory_space<vmem>>, vector<1x1x128xf32>
    %437 = vector.shape_cast %436 : vector<1x1x128xf32> to vector<1x128xf32>
    %438 = vector.shape_cast %435 : vector<1x128xf32> to vector<1x1x128xf32>
    tpu.vector_store %arg24[%c0_184, %c0_185, %c0_186], %438 {strides = array<i32>} : memref<1x1x128xf32, #tpu.memory_space<vmem>>, vector<1x1x128xf32>,
    return
  }
  func.func @transform_0(%arg0: i32) -> (i32, i32, i32) {
    %c0_i32 = arith.constant 0 : i32
    %c0_i32_0 = arith.constant 0 : i32
    %c0_i32_1 = arith.constant 0 : i32
    return %arg0, %c0_i32, %c0_i32_0 : i32, i32, i32
  }
  func.func @transform_1(%arg0: i32) -> (i32, i32) {
    %c0_i32 = arith.constant 0 : i32
    %c0_i32_0 = arith.constant 0 : i32
    %c0_i32_1 = arith.constant 0 : i32
    return %c0_i32, %c0_i32_0 : i32, i32
  }
  func.func @transform_2(%arg0: i32) -> (i32, i32) {
    %c0_i32 = arith.constant 0 : i32
    %c0_i32_0 = arith.constant 0 : i32
    %c0_i32_1 = arith.constant 0 : i32
    return %c0_i32, %c0_i32_0 : i32, i32
  }
  func.func @transform_3(%arg0: i32) -> (i32, i32) {
    %c0_i32 = arith.constant 0 : i32
    %c0_i32_0 = arith.constant 0 : i32
    %c0_i32_1 = arith.constant 0 : i32
    return %c0_i32, %c0_i32_0 : i32, i32
  }
  func.func @transform_4(%arg0: i32) -> (i32, i32) {
    %c0_i32 = arith.constant 0 : i32
    %c0_i32_0 = arith.constant 0 : i32
    %c0_i32_1 = arith.constant 0 : i32
    return %c0_i32, %c0_i32_0 : i32, i32
  }
  func.func @transform_5(%arg0: i32) -> (i32, i32, i32) {
    %c0_i32 = arith.constant 0 : i32
    %c0_i32_0 = arith.constant 0 : i32
    %c0_i32_1 = arith.constant 0 : i32
    %c0_i32_2 = arith.constant 0 : i32
    return %c0_i32, %c0_i32_0, %c0_i32_1 : i32, i32, i32
  }
  func.func @transform_6(%arg0: i32) -> (i32, i32, i32) {
    %c0_i32 = arith.constant 0 : i32
    %c0_i32_0 = arith.constant 0 : i32
    %c0_i32_1 = arith.constant 0 : i32
    %c0_i32_2 = arith.constant 0 : i32
    return %c0_i32, %c0_i32_0, %c0_i32_1 : i32, i32, i32
  }
  func.func @transform_7(%arg0: i32) -> (i32, i32, i32) {
    %c0_i32 = arith.constant 0 : i32
    %c0_i32_0 = arith.constant 0 : i32
    %c0_i32_1 = arith.constant 0 : i32
    %c0_i32_2 = arith.constant 0 : i32
    return %c0_i32, %c0_i32_0, %c0_i32_1 : i32, i32, i32
  }
  func.func @transform_8(%arg0: i32) -> (i32, i32, i32) {
    %c0_i32 = arith.constant 0 : i32
    %c0_i32_0 = arith.constant 0 : i32
    %c0_i32_1 = arith.constant 0 : i32
    %c0_i32_2 = arith.constant 0 : i32
    return %c0_i32, %c0_i32_0, %c0_i32_1 : i32, i32, i32
  }
  func.func @transform_9(%arg0: i32) -> (i32, i32, i32) {
    %c0_i32 = arith.constant 0 : i32
    %c0_i32_0 = arith.constant 0 : i32
    %c0_i32_1 = arith.constant 0 : i32
    %c0_i32_2 = arith.constant 0 : i32
    return %c0_i32, %c0_i32_0, %c0_i32_1 : i32, i32, i32
  }
  func.func @transform_10(%arg0: i32) -> (i32, i32, i32) {
    %c0_i32 = arith.constant 0 : i32
    %c0_i32_0 = arith.constant 0 : i32
    %c0_i32_1 = arith.constant 0 : i32
    %c0_i32_2 = arith.constant 0 : i32
    return %c0_i32, %c0_i32_0, %c0_i32_1 : i32, i32, i32
  }
  func.func @transform_11(%arg0: i32) -> (i32, i32, i32) {
    %c0_i32 = arith.constant 0 : i32
    %c0_i32_0 = arith.constant 0 : i32
    %c0_i32_1 = arith.constant 0 : i32
    %c0_i32_2 = arith.constant 0 : i32
    return %c0_i32, %c0_i32_0, %c0_i32_1 : i32, i32, i32
  }
  func.func @transform_12(%arg0: i32) -> (i32, i32, i32) {
    %c0_i32 = arith.constant 0 : i32
    %c0_i32_0 = arith.constant 0 : i32
    %c0_i32_1 = arith.constant 0 : i32
    %c0_i32_2 = arith.constant 0 : i32
    return %c0_i32, %c0_i32_0, %c0_i32_1 : i32, i32, i32
  }
  func.func @transform_13(%arg0: i32) -> (i32, i32, i32) {
    %c0_i32 = arith.constant 0 : i32
    %c0_i32_0 = arith.constant 0 : i32
    %c0_i32_1 = arith.constant 0 : i32
    %c0_i32_2 = arith.constant 0 : i32
    return %c0_i32, %c0_i32_0, %c0_i32_1 : i32, i32, i32
  }
  func.func @transform_14(%arg0: i32) -> (i32, i32, i32) {
    %c0_i32 = arith.constant 0 : i32
    %c0_i32_0 = arith.constant 0 : i32
    %c0_i32_1 = arith.constant 0 : i32
    %c0_i32_2 = arith.constant 0 : i32
    return %c0_i32, %c0_i32_0, %c0_i32_1 : i32, i32, i32
  }
  func.func @transform_15(%arg0: i32) -> (i32, i32, i32) {
    %c0_i32 = arith.constant 0 : i32
    %c0_i32_0 = arith.constant 0 : i32
    %c0_i32_1 = arith.constant 0 : i32
    %c0_i32_2 = arith.constant 0 : i32
    return %c0_i32, %c0_i32_0, %c0_i32_1 : i32, i32, i32
  }
  func.func @transform_16(%arg0: i32) -> (i32, i32, i32) {
    %c0_i32 = arith.constant 0 : i32
    %c0_i32_0 = arith.constant 0 : i32
    %c0_i32_1 = arith.constant 0 : i32
    %c0_i32_2 = arith.constant 0 : i32
    return %c0_i32, %c0_i32_0, %c0_i32_1 : i32, i32, i32
  }
  func.func @transform_17(%arg0: i32) -> (i32, i32) {
    %c0_i32 = arith.constant 0 : i32
    %c0_i32_0 = arith.constant 0 : i32
    %c0_i32_1 = arith.constant 0 : i32
    return %c0_i32, %c0_i32_0 : i32, i32
  }
  func.func @transform_18(%arg0: i32) -> (i32, i32) {
    %c0_i32 = arith.constant 0 : i32
    %c0_i32_0 = arith.constant 0 : i32
    %c0_i32_1 = arith.constant 0 : i32
    return %c0_i32, %c0_i32_0 : i32, i32
  }
  func.func @transform_19(%arg0: i32) -> (i32, i32) {
    %c0_i32 = arith.constant 0 : i32
    %c0_i32_0 = arith.constant 0 : i32
    %c0_i32_1 = arith.constant 0 : i32
    return %c0_i32, %c0_i32_0 : i32, i32
  }
  func.func @transform_20(%arg0: i32) -> (i32, i32) {
    %c0_i32 = arith.constant 0 : i32
    %c0_i32_0 = arith.constant 0 : i32
    %c0_i32_1 = arith.constant 0 : i32
    return %c0_i32, %c0_i32_0 : i32, i32
  }
  func.func @transform_21(%arg0: i32) -> (i32, i32) {
    %c0_i32 = arith.constant 0 : i32
    %c0_i32_0 = arith.constant 0 : i32
    %c0_i32_1 = arith.constant 0 : i32
    return %c0_i32, %c0_i32_0 : i32, i32
  }
  func.func @transform_22(%arg0: i32) -> (i32, i32) {
    %c0_i32 = arith.constant 0 : i32
    %c0_i32_0 = arith.constant 0 : i32
    %c0_i32_1 = arith.constant 0 : i32
    return %c0_i32, %c0_i32_0 : i32, i32
  }
  func.func @transform_23(%arg0: i32) -> (i32, i32, i32) {
    %c0_i32 = arith.constant 0 : i32
    %c0_i32_0 = arith.constant 0 : i32
    %c0_i32_1 = arith.constant 0 : i32
    return %arg0, %c0_i32, %c0_i32_0 : i32, i32, i32
  }
}

</mosaic_0001>

<llo_original>
// kernel: clip_fashion_mnist_forward.1
$region0: #{clip_fashion_mnist_forward.1}
  #allocation0 [shape = 'u32[]', space=smem, size = 0x4, offset = 0x4, fixed_abs, tag = 'smem constant byte address 0x4 - core index']
  #allocation1 [shape = 'u32[72,128]{1,0:T(1,128)}', space=vmem, size = 0x9000, scoped, tag = 'internal scratch']
  %s0 = inlined_call_operand.vmem [shape: f32[2,5,192], index: 0, kind: input, shape index: {}]
  %s1 = inlined_call_operand.vmem [shape: bf16[192,128], index: 1, kind: input, shape index: {}]
  %s2 = inlined_call_operand.vmem [shape: f32[5,128], index: 2, kind: input, shape index: {}]
  %s3 = inlined_call_operand.vmem [shape: f32[1,128], index: 3, kind: input, shape index: {}]
  %s4 = inlined_call_operand.hbm [shape: f32[1,128], index: 4, kind: input, shape index: {}]
  %s5 = inlined_call_operand.vmem [shape: f32[2,1,128], index: 5, kind: input, shape index: {}]
  %s6 = inlined_call_operand.vmem [shape: f32[2,1,128], index: 6, kind: input, shape index: {}]
  %s7 = inlined_call_operand.hbm [shape: bf16[2,128,1536], index: 7, kind: input, shape index: {}]
  %s8 = inlined_call_operand.hbm [shape: f32[2,1,1536], index: 8, kind: input, shape index: {}]
  %s9 = inlined_call_operand.vmem [shape: bf16[2,512,128], index: 9, kind: input, shape index: {}]
  %s10 = inlined_call_operand.vmem [shape: f32[2,1,128], index: 10, kind: input, shape index: {}]
  %s11 = inlined_call_operand.hbm [shape: f32[2,1,128], index: 11, kind: input, shape index: {}]
  %s12 = inlined_call_operand.hbm [shape: f32[2,1,128], index: 12, kind: input, shape index: {}]
  %s13 = inlined_call_operand.vmem [shape: bf16[2,128,128], index: 13, kind: input, shape index: {}]
  %s14 = inlined_call_operand.hbm [shape: f32[2,1,128], index: 14, kind: input, shape index: {}]
  %s15 = inlined_call_operand.vmem [shape: bf16[2,128,128], index: 15, kind: input, shape index: {}]
  %s16 = inlined_call_operand.hbm [shape: f32[2,1,128], index: 16, kind: input, shape index: {}]
  %s17 = inlined_call_operand.hbm [shape: f32[1,128], index: 17, kind: input, shape index: {}]
  %s18 = inlined_call_operand.hbm [shape: f32[1,128], index: 18, kind: input, shape index: {}]
  %s19 = inlined_call_operand.vmem [shape: bf16[128,128], index: 19, kind: input, shape index: {}]
  %s20 = inlined_call_operand.hbm [shape: f32[1,128], index: 20, kind: input, shape index: {}]
  %s21 = inlined_call_operand.hbm [shape: bf16[128,128], index: 21, kind: input, shape index: {}]
  %s22 = inlined_call_operand.hbm [shape: f32[1,128], index: 22, kind: input, shape index: {}]
  %s23 = inlined_call_operand.hbm [shape: f32[2,1,128], index: 23, kind: output, shape index: {}]
  %s24 = sld [smem:[#allocation0]]
  $region173: #{clip_fashion_mnist_forward.1} parent=0
    _
  %s26 = ssub.s32 1, %s24
  %s27 = scalar_select 0, %s26, %s24
  $region1: #{clip_fashion_mnist_forward.1} parent=0
    #allocation2 [shape = 'u8[512]{0}', space=vmem, size = 0x400, scoped, tag = 'input window, operand 4, single buffered']
    #allocation3 [shape = 's32[2]{0}', space=sflag, size = 0x8, scoped, tag = 'scoped memory for clip_fashion_mnist_forward.1']
    #allocation4 [shape = 's32[2]{0}', space=sflag, size = 0x8, scoped, tag = 'scoped memory for clip_fashion_mnist_forward.1']
    #allocation5 [shape = 'u8[786432]{0}', space=vmem, size = 0xc0000, scoped, tag = 'input window, operand 7, single buffered']
    #allocation6 [shape = 's32[1]{0}', space=sflag, size = 0x4, scoped, tag = 'scoped memory for clip_fashion_mnist_forward.1']
    #allocation7 [shape = 'u8[12288]{0}', space=vmem, size = 0x3000, scoped, tag = 'input window, operand 8, single buffered']
    #allocation8 [shape = 'u8[1024]{0}', space=vmem, size = 0x400, scoped, tag = 'input window, operand 11, single buffered']
    #allocation9 [shape = 's32[1]{0}', space=sflag, size = 0x4, scoped, tag = 'scoped memory for clip_fashion_mnist_forward.1']
    #allocation10 [shape = 'u8[1024]{0}', space=vmem, size = 0x400, scoped, tag = 'input window, operand 12, single buffered']
    #allocation11 [shape = 'u8[1024]{0}', space=vmem, size = 0x400, scoped, tag = 'input window, operand 14, single buffered']
    #allocation12 [shape = 's32[1]{0}', space=sflag, size = 0x4, scoped, tag = 'scoped memory for clip_fashion_mnist_forward.1']
    #allocation13 [shape = 'u8[1024]{0}', space=vmem, size = 0x400, scoped, tag = 'input window, operand 16, single buffered']
    #allocation14 [shape = 'u8[512]{0}', space=vmem, size = 0x400, scoped, tag = 'input window, operand 17, single buffered']
    #allocation15 [shape = 's32[1]{0}', space=sflag, size = 0x4, scoped, tag = 'scoped memory for clip_fashion_mnist_forward.1']
    #allocation16 [shape = 'u8[512]{0}', space=vmem, size = 0x400, scoped, tag = 'input window, operand 18, single buffered']
    #allocation17 [shape = 'u8[512]{0}', space=vmem, size = 0x400, scoped, tag = 'input window, operand 20, single buffered']
    #allocation18 [shape = 's32[1]{0}', space=sflag, size = 0x4, scoped, tag = 'scoped memory for clip_fashion_mnist_forward.1']
    #allocation19 [shape = 'u8[32768]{0}', space=vmem, size = 0x8000, scoped, tag = 'input window, operand 21, single buffered']
    #allocation20 [shape = 'u8[512]{0}', space=vmem, size = 0x400, scoped, tag = 'input window, operand 22, single buffered']
    #allocation21 [shape = 's32[1]{0}', space=sflag, size = 0x4, scoped, tag = 'scoped memory for clip_fashion_mnist_forward.1']
    #allocation22 [shape = 'u8[1024]{0}', space=vmem, size = 0x400, scoped, tag = 'output window, operand 0']
    %28 = vsyncpa [#allocation3], 0
    %29 = vsyncpa [#allocation6], 0
    %30 = vsyncpa [#allocation9], 0
    %31 = vsyncpa [#allocation12], 0
    %32 = vsyncpa [#allocation15], 0
    %33 = vsyncpa [#allocation18], 0
    %34 = vsyncpa [#allocation21], 0
    %35 = vsyncpa [#allocation4], 0
    %s36 = scalar_lea.sflag [#allocation4], 1
    %37 = vsyncpa %s36, 0
    loop: start=0, step=1, limit=4
    $region2: #{clip_fashion_mnist_forward.1} parent=1 // loop_pre_header
      _
    $region3: #{clip_fashion_mnist_forward.1} parent=1 // loop_header
      %s39 = sphi 0, %s43
      %p40 = scmp.ge.s32.totalorder %s39, 4
      %s49 = sphi 0, %s51
      %s52 = sphi 0, %s49
      %s53 = sphi 0, %s52
      %s69 = sphi 0, %s53
      %s73 = sphi 0, %s73
      %s75 = sphi 0, %s73
      %s76 = sphi 0, %s75
      %s90 = sphi 0, %s76
      %s94 = sphi 0, %s94
      %s96 = sphi 0, %s94
      %s97 = sphi 0, %s96
      %s111 = sphi 0, %s97
      %s115 = sphi 0, %s115
      %s117 = sphi 0, %s115
      %s118 = sphi 0, %s117
      %s132 = sphi 0, %s118
      %s136 = sphi 0, %s136
      %s138 = sphi 0, %s136
      %s139 = sphi 0, %s138
      %s153 = sphi 0, %s139
      %s157 = sphi 0, %s157
      %s159 = sphi 0, %s157
      %s160 = sphi 0, %s159
      %s174 = sphi 0, %s160
      %s178 = sphi 0, %s178
      %s180 = sphi 0, %s178
      %s181 = sphi 0, %s180
      %s195 = sphi 0, %s181
      %s199 = sphi 0, %s199
      %s201 = sphi 0, %s199
      %s202 = sphi 0, %s201
      %s216 = sphi 0, %s202
      %s220 = sphi 0, %s220
      %s222 = sphi 0, %s220
      %s223 = sphi 0, %s222
      %s237 = sphi 0, %s223
      %s241 = sphi 0, %s241
      %s243 = sphi 0, %s241
      %s244 = sphi 0, %s243
      %s258 = sphi 0, %s244
      %s262 = sphi 0, %s262
      %s264 = sphi 0, %s262
      %s265 = sphi 0, %s264
      %s279 = sphi 0, %s265
      %s283 = sphi 0, %s283
      %s285 = sphi 0, %s283
      %s286 = sphi 0, %s285
      %s300 = sphi 0, %s286
      %s304 = sphi 0, %s304
      %s306 = sphi 0, %s304
      %s307 = sphi 0, %s306
      %s321 = sphi 0, %s307
      %s325 = sphi 0, %s325
      %s327 = sphi 0, %s325
      %s328 = sphi 0, %s327
      %s342 = sphi 0, %s328
      %s346 = sphi 0, %s346
      %s348 = sphi 0, %s346
      %s349 = sphi 0, %s348
      %s363 = sphi 0, %s349
      %s367 = sphi 0, %s367
      %s369 = sphi 0, %s367
      %s370 = sphi 0, %s369
      %s384 = sphi 0, %s370
      %s388 = sphi 0, %s388
      %s390 = sphi 0, %s388
      %s391 = sphi 0, %s390
      %s405 = sphi 0, %s391
      %s409 = sphi 0, %s409
      %s411 = sphi 0, %s409
      %s412 = sphi 0, %s411
      %s426 = sphi 0, %s412
      %s430 = sphi 0, %s430
      %s432 = sphi 0, %s430
      %s433 = sphi 0, %s432
      %s447 = sphi 0, %s433
      %s451 = sphi 0, %s451
      %s453 = sphi 0, %s451
      %s454 = sphi 0, %s453
      %s468 = sphi 0, %s454
      %s472 = sphi 0, %s472
      %s474 = sphi 0, %s472
      %s475 = sphi 0, %s474
      %s489 = sphi 0, %s475
      %s493 = sphi 0, %s493
      %s495 = sphi 0, %s493
      %s496 = sphi 0, %s495
      %s510 = sphi 0, %s496
      %s514 = sphi 0, %s514
      %s516 = sphi 0, %s514
      %s517 = sphi 0, %s516
      %s531 = sphi 0, %s517
      %s537 = sphi 0, %s539
      %s540 = sphi 0, %s537
      %s541 = sphi 0, %s540
      %s557 = sphi 0, %s541
    $region4: #{clip_fashion_mnist_forward.1} parent=1 // loop_header_branch
      %42 = sbr.rel (%p40) target = $region8
    $region5: #{clip_fashion_mnist_forward.1} parent=1 // loop_body
      %s44 = ssub.s32 %s39, 1
      %s45 = ssub.s32 %s39, 2
      %s46 = sadd.s32 %s39, 1
      %s47 = ssub.s32 %s39, %s46
      %p48 = scmp.eq.s32.totalorder %s47, 0
      %s50 = sadd.s32 %s49, 1
      %s51 = scalar_select %p48, %s49, %s50
      %p54 = pneg %p48
      %p55 = scmp.eq.s32.totalorder %s39, 1
      %p56 = por %p54, %p55
      %p57 = scmp.ne.s32.totalorder %s49, %s52
      %p58 = scmp.eq.s32.totalorder %s39, 0
      %p59 = por %p57, %p58
      %p60 = scmp.ne.s32.totalorder %s49, %s52
      %p61 = scmp.eq.s32.totalorder %s44, 1
      %p62 = por %p60, %p61
      %p63 = scmp.ne.s32.totalorder %s52, %s53
      %p64 = scmp.eq.s32.totalorder %s44, 0
      %p65 = por %p63, %p64
      %p66 = scmp.ne.s32.totalorder %s52, %s53
      %p67 = scmp.eq.s32.totalorder %s45, 1
      %p68 = por %p66, %p67
      %p70 = scmp.ne.s32.totalorder %s53, %s69
      %p71 = scmp.eq.s32.totalorder %s45, 0
      %p72 = por %p70, %p71
      %s74 = sadd.s32 %s73, 1
      %p77 = scmp.eq.s32.totalorder %s39, 1
      %p78 = scmp.ne.s32.totalorder %s73, %s75
      %p79 = scmp.eq.s32.totalorder %s39, 0
      %p80 = por %p78, %p79
      %p81 = scmp.ne.s32.totalorder %s73, %s75
      %p82 = scmp.eq.s32.totalorder %s44, 1
      %p83 = por %p81, %p82
      %p84 = scmp.ne.s32.totalorder %s75, %s76
      %p85 = scmp.eq.s32.totalorder %s44, 0
      %p86 = por %p84, %p85
      %p87 = scmp.ne.s32.totalorder %s75, %s76
      %p88 = scmp.eq.s32.totalorder %s45, 1
      %p89 = por %p87, %p88
      %p91 = scmp.ne.s32.totalorder %s76, %s90
      %p92 = scmp.eq.s32.totalorder %s45, 0
      %p93 = por %p91, %p92
      %s95 = sadd.s32 %s94, 1
      %p98 = scmp.eq.s32.totalorder %s39, 1
      %p99 = scmp.ne.s32.totalorder %s94, %s96
      %p100 = scmp.eq.s32.totalorder %s39, 0
      %p101 = por %p99, %p100
      %p102 = scmp.ne.s32.totalorder %s94, %s96
      %p103 = scmp.eq.s32.totalorder %s44, 1
      %p104 = por %p102, %p103
      %p105 = scmp.ne.s32.totalorder %s96, %s97
      %p106 = scmp.eq.s32.totalorder %s44, 0
      %p107 = por %p105, %p106
      %p108 = scmp.ne.s32.totalorder %s96, %s97
      %p109 = scmp.eq.s32.totalorder %s45, 1
      %p110 = por %p108, %p109
      %p112 = scmp.ne.s32.totalorder %s97, %s111
      %p113 = scmp.eq.s32.totalorder %s45, 0
      %p114 = por %p112, %p113
      %s116 = sadd.s32 %s115, 1
      %p119 = scmp.eq.s32.totalorder %s39, 1
      %p120 = scmp.ne.s32.totalorder %s115, %s117
      %p121 = scmp.eq.s32.totalorder %s39, 0
      %p122 = por %p120, %p121
      %p123 = scmp.ne.s32.totalorder %s115, %s117
      %p124 = scmp.eq.s32.totalorder %s44, 1
      %p125 = por %p123, %p124
      %p126 = scmp.ne.s32.totalorder %s117, %s118
      %p127 = scmp.eq.s32.totalorder %s44, 0
      %p128 = por %p126, %p127
      %p129 = scmp.ne.s32.totalorder %s117, %s118
      %p130 = scmp.eq.s32.totalorder %s45, 1
      %p131 = por %p129, %p130
      %p133 = scmp.ne.s32.totalorder %s118, %s132
      %p134 = scmp.eq.s32.totalorder %s45, 0
      %p135 = por %p133, %p134
      %s137 = sadd.s32 %s136, 1
      %p140 = scmp.eq.s32.totalorder %s39, 1
      %p141 = scmp.ne.s32.totalorder %s136, %s138
      %p142 = scmp.eq.s32.totalorder %s39, 0
      %p143 = por %p141, %p142
      %p144 = scmp.ne.s32.totalorder %s136, %s138
      %p145 = scmp.eq.s32.totalorder %s44, 1
      %p146 = por %p144, %p145
      %p147 = scmp.ne.s32.totalorder %s138, %s139
      %p148 = scmp.eq.s32.totalorder %s44, 0
      %p149 = por %p147, %p148
      %p150 = scmp.ne.s32.totalorder %s138, %s139
      %p151 = scmp.eq.s32.totalorder %s45, 1
      %p152 = por %p150, %p151
      %p154 = scmp.ne.s32.totalorder %s139, %s153
      %p155 = scmp.eq.s32.totalorder %s45, 0
      %p156 = por %p154, %p155
      %s158 = sadd.s32 %s157, 1
      %p161 = scmp.eq.s32.totalorder %s39, 1
      %p162 = scmp.ne.s32.totalorder %s157, %s159
      %p163 = scmp.eq.s32.totalorder %s39, 0
      %p164 = por %p162, %p163
      %p165 = scmp.ne.s32.totalorder %s157, %s159
      %p166 = scmp.eq.s32.totalorder %s44, 1
      %p167 = por %p165, %p166
      %p168 = scmp.ne.s32.totalorder %s159, %s160
      %p169 = scmp.eq.s32.totalorder %s44, 0
      %p170 = por %p168, %p169
      %p171 = scmp.ne.s32.totalorder %s159, %s160
      %p172 = scmp.eq.s32.totalorder %s45, 1
      %p173 = por %p171, %p172
      %p175 = scmp.ne.s32.totalorder %s160, %s174
      %p176 = scmp.eq.s32.totalorder %s45, 0
      %p177 = por %p175, %p176
      %s179 = sadd.s32 %s178, 1
      %p182 = scmp.eq.s32.totalorder %s39, 1
      %p183 = scmp.ne.s32.totalorder %s178, %s180
      %p184 = scmp.eq.s32.totalorder %s39, 0
      %p185 = por %p183, %p184
      %p186 = scmp.ne.s32.totalorder %s178, %s180
      %p187 = scmp.eq.s32.totalorder %s44, 1
      %p188 = por %p186, %p187
      %p189 = scmp.ne.s32.totalorder %s180, %s181
      %p190 = scmp.eq.s32.totalorder %s44, 0
      %p191 = por %p189, %p190
      %p192 = scmp.ne.s32.totalorder %s180, %s181
      %p193 = scmp.eq.s32.totalorder %s45, 1
      %p194 = por %p192, %p193
      %p196 = scmp.ne.s32.totalorder %s181, %s195
      %p197 = scmp.eq.s32.totalorder %s45, 0
      %p198 = por %p196, %p197
      %s200 = sadd.s32 %s199, 1
      %p203 = scmp.eq.s32.totalorder %s39, 1
      %p204 = scmp.ne.s32.totalorder %s199, %s201
      %p205 = scmp.eq.s32.totalorder %s39, 0
      %p206 = por %p204, %p205
      %p207 = scmp.ne.s32.totalorder %s199, %s201
      %p208 = scmp.eq.s32.totalorder %s44, 1
      %p209 = por %p207, %p208
      %p210 = scmp.ne.s32.totalorder %s201, %s202
      %p211 = scmp.eq.s32.totalorder %s44, 0
      %p212 = por %p210, %p211
      %p213 = scmp.ne.s32.totalorder %s201, %s202
      %p214 = scmp.eq.s32.totalorder %s45, 1
      %p215 = por %p213, %p214
      %p217 = scmp.ne.s32.totalorder %s202, %s216
      %p218 = scmp.eq.s32.totalorder %s45, 0
      %p219 = por %p217, %p218
      %s221 = sadd.s32 %s220, 1
      %p224 = scmp.eq.s32.totalorder %s39, 1
      %p225 = scmp.ne.s32.totalorder %s220, %s222
      %p226 = scmp.eq.s32.totalorder %s39, 0
      %p227 = por %p225, %p226
      %p228 = scmp.ne.s32.totalorder %s220, %s222
      %p229 = scmp.eq.s32.totalorder %s44, 1
      %p230 = por %p228, %p229
      %p231 = scmp.ne.s32.totalorder %s222, %s223
      %p232 = scmp.eq.s32.totalorder %s44, 0
      %p233 = por %p231, %p232
      %p234 = scmp.ne.s32.totalorder %s222, %s223
      %p235 = scmp.eq.s32.totalorder %s45, 1
      %p236 = por %p234, %p235
      %p238 = scmp.ne.s32.totalorder %s223, %s237
      %p239 = scmp.eq.s32.totalorder %s45, 0
      %p240 = por %p238, %p239
      %s242 = sadd.s32 %s241, 1
      %p245 = scmp.eq.s32.totalorder %s39, 1
      %p246 = scmp.ne.s32.totalorder %s241, %s243
      %p247 = scmp.eq.s32.totalorder %s39, 0
      %p248 = por %p246, %p247
      %p249 = scmp.ne.s32.totalorder %s241, %s243
      %p250 = scmp.eq.s32.totalorder %s44, 1
      %p251 = por %p249, %p250
      %p252 = scmp.ne.s32.totalorder %s243, %s244
      %p253 = scmp.eq.s32.totalorder %s44, 0
      %p254 = por %p252, %p253
      %p255 = scmp.ne.s32.totalorder %s243, %s244
      %p256 = scmp.eq.s32.totalorder %s45, 1
      %p257 = por %p255, %p256
      %p259 = scmp.ne.s32.totalorder %s244, %s258
      %p260 = scmp.eq.s32.totalorder %s45, 0
      %p261 = por %p259, %p260
      %s263 = sadd.s32 %s262, 1
      %p266 = scmp.eq.s32.totalorder %s39, 1
      %p267 = scmp.ne.s32.totalorder %s262, %s264
      %p268 = scmp.eq.s32.totalorder %s39, 0
      %p269 = por %p267, %p268
      %p270 = scmp.ne.s32.totalorder %s262, %s264
      %p271 = scmp.eq.s32.totalorder %s44, 1
      %p272 = por %p270, %p271
      %p273 = scmp.ne.s32.totalorder %s264, %s265
      %p274 = scmp.eq.s32.totalorder %s44, 0
      %p275 = por %p273, %p274
      %p276 = scmp.ne.s32.totalorder %s264, %s265
      %p277 = scmp.eq.s32.totalorder %s45, 1
      %p278 = por %p276, %p277
      %p280 = scmp.ne.s32.totalorder %s265, %s279
      %p281 = scmp.eq.s32.totalorder %s45, 0
      %p282 = por %p280, %p281
      %s284 = sadd.s32 %s283, 1
      %p287 = scmp.eq.s32.totalorder %s39, 1
      %p288 = scmp.ne.s32.totalorder %s283, %s285
      %p289 = scmp.eq.s32.totalorder %s39, 0
      %p290 = por %p288, %p289
      %p291 = scmp.ne.s32.totalorder %s283, %s285
      %p292 = scmp.eq.s32.totalorder %s44, 1
      %p293 = por %p291, %p292
      %p294 = scmp.ne.s32.totalorder %s285, %s286
      %p295 = scmp.eq.s32.totalorder %s44, 0
      %p296 = por %p294, %p295
      %p297 = scmp.ne.s32.totalorder %s285, %s286
      %p298 = scmp.eq.s32.totalorder %s45, 1
      %p299 = por %p297, %p298
      %p301 = scmp.ne.s32.totalorder %s286, %s300
      %p302 = scmp.eq.s32.totalorder %s45, 0
      %p303 = por %p301, %p302
      %s305 = sadd.s32 %s304, 1
      %p308 = scmp.eq.s32.totalorder %s39, 1
      %p309 = scmp.ne.s32.totalorder %s304, %s306
      %p310 = scmp.eq.s32.totalorder %s39, 0
      %p311 = por %p309, %p310
      %p312 = scmp.ne.s32.totalorder %s304, %s306
      %p313 = scmp.eq.s32.totalorder %s44, 1
      %p314 = por %p312, %p313
      %p315 = scmp.ne.s32.totalorder %s306, %s307
      %p316 = scmp.eq.s32.totalorder %s44, 0
      %p317 = por %p315, %p316
      %p318 = scmp.ne.s32.totalorder %s306, %s307
      %p319 = scmp.eq.s32.totalorder %s45, 1
      %p320 = por %p318, %p319
      %p322 = scmp.ne.s32.totalorder %s307, %s321
      %p323 = scmp.eq.s32.totalorder %s45, 0
      %p324 = por %p322, %p323
      %s326 = sadd.s32 %s325, 1
      %p329 = scmp.eq.s32.totalorder %s39, 1
      %p330 = scmp.ne.s32.totalorder %s325, %s327
      %p331 = scmp.eq.s32.totalorder %s39, 0
      %p332 = por %p330, %p331
      %p333 = scmp.ne.s32.totalorder %s325, %s327
      %p334 = scmp.eq.s32.totalorder %s44, 1
      %p335 = por %p333, %p334
      %p336 = scmp.ne.s32.totalorder %s327, %s328
      %p337 = scmp.eq.s32.totalorder %s44, 0
      %p338 = por %p336, %p337
      %p339 = scmp.ne.s32.totalorder %s327, %s328
      %p340 = scmp.eq.s32.totalorder %s45, 1
      %p341 = por %p339, %p340
      %p343 = scmp.ne.s32.totalorder %s328, %s342
      %p344 = scmp.eq.s32.totalorder %s45, 0
      %p345 = por %p343, %p344
      %s347 = sadd.s32 %s346, 1
      %p350 = scmp.eq.s32.totalorder %s39, 1
      %p351 = scmp.ne.s32.totalorder %s346, %s348
      %p352 = scmp.eq.s32.totalorder %s39, 0
      %p353 = por %p351, %p352
      %p354 = scmp.ne.s32.totalorder %s346, %s348
      %p355 = scmp.eq.s32.totalorder %s44, 1
      %p356 = por %p354, %p355
      %p357 = scmp.ne.s32.totalorder %s348, %s349
      %p358 = scmp.eq.s32.totalorder %s44, 0
      %p359 = por %p357, %p358
      %p360 = scmp.ne.s32.totalorder %s348, %s349
      %p361 = scmp.eq.s32.totalorder %s45, 1
      %p362 = por %p360, %p361
      %p364 = scmp.ne.s32.totalorder %s349, %s363
      %p365 = scmp.eq.s32.totalorder %s45, 0
      %p366 = por %p364, %p365
      %s368 = sadd.s32 %s367, 1
      %p371 = scmp.eq.s32.totalorder %s39, 1
      %p372 = scmp.ne.s32.totalorder %s367, %s369
      %p373 = scmp.eq.s32.totalorder %s39, 0
      %p374 = por %p372, %p373
      %p375 = scmp.ne.s32.totalorder %s367, %s369
      %p376 = scmp.eq.s32.totalorder %s44, 1
      %p377 = por %p375, %p376
      %p378 = scmp.ne.s32.totalorder %s369, %s370
      %p379 = scmp.eq.s32.totalorder %s44, 0
      %p380 = por %p378, %p379
      %p381 = scmp.ne.s32.totalorder %s369, %s370
      %p382 = scmp.eq.s32.totalorder %s45, 1
      %p383 = por %p381, %p382
      %p385 = scmp.ne.s32.totalorder %s370, %s384
      %p386 = scmp.eq.s32.totalorder %s45, 0
      %p387 = por %p385, %p386
      %s389 = sadd.s32 %s388, 1
      %p392 = scmp.eq.s32.totalorder %s39, 1
      %p393 = scmp.ne.s32.totalorder %s388, %s390
      %p394 = scmp.eq.s32.totalorder %s39, 0
      %p395 = por %p393, %p394
      %p396 = scmp.ne.s32.totalorder %s388, %s390
      %p397 = scmp.eq.s32.totalorder %s44, 1
      %p398 = por %p396, %p397
      %p399 = scmp.ne.s32.totalorder %s390, %s391
      %p400 = scmp.eq.s32.totalorder %s44, 0
      %p401 = por %p399, %p400
      %p402 = scmp.ne.s32.totalorder %s390, %s391
      %p403 = scmp.eq.s32.totalorder %s45, 1
      %p404 = por %p402, %p403
      %p406 = scmp.ne.s32.totalorder %s391, %s405
      %p407 = scmp.eq.s32.totalorder %s45, 0
      %p408 = por %p406, %p407
      %s410 = sadd.s32 %s409, 1
      %p413 = scmp.eq.s32.totalorder %s39, 1
      %p414 = scmp.ne.s32.totalorder %s409, %s411
      %p415 = scmp.eq.s32.totalorder %s39, 0
      %p416 = por %p414, %p415
      %p417 = scmp.ne.s32.totalorder %s409, %s411
      %p418 = scmp.eq.s32.totalorder %s44, 1
      %p419 = por %p417, %p418
      %p420 = scmp.ne.s32.totalorder %s411, %s412
      %p421 = scmp.eq.s32.totalorder %s44, 0
      %p422 = por %p420, %p421
      %p423 = scmp.ne.s32.totalorder %s411, %s412
      %p424 = scmp.eq.s32.totalorder %s45, 1
      %p425 = por %p423, %p424
      %p427 = scmp.ne.s32.totalorder %s412, %s426
      %p428 = scmp.eq.s32.totalorder %s45, 0
      %p429 = por %p427, %p428
      %s431 = sadd.s32 %s430, 1
      %p434 = scmp.eq.s32.totalorder %s39, 1
      %p435 = scmp.ne.s32.totalorder %s430, %s432
      %p436 = scmp.eq.s32.totalorder %s39, 0
      %p437 = por %p435, %p436
      %p438 = scmp.ne.s32.totalorder %s430, %s432
      %p439 = scmp.eq.s32.totalorder %s44, 1
      %p440 = por %p438, %p439
      %p441 = scmp.ne.s32.totalorder %s432, %s433
      %p442 = scmp.eq.s32.totalorder %s44, 0
      %p443 = por %p441, %p442
      %p444 = scmp.ne.s32.totalorder %s432, %s433
      %p445 = scmp.eq.s32.totalorder %s45, 1
      %p446 = por %p444, %p445
      %p448 = scmp.ne.s32.totalorder %s433, %s447
      %p449 = scmp.eq.s32.totalorder %s45, 0
      %p450 = por %p448, %p449
      %s452 = sadd.s32 %s451, 1
      %p455 = scmp.eq.s32.totalorder %s39, 1
      %p456 = scmp.ne.s32.totalorder %s451, %s453
      %p457 = scmp.eq.s32.totalorder %s39, 0
      %p458 = por %p456, %p457
      %p459 = scmp.ne.s32.totalorder %s451, %s453
      %p460 = scmp.eq.s32.totalorder %s44, 1
      %p461 = por %p459, %p460
      %p462 = scmp.ne.s32.totalorder %s453, %s454
      %p463 = scmp.eq.s32.totalorder %s44, 0
      %p464 = por %p462, %p463
      %p465 = scmp.ne.s32.totalorder %s453, %s454
      %p466 = scmp.eq.s32.totalorder %s45, 1
      %p467 = por %p465, %p466
      %p469 = scmp.ne.s32.totalorder %s454, %s468
      %p470 = scmp.eq.s32.totalorder %s45, 0
      %p471 = por %p469, %p470
      %s473 = sadd.s32 %s472, 1
      %p476 = scmp.eq.s32.totalorder %s39, 1
      %p477 = scmp.ne.s32.totalorder %s472, %s474
      %p478 = scmp.eq.s32.totalorder %s39, 0
      %p479 = por %p477, %p478
      %p480 = scmp.ne.s32.totalorder %s472, %s474
      %p481 = scmp.eq.s32.totalorder %s44, 1
      %p482 = por %p480, %p481
      %p483 = scmp.ne.s32.totalorder %s474, %s475
      %p484 = scmp.eq.s32.totalorder %s44, 0
      %p485 = por %p483, %p484
      %p486 = scmp.ne.s32.totalorder %s474, %s475
      %p487 = scmp.eq.s32.totalorder %s45, 1
      %p488 = por %p486, %p487
      %p490 = scmp.ne.s32.totalorder %s475, %s489
      %p491 = scmp.eq.s32.totalorder %s45, 0
      %p492 = por %p490, %p491
      %s494 = sadd.s32 %s493, 1
      %p497 = scmp.eq.s32.totalorder %s39, 1
      %p498 = scmp.ne.s32.totalorder %s493, %s495
      %p499 = scmp.eq.s32.totalorder %s39, 0
      %p500 = por %p498, %p499
      %p501 = scmp.ne.s32.totalorder %s493, %s495
      %p502 = scmp.eq.s32.totalorder %s44, 1
      %p503 = por %p501, %p502
      %p504 = scmp.ne.s32.totalorder %s495, %s496
      %p505 = scmp.eq.s32.totalorder %s44, 0
      %p506 = por %p504, %p505
      %p507 = scmp.ne.s32.totalorder %s495, %s496
      %p508 = scmp.eq.s32.totalorder %s45, 1
      %p509 = por %p507, %p508
      %p511 = scmp.ne.s32.totalorder %s496, %s510
      %p512 = scmp.eq.s32.totalorder %s45, 0
      %p513 = por %p511, %p512
      %s515 = sadd.s32 %s514, 1
      %p518 = scmp.eq.s32.totalorder %s39, 1
      %p519 = scmp.ne.s32.totalorder %s514, %s516
      %p520 = scmp.eq.s32.totalorder %s39, 0
      %p521 = por %p519, %p520
      %p522 = scmp.ne.s32.totalorder %s514, %s516
      %p523 = scmp.eq.s32.totalorder %s44, 1
      %p524 = por %p522, %p523
      %p525 = scmp.ne.s32.totalorder %s516, %s517
      %p526 = scmp.eq.s32.totalorder %s44, 0
      %p527 = por %p525, %p526
      %p528 = scmp.ne.s32.totalorder %s516, %s517
      %p529 = scmp.eq.s32.totalorder %s45, 1
      %p530 = por %p528, %p529
      %p532 = scmp.ne.s32.totalorder %s517, %s531
      %p533 = scmp.eq.s32.totalorder %s45, 0
      %p534 = por %p532, %p533
      %s535 = ssub.s32 %s39, %s46
      %p536 = scmp.eq.s32.totalorder %s535, 0
      %s538 = sadd.s32 %s537, 1
      %s539 = scalar_select %p536, %s537, %s538
      %p542 = pneg %p536
      %p543 = scmp.eq.s32.totalorder %s39, 1
      %p544 = por %p542, %p543
      %p545 = scmp.ne.s32.totalorder %s537, %s540
      %p546 = scmp.eq.s32.totalorder %s39, 0
      %p547 = por %p545, %p546
      %p548 = scmp.ne.s32.totalorder %s537, %s540
      %p549 = scmp.eq.s32.totalorder %s44, 1
      %p550 = por %p548, %p549
      %p551 = scmp.ne.s32.totalorder %s540, %s541
      %p552 = scmp.eq.s32.totalorder %s44, 0
      %p553 = por %p551, %p552
      %p554 = scmp.ne.s32.totalorder %s540, %s541
      %p555 = scmp.eq.s32.totalorder %s45, 1
      %p556 = por %p554, %p555
      %p558 = scmp.ne.s32.totalorder %s541, %s557
      %p559 = scmp.eq.s32.totalorder %s45, 0
      %p560 = por %p558, %p559
      %p561 = scmp.le.s32.totalorder 1, %s39
      %p562 = scmp.lt.s32.totalorder %s39, 3
      %p563 = pnand %p561, %p562
      %p564 = pneg %p563
      // Predicated region
      $region9: #{clip_fashion_mnist_forward.1} parent=5 // pred_check
        _
      $region10: #{clip_fashion_mnist_forward.1} parent=5 // pred_check_branch
        %566 = sbr.rel (%p563) target = $region12
      $region11: #{clip_fashion_mnist_forward.1} parent=5 // pred_region
        %s567 = ssub.s32 %s39, 1
        // Predicated region
        $region13: #{clip_fashion_mnist_forward.1} parent=11 // pred_check
          %p568 = pneg %p86
        $region14: #{clip_fashion_mnist_forward.1} parent=11 // pred_check_branch
          %570 = sbr.rel (%p568) target = $region16
        $region15: #{clip_fashion_mnist_forward.1} parent=11 // pred_region
          _
        $region16: #{clip_fashion_mnist_forward.1} parent=11 // pred_fallthru
          _
        // Predicated region
        $region17: #{clip_fashion_mnist_forward.1} parent=11 // pred_check
          %p571 = pneg %p107
        $region18: #{clip_fashion_mnist_forward.1} parent=11 // pred_check_branch
          %573 = sbr.rel (%p571) target = $region20
        $region19: #{clip_fashion_mnist_forward.1} parent=11 // pred_region
          _
        $region20: #{clip_fashion_mnist_forward.1} parent=11 // pred_fallthru
          _
        // Predicated region
        $region21: #{clip_fashion_mnist_forward.1} parent=11 // pred_check
          %p574 = pneg %p128
        $region22: #{clip_fashion_mnist_forward.1} parent=11 // pred_check_branch
          %576 = sbr.rel (%p574) target = $region24
        $region23: #{clip_fashion_mnist_forward.1} parent=11 // pred_region
          _
        $region24: #{clip_fashion_mnist_forward.1} parent=11 // pred_fallthru
          _
        // Predicated region
        $region25: #{clip_fashion_mnist_forward.1} parent=11 // pred_check
          %p577 = pneg %p149
        $region26: #{clip_fashion_mnist_forward.1} parent=11 // pred_check_branch
          %579 = sbr.rel (%p577) target = $region28
        $region27: #{clip_fashion_mnist_forward.1} parent=11 // pred_region
          %581 = vsyncadd [#allocation3], 0
          %s583 = sshll.u32 %s4, 4
          %s584 = int_to_ptr.hbm [resolvable:$true] %s583
          %s585 = sshll.u32 [#allocation2], 4
          %s586 = int_to_ptr.vmem [resolvable:$true] %s585
          %588 = dma.hbm_to_vmem [thread:$0]  %s584, 16, %s586, [#allocation3]
        $region28: #{clip_fashion_mnist_forward.1} parent=11 // pred_fallthru
          _
        // Predicated region
        $region29: #{clip_fashion_mnist_forward.1} parent=11 // pred_check
          %p589 = pneg %p170
        $region30: #{clip_fashion_mnist_forward.1} parent=11 // pred_check_branch
          %591 = sbr.rel (%p589) target = $region32
        $region31: #{clip_fashion_mnist_forward.1} parent=11 // pred_region
          _
        $region32: #{clip_fashion_mnist_forward.1} parent=11 // pred_fallthru
          _
        // Predicated region
        $region33: #{clip_fashion_mnist_forward.1} parent=11 // pred_check
          %p592 = pneg %p191
        $region34: #{clip_fashion_mnist_forward.1} parent=11 // pred_check_branch
          %594 = sbr.rel (%p592) target = $region36
        $region35: #{clip_fashion_mnist_forward.1} parent=11 // pred_region
          _
        $region36: #{clip_fashion_mnist_forward.1} parent=11 // pred_fallthru
          _
        // Predicated region
        $region37: #{clip_fashion_mnist_forward.1} parent=11 // pred_check
          %p595 = pneg %p212
        $region38: #{clip_fashion_mnist_forward.1} parent=11 // pred_check_branch
          %597 = sbr.rel (%p595) target = $region40
        $region39: #{clip_fashion_mnist_forward.1} parent=11 // pred_region
          %599 = vsyncadd [#allocation6], 0
          %s600 = sshll.u32 %s7, 4
          %s601 = int_to_ptr.hbm [resolvable:$true] %s600
          %s602 = sshll.u32 [#allocation5], 4
          %s603 = int_to_ptr.vmem [resolvable:$true] %s602
          %608 = dma.hbm_to_vmem [thread:$0]  %s601, 24576, %s603, [#allocation6], 768, 768, 48
        $region40: #{clip_fashion_mnist_forward.1} parent=11 // pred_fallthru
          _
        // Predicated region
        $region41: #{clip_fashion_mnist_forward.1} parent=11 // pred_check
          %p609 = pneg %p233
        $region42: #{clip_fashion_mnist_forward.1} parent=11 // pred_check_branch
          %611 = sbr.rel (%p609) target = $region44
        $region43: #{clip_fashion_mnist_forward.1} parent=11 // pred_region
          %613 = vsyncadd [#allocation6], 0
          %s614 = sshll.u32 %s8, 4
          %s615 = int_to_ptr.hbm [resolvable:$true] %s614
          %s616 = sshll.u32 [#allocation7], 4
          %s617 = int_to_ptr.vmem [resolvable:$true] %s616
          %622 = dma.hbm_to_vmem [thread:$0]  %s615, 384, %s617, [#allocation6], 192, 192, 12
        $region44: #{clip_fashion_mnist_forward.1} parent=11 // pred_fallthru
          _
        // Predicated region
        $region45: #{clip_fashion_mnist_forward.1} parent=11 // pred_check
          %p623 = pneg %p254
        $region46: #{clip_fashion_mnist_forward.1} parent=11 // pred_check_branch
          %625 = sbr.rel (%p623) target = $region48
        $region47: #{clip_fashion_mnist_forward.1} parent=11 // pred_region
          _
        $region48: #{clip_fashion_mnist_forward.1} parent=11 // pred_fallthru
          _
        // Predicated region
        $region49: #{clip_fashion_mnist_forward.1} parent=11 // pred_check
          %p626 = pneg %p275
        $region50: #{clip_fashion_mnist_forward.1} parent=11 // pred_check_branch
          %628 = sbr.rel (%p626) target = $region52
        $region51: #{clip_fashion_mnist_forward.1} parent=11 // pred_region
          _
        $region52: #{clip_fashion_mnist_forward.1} parent=11 // pred_fallthru
          _
        // Predicated region
        $region53: #{clip_fashion_mnist_forward.1} parent=11 // pred_check
          %p629 = pneg %p296
        $region54: #{clip_fashion_mnist_forward.1} parent=11 // pred_check_branch
          %631 = sbr.rel (%p629) target = $region56
        $region55: #{clip_fashion_mnist_forward.1} parent=11 // pred_region
          %633 = vsyncadd [#allocation9], 0
          %s634 = sshll.u32 %s11, 4
          %s635 = int_to_ptr.hbm [resolvable:$true] %s634
          %s636 = sshll.u32 [#allocation8], 4
          %s637 = int_to_ptr.vmem [resolvable:$true] %s636
          %642 = dma.hbm_to_vmem [thread:$0]  %s635, 32, %s637, [#allocation9], 16, 16, 1
        $region56: #{clip_fashion_mnist_forward.1} parent=11 // pred_fallthru
          _
        // Predicated region
        $region57: #{clip_fashion_mnist_forward.1} parent=11 // pred_check
          %p643 = pneg %p317
        $region58: #{clip_fashion_mnist_forward.1} parent=11 // pred_check_branch
          %645 = sbr.rel (%p643) target = $region60
        $region59: #{clip_fashion_mnist_forward.1} parent=11 // pred_region
          %647 = vsyncadd [#allocation9], 0
          %s648 = sshll.u32 %s12, 4
          %s649 = int_to_ptr.hbm [resolvable:$true] %s648
          %s650 = sshll.u32 [#allocation10], 4
          %s651 = int_to_ptr.vmem [resolvable:$true] %s650
          %656 = dma.hbm_to_vmem [thread:$0]  %s649, 32, %s651, [#allocation9], 16, 16, 1
        $region60: #{clip_fashion_mnist_forward.1} parent=11 // pred_fallthru
          _
        // Predicated region
        $region61: #{clip_fashion_mnist_forward.1} parent=11 // pred_check
          %p657 = pneg %p338
        $region62: #{clip_fashion_mnist_forward.1} parent=11 // pred_check_branch
          %659 = sbr.rel (%p657) target = $region64
        $region63: #{clip_fashion_mnist_forward.1} parent=11 // pred_region
          _
        $region64: #{clip_fashion_mnist_forward.1} parent=11 // pred_fallthru
          _
        // Predicated region
        $region65: #{clip_fashion_mnist_forward.1} parent=11 // pred_check
          %p660 = pneg %p359
        $region66: #{clip_fashion_mnist_forward.1} parent=11 // pred_check_branch
          %662 = sbr.rel (%p660) target = $region68
        $region67: #{clip_fashion_mnist_forward.1} parent=11 // pred_region
          %664 = vsyncadd [#allocation12], 0
          %s665 = sshll.u32 %s14, 4
          %s666 = int_to_ptr.hbm [resolvable:$true] %s665
          %s667 = sshll.u32 [#allocation11], 4
          %s668 = int_to_ptr.vmem [resolvable:$true] %s667
          %673 = dma.hbm_to_vmem [thread:$0]  %s666, 32, %s668, [#allocation12], 16, 16, 1
        $region68: #{clip_fashion_mnist_forward.1} parent=11 // pred_fallthru
          _
        // Predicated region
        $region69: #{clip_fashion_mnist_forward.1} parent=11 // pred_check
          %p674 = pneg %p380
        $region70: #{clip_fashion_mnist_forward.1} parent=11 // pred_check_branch
          %676 = sbr.rel (%p674) target = $region72
        $region71: #{clip_fashion_mnist_forward.1} parent=11 // pred_region
          _
        $region72: #{clip_fashion_mnist_forward.1} parent=11 // pred_fallthru
          _
        // Predicated region
        $region73: #{clip_fashion_mnist_forward.1} parent=11 // pred_check
          %p677 = pneg %p401
        $region74: #{clip_fashion_mnist_forward.1} parent=11 // pred_check_branch
          %679 = sbr.rel (%p677) target = $region76
        $region75: #{clip_fashion_mnist_forward.1} parent=11 // pred_region
          %681 = vsyncadd [#allocation12], 0
          %s682 = sshll.u32 %s16, 4
          %s683 = int_to_ptr.hbm [resolvable:$true] %s682
          %s684 = sshll.u32 [#allocation13], 4
          %s685 = int_to_ptr.vmem [resolvable:$true] %s684
          %690 = dma.hbm_to_vmem [thread:$0]  %s683, 32, %s685, [#allocation12], 16, 16, 1
        $region76: #{clip_fashion_mnist_forward.1} parent=11 // pred_fallthru
          _
        // Predicated region
        $region77: #{clip_fashion_mnist_forward.1} parent=11 // pred_check
          %p691 = pneg %p422
        $region78: #{clip_fashion_mnist_forward.1} parent=11 // pred_check_branch
          %693 = sbr.rel (%p691) target = $region80
        $region79: #{clip_fashion_mnist_forward.1} parent=11 // pred_region
          %695 = vsyncadd [#allocation15], 0
          %s697 = sshll.u32 %s17, 4
          %s698 = int_to_ptr.hbm [resolvable:$true] %s697
          %s699 = sshll.u32 [#allocation14], 4
          %s700 = int_to_ptr.vmem [resolvable:$true] %s699
          %702 = dma.hbm_to_vmem [thread:$0]  %s698, 16, %s700, [#allocation15]
        $region80: #{clip_fashion_mnist_forward.1} parent=11 // pred_fallthru
          _
        // Predicated region
        $region81: #{clip_fashion_mnist_forward.1} parent=11 // pred_check
          %p703 = pneg %p443
        $region82: #{clip_fashion_mnist_forward.1} parent=11 // pred_check_branch
          %705 = sbr.rel (%p703) target = $region84
        $region83: #{clip_fashion_mnist_forward.1} parent=11 // pred_region
          %707 = vsyncadd [#allocation15], 0
          %s709 = sshll.u32 %s18, 4
          %s710 = int_to_ptr.hbm [resolvable:$true] %s709
          %s711 = sshll.u32 [#allocation16], 4
          %s712 = int_to_ptr.vmem [resolvable:$true] %s711
          %714 = dma.hbm_to_vmem [thread:$0]  %s710, 16, %s712, [#allocation15]
        $region84: #{clip_fashion_mnist_forward.1} parent=11 // pred_fallthru
          _
        // Predicated region
        $region85: #{clip_fashion_mnist_forward.1} parent=11 // pred_check
          %p715 = pneg %p464
        $region86: #{clip_fashion_mnist_forward.1} parent=11 // pred_check_branch
          %717 = sbr.rel (%p715) target = $region88
        $region87: #{clip_fashion_mnist_forward.1} parent=11 // pred_region
          _
        $region88: #{clip_fashion_mnist_forward.1} parent=11 // pred_fallthru
          _
        // Predicated region
        $region89: #{clip_fashion_mnist_forward.1} parent=11 // pred_check
          %p718 = pneg %p485
        $region90: #{clip_fashion_mnist_forward.1} parent=11 // pred_check_branch
          %720 = sbr.rel (%p718) target = $region92
        $region91: #{clip_fashion_mnist_forward.1} parent=11 // pred_region
          %722 = vsyncadd [#allocation18], 0
          %s724 = sshll.u32 %s20, 4
          %s725 = int_to_ptr.hbm [resolvable:$true] %s724
          %s726 = sshll.u32 [#allocation17], 4
          %s727 = int_to_ptr.vmem [resolvable:$true] %s726
          %729 = dma.hbm_to_vmem [thread:$0]  %s725, 16, %s727, [#allocation18]
        $region92: #{clip_fashion_mnist_forward.1} parent=11 // pred_fallthru
          _
        // Predicated region
        $region93: #{clip_fashion_mnist_forward.1} parent=11 // pred_check
          %p730 = pneg %p506
        $region94: #{clip_fashion_mnist_forward.1} parent=11 // pred_check_branch
          %732 = sbr.rel (%p730) target = $region96
        $region95: #{clip_fashion_mnist_forward.1} parent=11 // pred_region
          %734 = vsyncadd [#allocation18], 0
          %s735 = sshll.u32 %s21, 4
          %s736 = int_to_ptr.hbm [resolvable:$true] %s735
          %s737 = sshll.u32 [#allocation19], 4
          %s738 = int_to_ptr.vmem [resolvable:$true] %s737
          %743 = dma.hbm_to_vmem [thread:$0]  %s736, 1024, %s738, [#allocation18], 64, 64, 4
        $region96: #{clip_fashion_mnist_forward.1} parent=11 // pred_fallthru
          _
        // Predicated region
        $region97: #{clip_fashion_mnist_forward.1} parent=11 // pred_check
          %p744 = pneg %p527
        $region98: #{clip_fashion_mnist_forward.1} parent=11 // pred_check_branch
          %746 = sbr.rel (%p744) target = $region100
        $region99: #{clip_fashion_mnist_forward.1} parent=11 // pred_region
          %748 = vsyncadd [#allocation21], 0
          %s750 = sshll.u32 %s22, 4
          %s751 = int_to_ptr.hbm [resolvable:$true] %s750
          %s752 = sshll.u32 [#allocation20], 4
          %s753 = int_to_ptr.vmem [resolvable:$true] %s752
          %755 = dma.hbm_to_vmem [thread:$0]  %s751, 16, %s753, [#allocation21]
        $region100: #{clip_fashion_mnist_forward.1} parent=11 // pred_fallthru
          _
      $region12: #{clip_fashion_mnist_forward.1} parent=5 // pred_fallthru
        _
      %p756 = scmp.lt.s32.totalorder %s39, 2
      // Predicated region
      $region101: #{clip_fashion_mnist_forward.1} parent=5 // pred_check
        %p757 = pneg %p756
      $region102: #{clip_fashion_mnist_forward.1} parent=5 // pred_check_branch
        %759 = sbr.rel (%p757) target = $region104
      $region103: #{clip_fashion_mnist_forward.1} parent=5 // pred_region
        // Predicated region
        $region105: #{clip_fashion_mnist_forward.1} parent=103 // pred_check
          %p760 = pneg %p59
        $region106: #{clip_fashion_mnist_forward.1} parent=103 // pred_check_branch
          %762 = sbr.rel (%p760) target = $region108
        $region107: #{clip_fashion_mnist_forward.1} parent=103 // pred_region
          %p763 = scmp.lt.s32.totalorder %s39, 1
          %s764 = scalar_select %p763, %s39, 1
          %s765 = smul.addr %s764, 2
          %s766 = smul.addr %s765, 8
          %s767 = scalar_lea.vmem %s0, %s766
        $region108: #{clip_fashion_mnist_forward.1} parent=103 // pred_fallthru
          _
      $region104: #{clip_fashion_mnist_forward.1} parent=5 // pred_fallthru
        _
      %p768 = scmp.le.s32.totalorder 1, %s39
      %p769 = scmp.lt.s32.totalorder %s39, 3
      %p770 = pnand %p768, %p769
      %p771 = pneg %p770
      // Predicated region
      $region109: #{clip_fashion_mnist_forward.1} parent=5 // pred_check
        _
      $region110: #{clip_fashion_mnist_forward.1} parent=5 // pred_check_branch
        %773 = sbr.rel (%p770) target = $region112
      $region111: #{clip_fashion_mnist_forward.1} parent=5 // pred_region
        %s774 = ssub.s32 %s39, 1
        // Predicated region
        $region113: #{clip_fashion_mnist_forward.1} parent=111 // pred_check
          %p775 = pneg %p149
        $region114: #{clip_fashion_mnist_forward.1} parent=111 // pred_check_branch
          %777 = sbr.rel (%p775) target = $region116
        $region115: #{clip_fashion_mnist_forward.1} parent=111 // pred_region
          %779 = dma.done [#allocation3], 16
        $region116: #{clip_fashion_mnist_forward.1} parent=111 // pred_fallthru
          _
        // Predicated region
        $region117: #{clip_fashion_mnist_forward.1} parent=111 // pred_check
          %p780 = pneg %p212
        $region118: #{clip_fashion_mnist_forward.1} parent=111 // pred_check_branch
          %782 = sbr.rel (%p780) target = $region120
        $region119: #{clip_fashion_mnist_forward.1} parent=111 // pred_region
          %784 = dma.done [#allocation6], 24576
        $region120: #{clip_fashion_mnist_forward.1} parent=111 // pred_fallthru
          _
        // Predicated region
        $region121: #{clip_fashion_mnist_forward.1} parent=111 // pred_check
          %p785 = pneg %p233
        $region122: #{clip_fashion_mnist_forward.1} parent=111 // pred_check_branch
          %787 = sbr.rel (%p785) target = $region124
        $region123: #{clip_fashion_mnist_forward.1} parent=111 // pred_region
          %789 = dma.done [#allocation6], 384
        $region124: #{clip_fashion_mnist_forward.1} parent=111 // pred_fallthru
          _
        // Predicated region
        $region125: #{clip_fashion_mnist_forward.1} parent=111 // pred_check
          %p790 = pneg %p296
        $region126: #{clip_fashion_mnist_forward.1} parent=111 // pred_check_branch
          %792 = sbr.rel (%p790) target = $region128
        $region127: #{clip_fashion_mnist_forward.1} parent=111 // pred_region
          %794 = dma.done [#allocation9], 32
        $region128: #{clip_fashion_mnist_forward.1} parent=111 // pred_fallthru
          _
        // Predicated region
        $region129: #{clip_fashion_mnist_forward.1} parent=111 // pred_check
          %p795 = pneg %p317
        $region130: #{clip_fashion_mnist_forward.1} parent=111 // pred_check_branch
          %797 = sbr.rel (%p795) target = $region132
        $region131: #{clip_fashion_mnist_forward.1} parent=111 // pred_region
          %799 = dma.done [#allocation9], 32
        $region132: #{clip_fashion_mnist_forward.1} parent=111 // pred_fallthru
          _
        // Predicated region
        $region133: #{clip_fashion_mnist_forward.1} parent=111 // pred_check
          %p800 = pneg %p359
        $region134: #{clip_fashion_mnist_forward.1} parent=111 // pred_check_branch
          %802 = sbr.rel (%p800) target = $region136
        $region135: #{clip_fashion_mnist_forward.1} parent=111 // pred_region
          %804 = dma.done [#allocation12], 32
        $region136: #{clip_fashion_mnist_forward.1} parent=111 // pred_fallthru
          _
        // Predicated region
        $region137: #{clip_fashion_mnist_forward.1} parent=111 // pred_check
          %p805 = pneg %p401
        $region138: #{clip_fashion_mnist_forward.1} parent=111 // pred_check_branch
          %807 = sbr.rel (%p805) target = $region140
        $region139: #{clip_fashion_mnist_forward.1} parent=111 // pred_region
          %809 = dma.done [#allocation12], 32
        $region140: #{clip_fashion_mnist_forward.1} parent=111 // pred_fallthru
          _
        // Predicated region
        $region141: #{clip_fashion_mnist_forward.1} parent=111 // pred_check
          %p810 = pneg %p422
        $region142: #{clip_fashion_mnist_forward.1} parent=111 // pred_check_branch
          %812 = sbr.rel (%p810) target = $region144
        $region143: #{clip_fashion_mnist_forward.1} parent=111 // pred_region
          %814 = dma.done [#allocation15], 16
        $region144: #{clip_fashion_mnist_forward.1} parent=111 // pred_fallthru
          _
        // Predicated region
        $region145: #{clip_fashion_mnist_forward.1} parent=111 // pred_check
          %p815 = pneg %p443
        $region146: #{clip_fashion_mnist_forward.1} parent=111 // pred_check_branch
          %817 = sbr.rel (%p815) target = $region148
        $region147: #{clip_fashion_mnist_forward.1} parent=111 // pred_region
          %819 = dma.done [#allocation15], 16
        $region148: #{clip_fashion_mnist_forward.1} parent=111 // pred_fallthru
          _
        // Predicated region
        $region149: #{clip_fashion_mnist_forward.1} parent=111 // pred_check
          %p820 = pneg %p485
        $region150: #{clip_fashion_mnist_forward.1} parent=111 // pred_check_branch
          %822 = sbr.rel (%p820) target = $region152
        $region151: #{clip_fashion_mnist_forward.1} parent=111 // pred_region
          %824 = dma.done [#allocation18], 16
        $region152: #{clip_fashion_mnist_forward.1} parent=111 // pred_fallthru
          _
        // Predicated region
        $region153: #{clip_fashion_mnist_forward.1} parent=111 // pred_check
          %p825 = pneg %p506
        $region154: #{clip_fashion_mnist_forward.1} parent=111 // pred_check_branch
          %827 = sbr.rel (%p825) target = $region156
        $region155: #{clip_fashion_mnist_forward.1} parent=111 // pred_region
          %829 = dma.done [#allocation18], 1024
        $region156: #{clip_fashion_mnist_forward.1} parent=111 // pred_fallthru
          _
        // Predicated region
        $region157: #{clip_fashion_mnist_forward.1} parent=111 // pred_check
          %p830 = pneg %p527
        $region158: #{clip_fashion_mnist_forward.1} parent=111 // pred_check_branch
          %832 = sbr.rel (%p830) target = $region160
        $region159: #{clip_fashion_mnist_forward.1} parent=111 // pred_region
          %834 = dma.done [#allocation21], 16
        $region160: #{clip_fashion_mnist_forward.1} parent=111 // pred_fallthru
          _
        %p835 = scmp.lt.s32.totalorder %s44, 1
        %s836 = scalar_select %p835, %s44, 1
        %s837 = smul.addr %s836, 2
        %s838 = smul.addr %s837, 8
        %s839 = scalar_lea.vmem %s0, %s838
        %p840 = pneg %p65
        %p841 = pneg %p62
        %p842 = pneg %p86
        %p843 = pneg %p83
        %p844 = pneg %p107
        %p845 = pneg %p104
        %p846 = pneg %p128
        %p847 = pneg %p125
        %p848 = pneg %p149
        %p849 = pneg %p146
        %p850 = pneg %p170
        %p851 = pneg %p167
        %p852 = pneg %p191
        %p853 = pneg %p188
        %p854 = pneg %p212
        %p855 = pneg %p209
        %p856 = pneg %p233
        %p857 = pneg %p230
        %p858 = pneg %p254
        %p859 = pneg %p251
        %p860 = pneg %p275
        %p861 = pneg %p272
        %p862 = pneg %p296
        %p863 = pneg %p293
        %p864 = pneg %p317
        %p865 = pneg %p314
        %p866 = pneg %p338
        %p867 = pneg %p335
        %p868 = pneg %p359
        %p869 = pneg %p356
        %p870 = pneg %p380
        %p871 = pneg %p377
        %p872 = pneg %p401
        %p873 = pneg %p398
        %p874 = pneg %p422
        %p875 = pneg %p419
        %p876 = pneg %p443
        %p877 = pneg %p440
        %p878 = pneg %p464
        %p879 = pneg %p461
        %p880 = pneg %p485
        %p881 = pneg %p482
        %p882 = pneg %p506
        %p883 = pneg %p503
        %p884 = pneg %p527
        %p885 = pneg %p524
        %p886 = pneg %p553
        %p887 = pneg %p550
        %s888 = sand.u32 %s540, 1
        %s889 = scalar_lea.sflag [#allocation4], %s888
        %s890 = sand.u32 %s540, 1
        %s891 = scalar_lea.vmem [#allocation22], %s890
        %p892 = scmp.lt.s32.totalorder %s44, 1
        %s893 = scalar_select %p892, %s44, 1
        %s894 = smul.addr %s893, 2
        %s895 = smul.addr %s894, 8
        %s896 = scalar_lea.vmem %s0, %s895
        %v898 = vld [vmem:[%s896] sm:$0x1f]
        %v899 = vld [vmem:[%s896 + $0x8] sm:$0x1f]
        %v900 = vpack.c.bf16 %v898, %v898
        %v901 = vpack.c.bf16 %v899, %v899
        %v902 = vld [vmem:[%s1] sm:$0xf]
        %v903 = vld [vmem:[%s1 + $0x4] sm:$0xf]
        %v904 = vld [vmem:[%s1 + $0x8] sm:$0xf]
        %v905 = vld [vmem:[%s1 + $0xc] sm:$0xf]
        %v906 = vld [vmem:[%s1 + $0x10] sm:$0xf]
        %v907 = vld [vmem:[%s1 + $0x14] sm:$0xf]
        %v908 = vld [vmem:[%s1 + $0x18] sm:$0xf]
        %v909 = vld [vmem:[%s1 + $0x1c] sm:$0xf]
        %v910 = vld [vmem:[%s1 + $0x20] sm:$0xf]
        %v911 = vld [vmem:[%s1 + $0x24] sm:$0xf]
        %v912 = vld [vmem:[%s1 + $0x28] sm:$0xf]
        %v913 = vld [vmem:[%s1 + $0x2c] sm:$0xf]
        %v914 = vld [vmem:[%s1 + $0x30] sm:$0xf]
        %v915 = vld [vmem:[%s1 + $0x34] sm:$0xf]
        %v916 = vld [vmem:[%s1 + $0x38] sm:$0xf]
        %v917 = vld [vmem:[%s1 + $0x3c] sm:$0xf]
        %v918 = vld [vmem:[%s1 + $0x40] sm:$0xf]
        %v919 = vld [vmem:[%s1 + $0x44] sm:$0xf]
        %v920 = vld [vmem:[%s1 + $0x48] sm:$0xf]
        %v921 = vld [vmem:[%s1 + $0x4c] sm:$0xf]
        %v922 = vld [vmem:[%s1 + $0x50] sm:$0xf]
        %v923 = vld [vmem:[%s1 + $0x54] sm:$0xf]
        %v924 = vld [vmem:[%s1 + $0x58] sm:$0xf]
        %v925 = vld [vmem:[%s1 + $0x5c] sm:$0xf]
        %v926 = vld [vmem:[%s2] sm:$0x1f]
        %v951 = vunpack.c.l.b16 %v902
        %v952 = vunpack.c.l.b16 %v903
        %v953 = vunpack.c.l.b16 %v904
        %v954 = vunpack.c.l.b16 %v905
        %v955 = vunpack.c.l.b16 %v906
        %v956 = vunpack.c.l.b16 %v907
        %v957 = vunpack.c.l.b16 %v908
        %v958 = vunpack.c.l.b16 %v909
        %v959 = vunpack.c.l.b16 %v910
        %v960 = vunpack.c.l.b16 %v911
        %v961 = vunpack.c.l.b16 %v912
        %v962 = vunpack.c.l.b16 %v913
        %v963 = vunpack.c.l.b16 %v914
        %v964 = vunpack.c.l.b16 %v915
        %v965 = vunpack.c.l.b16 %v916
        %v966 = vunpack.c.l.b16 %v917
        %v967 = vunpack.c.l.b16 %v918
        %v968 = vunpack.c.l.b16 %v919
        %v969 = vunpack.c.l.b16 %v920
        %v970 = vunpack.c.l.b16 %v921
        %v971 = vunpack.c.l.b16 %v922
        %v972 = vunpack.c.l.b16 %v923
        %v973 = vunpack.c.l.b16 %v924
        %v974 = vunpack.c.l.b16 %v925
        %v975 = vpack.c.b16 %v952, %v951
        %v976 = vpack.c.b16 %v954, %v953
        %v977 = vpack.c.b16 %v956, %v955
        %v978 = vpack.c.b16 %v958, %v957
        %v979 = vpack.c.b16 %v960, %v959
        %v980 = vpack.c.b16 %v962, %v961
        %v981 = vpack.c.b16 %v964, %v963
        %v982 = vpack.c.b16 %v966, %v965
        %v983 = vpack.c.b16 %v968, %v967
        %v984 = vpack.c.b16 %v970, %v969
        %v985 = vpack.c.b16 %v972, %v971
        %v986 = vpack.c.b16 %v974, %v973
        %vm999 = vcmask 523264
        %v1001 = vsel %vm999, %v901, 0
        %1003 = vmatpush.bf16.msra.mxu0 %v982
        %1004 = vmatpush.bf16.msra.mxu0 %v981
        %1005 = vmatpush.bf16.msra.mxu0 %v980
        %1006 = vmatpush.bf16.msra.mxu0 %v979
        %1007 = vmatpush.bf16.msra.mxu0 %v978
        %1008 = vmatpush.bf16.msra.mxu0 %v977
        %1009 = vmatpush.bf16.msra.mxu0 %v976
        %1010 = vmatpush.bf16.msra.mxu0 %v975
        %1011 = vmatmul.bf16.gmra.mxu0 %v900
        %v1012 = vpop.f32.mrf.mxu0
        %v1013 = vadd.f32 %v926, %v1012
        %v1014 = vpop.f32.mrf.mxu0
        %1015 = vdwg.mxu0
        %1016 = vmatpush.bf16.msra.mxu0 0
        %1017 = vmatpush.bf16.msra.mxu0 0
        %1018 = vmatpush.bf16.msra.mxu0 0
        %1019 = vmatpush.bf16.msra.mxu0 0
        %1020 = vmatpush.bf16.msra.mxu0 %v986
        %1021 = vmatpush.bf16.msra.mxu0 %v985
        %1022 = vmatpush.bf16.msra.mxu0 %v984
        %1023 = vmatpush.bf16.msra.mxu0 %v983
        %1024 = vmatmul.bf16.gmra.mxu0 %v1001
        %v1025 = vpop.f32.mrf.mxu0
        %v1026 = vadd.f32 %v1013, %v1025
        %v1027 = vpop.f32.mrf.mxu0
        %1028 = vdwg.mxu0
        %v1029 = vld [vmem:[%s3] sm:$0x1]
        %v1030 = vld [vmem:[#allocation2] sm:$0x1]
        %vm1031 = vcmask 1044480
        %v1032 = vsel %vm1031, %v1026, 0.0
        %1033 = vadd.xlane.f32.xlu0 %v1032
        %v1034 = vpop.xlane.xlu0 %1033
        %v1035 = vmul.f32 %v1034, 0.03125
        %v1036 = vmul.f32 %v1026, %v1026
        %v1037 = vsel %vm1031, %v1036, 0.0
        %1038 = vadd.xlane.f32.xlu0 %v1037
        %v1039 = vpop.xlane.xlu0 %1038
        %v1040 = vmul.f32 %v1039, 0.03125
        %v1041 = vmul.f32 %v1035, %v1035
        %v1042 = vsub.f32 %v1040, %v1041
        %v1043 = vmax.f32 %v1042, 0.0
        %v1044 = vsub.f32 %v1026, %v1035
        %v1045 = vadd.f32 %v1043, 1e-05
        %v1046 = vrsqrt.pop %v1045
        %v1047 = vmul.f32 %v1046, %v1045
        %v1048 = vmul.f32 %v1047, %v1046
        %v1049 = vmul.f32 0.5, %v1048
        %v1050 = vsub.f32 1.5, %v1049
        %v1051 = vmul.f32 %v1046, %v1050
        %vm1052 = vweird.f32 %v1045
        %vm1053 = vweird.f32 %v1046
        %vm1054 = vmor %vm1052, %vm1053
        %v1055 = vsel %vm1054, %v1046, %v1051
        %v1056 = vmul.f32 %v1044, %v1055
        %v1058 = vperm.slane %v1029, 0
        %v1060 = vmul.f32 %v1056, %v1058
        %v1062 = vperm.slane %v1030, 0
        %v1064 = vadd.f32 %v1060, %v1062
        %v1065 = vld [vmem:[%s5] sm:$0x1]
        %v1066 = vld [vmem:[%s6] sm:$0x1]
        %v1067 = vld [vmem:[#allocation5] sm:$0xff]
        %v1068 = vld [vmem:[#allocation5 + $0x8] sm:$0xff]
        %v1069 = vld [vmem:[#allocation5 + $0x10] sm:$0xff]
        %v1070 = vld [vmem:[#allocation5 + $0x18] sm:$0xff]
        %v1071 = vld [vmem:[#allocation5 + $0x20] sm:$0xff]
        %v1072 = vld [vmem:[#allocation5 + $0x28] sm:$0xff]
        %v1073 = vld [vmem:[#allocation5 + $0x30] sm:$0xff]
        %v1074 = vld [vmem:[#allocation5 + $0x38] sm:$0xff]
        %v1075 = vld [vmem:[#allocation5 + $0x40] sm:$0xff]
        %v1076 = vld [vmem:[#allocation5 + $0x48] sm:$0xff]
        %v1077 = vld [vmem:[#allocation5 + $0x50] sm:$0xff]
        %v1078 = vld [vmem:[#allocation5 + $0x58] sm:$0xff]
        %v1079 = vld [vmem:[#allocation5 + $0x60] sm:$0xff]
        %v1080 = vld [vmem:[#allocation5 + $0x68] sm:$0xff]
        %v1081 = vld [vmem:[#allocation5 + $0x70] sm:$0xff]
        %v1082 = vld [vmem:[#allocation5 + $0x78] sm:$0xff]
        %v1083 = vld [vmem:[#allocation5 + $0x80] sm:$0xff]
        %v1084 = vld [vmem:[#allocation5 + $0x88] sm:$0xff]
        %v1085 = vld [vmem:[#allocation5 + $0x90] sm:$0xff]
        %v1086 = vld [vmem:[#allocation5 + $0x98] sm:$0xff]
        %v1087 = vld [vmem:[#allocation5 + $0xa0] sm:$0xff]
        %v1088 = vld [vmem:[#allocation5 + $0xa8] sm:$0xff]
        %v1089 = vld [vmem:[#allocation5 + $0xb0] sm:$0xff]
        %v1090 = vld [vmem:[#allocation5 + $0xb8] sm:$0xff]
        %v1091 = vld [vmem:[#allocation5 + $0xc0] sm:$0xff]
        %v1092 = vld [vmem:[#allocation5 + $0xc8] sm:$0xff]
        %v1093 = vld [vmem:[#allocation5 + $0xd0] sm:$0xff]
        %v1094 = vld [vmem:[#allocation5 + $0xd8] sm:$0xff]
        %v1095 = vld [vmem:[#allocation5 + $0xe0] sm:$0xff]
        %v1096 = vld [vmem:[#allocation5 + $0xe8] sm:$0xff]
        %v1097 = vld [vmem:[#allocation5 + $0xf0] sm:$0xff]
        %v1098 = vld [vmem:[#allocation5 + $0xf8] sm:$0xff]
        %v1099 = vld [vmem:[#allocation5 + $0x100] sm:$0xff]
        %v1100 = vld [vmem:[#allocation5 + $0x108] sm:$0xff]
        %v1101 = vld [vmem:[#allocation5 + $0x110] sm:$0xff]
        %v1102 = vld [vmem:[#allocation5 + $0x118] sm:$0xff]
        %v1103 = vld [vmem:[#allocation5 + $0x120] sm:$0xff]
        %v1104 = vld [vmem:[#allocation5 + $0x128] sm:$0xff]
        %v1105 = vld [vmem:[#allocation5 + $0x130] sm:$0xff]
        %v1106 = vld [vmem:[#allocation5 + $0x138] sm:$0xff]
        %v1107 = vld [vmem:[#allocation5 + $0x140] sm:$0xff]
        %v1108 = vld [vmem:[#allocation5 + $0x148] sm:$0xff]
        %v1109 = vld [vmem:[#allocation5 + $0x150] sm:$0xff]
        %v1110 = vld [vmem:[#allocation5 + $0x158] sm:$0xff]
        %v1111 = vld [vmem:[#allocation5 + $0x160] sm:$0xff]
        %v1112 = vld [vmem:[#allocation5 + $0x168] sm:$0xff]
        %v1113 = vld [vmem:[#allocation5 + $0x170] sm:$0xff]
        %v1114 = vld [vmem:[#allocation5 + $0x178] sm:$0xff]
        %v1115 = vld [vmem:[#allocation5 + $0x180] sm:$0xff]
        %v1116 = vld [vmem:[#allocation5 + $0x188] sm:$0xff]
        %v1117 = vld [vmem:[#allocation5 + $0x190] sm:$0xff]
        %v1118 = vld [vmem:[#allocation5 + $0x198] sm:$0xff]
        %v1119 = vld [vmem:[#allocation5 + $0x1a0] sm:$0xff]
        %v1120 = vld [vmem:[#allocation5 + $0x1a8] sm:$0xff]
        %v1121 = vld [vmem:[#allocation5 + $0x1b0] sm:$0xff]
        %v1122 = vld [vmem:[#allocation5 + $0x1b8] sm:$0xff]
        %v1123 = vld [vmem:[#allocation5 + $0x1c0] sm:$0xff]
        %v1124 = vld [vmem:[#allocation5 + $0x1c8] sm:$0xff]
        %v1125 = vld [vmem:[#allocation5 + $0x1d0] sm:$0xff]
        %v1126 = vld [vmem:[#allocation5 + $0x1d8] sm:$0xff]
        %v1127 = vld [vmem:[#allocation5 + $0x1e0] sm:$0xff]
        %v1128 = vld [vmem:[#allocation5 + $0x1e8] sm:$0xff]
        %v1129 = vld [vmem:[#allocation5 + $0x1f0] sm:$0xff]
        %v1130 = vld [vmem:[#allocation5 + $0x1f8] sm:$0xff]
        %v1131 = vld [vmem:[#allocation5 + $0x200] sm:$0xff]
        %v1132 = vld [vmem:[#allocation5 + $0x208] sm:$0xff]
        %v1133 = vld [vmem:[#allocation5 + $0x210] sm:$0xff]
        %v1134 = vld [vmem:[#allocation5 + $0x218] sm:$0xff]
        %v1135 = vld [vmem:[#allocation5 + $0x220] sm:$0xff]
        %v1136 = vld [vmem:[#allocation5 + $0x228] sm:$0xff]
        %v1137 = vld [vmem:[#allocation5 + $0x230] sm:$0xff]
        %v1138 = vld [vmem:[#allocation5 + $0x238] sm:$0xff]
        %v1139 = vld [vmem:[#allocation5 + $0x240] sm:$0xff]
        %v1140 = vld [vmem:[#allocation5 + $0x248] sm:$0xff]
        %v1141 = vld [vmem:[#allocation5 + $0x250] sm:$0xff]
        %v1142 = vld [vmem:[#allocation5 + $0x258] sm:$0xff]
        %v1143 = vld [vmem:[#allocation5 + $0x260] sm:$0xff]
        %v1144 = vld [vmem:[#allocation5 + $0x268] sm:$0xff]
        %v1145 = vld [vmem:[#allocation5 + $0x270] sm:$0xff]
        %v1146 = vld [vmem:[#allocation5 + $0x278] sm:$0xff]
        %v1147 = vld [vmem:[#allocation5 + $0x280] sm:$0xff]
        %v1148 = vld [vmem:[#allocation5 + $0x288] sm:$0xff]
        %v1149 = vld [vmem:[#allocation5 + $0x290] sm:$0xff]
        %v1150 = vld [vmem:[#allocation5 + $0x298] sm:$0xff]
        %v1151 = vld [vmem:[#allocation5 + $0x2a0] sm:$0xff]
        %v1152 = vld [vmem:[#allocation5 + $0x2a8] sm:$0xff]
        %v1153 = vld [vmem:[#allocation5 + $0x2b0] sm:$0xff]
        %v1154 = vld [vmem:[#allocation5 + $0x2b8] sm:$0xff]
        %v1155 = vld [vmem:[#allocation5 + $0x2c0] sm:$0xff]
        %v1156 = vld [vmem:[#allocation5 + $0x2c8] sm:$0xff]
        %v1157 = vld [vmem:[#allocation5 + $0x2d0] sm:$0xff]
        %v1158 = vld [vmem:[#allocation5 + $0x2d8] sm:$0xff]
        %v1159 = vld [vmem:[#allocation5 + $0x2e0] sm:$0xff]
        %v1160 = vld [vmem:[#allocation5 + $0x2e8] sm:$0xff]
        %v1161 = vld [vmem:[#allocation5 + $0x2f0] sm:$0xff]
        %v1162 = vld [vmem:[#allocation5 + $0x2f8] sm:$0xff]
        %v1163 = vld [vmem:[#allocation7] sm:$0xff]
        %v1164 = vld [vmem:[#allocation7 + $0x8] sm:$0xf]
        %v1165 = vld [vmem:[%s9] sm:$0xf]
        %v1166 = vld [vmem:[%s9 + $0x4] sm:$0xf]
        %v1167 = vld [vmem:[%s9 + $0x8] sm:$0xf]
        %v1168 = vld [vmem:[%s9 + $0xc] sm:$0xf]
        %v1169 = vld [vmem:[%s9 + $0x10] sm:$0xf]
        %v1170 = vld [vmem:[%s9 + $0x14] sm:$0xf]
        %v1171 = vld [vmem:[%s9 + $0x18] sm:$0xf]
        %v1172 = vld [vmem:[%s9 + $0x1c] sm:$0xf]
        %v1173 = vld [vmem:[%s9 + $0x20] sm:$0xf]
        %v1174 = vld [vmem:[%s9 + $0x24] sm:$0xf]
        %v1175 = vld [vmem:[%s9 + $0x28] sm:$0xf]
        %v1176 = vld [vmem:[%s9 + $0x2c] sm:$0xf]
        %v1177 = vld [vmem:[%s9 + $0x30] sm:$0xf]
        %v1178 = vld [vmem:[%s9 + $0x34] sm:$0xf]
        %v1179 = vld [vmem:[%s9 + $0x38] sm:$0xf]
        %v1180 = vld [vmem:[%s9 + $0x3c] sm:$0xf]
        %v1181 = vld [vmem:[%s9 + $0x40] sm:$0xf]
        %v1182 = vld [vmem:[%s9 + $0x44] sm:$0xf]
        %v1183 = vld [vmem:[%s9 + $0x48] sm:$0xf]
        %v1184 = vld [vmem:[%s9 + $0x4c] sm:$0xf]
        %v1185 = vld [vmem:[%s9 + $0x50] sm:$0xf]
        %v1186 = vld [vmem:[%s9 + $0x54] sm:$0xf]
        %v1187 = vld [vmem:[%s9 + $0x58] sm:$0xf]
        %v1188 = vld [vmem:[%s9 + $0x5c] sm:$0xf]
        %v1189 = vld [vmem:[%s9 + $0x60] sm:$0xf]
        %v1190 = vld [vmem:[%s9 + $0x64] sm:$0xf]
        %v1191 = vld [vmem:[%s9 + $0x68] sm:$0xf]
        %v1192 = vld [vmem:[%s9 + $0x6c] sm:$0xf]
        %v1193 = vld [vmem:[%s9 + $0x70] sm:$0xf]
        %v1194 = vld [vmem:[%s9 + $0x74] sm:$0xf]
        %v1195 = vld [vmem:[%s9 + $0x78] sm:$0xf]
        %v1196 = vld [vmem:[%s9 + $0x7c] sm:$0xf]
        %v1197 = vld [vmem:[%s9 + $0x80] sm:$0xf]
        %v1198 = vld [vmem:[%s9 + $0x84] sm:$0xf]
        %v1199 = vld [vmem:[%s9 + $0x88] sm:$0xf]
        %v1200 = vld [vmem:[%s9 + $0x8c] sm:$0xf]
        %v1201 = vld [vmem:[%s9 + $0x90] sm:$0xf]
        %v1202 = vld [vmem:[%s9 + $0x94] sm:$0xf]
        %v1203 = vld [vmem:[%s9 + $0x98] sm:$0xf]
        %v1204 = vld [vmem:[%s9 + $0x9c] sm:$0xf]
        %v1205 = vld [vmem:[%s9 + $0xa0] sm:$0xf]
        %v1206 = vld [vmem:[%s9 + $0xa4] sm:$0xf]
        %v1207 = vld [vmem:[%s9 + $0xa8] sm:$0xf]
        %v1208 = vld [vmem:[%s9 + $0xac] sm:$0xf]
        %v1209 = vld [vmem:[%s9 + $0xb0] sm:$0xf]
        %v1210 = vld [vmem:[%s9 + $0xb4] sm:$0xf]
        %v1211 = vld [vmem:[%s9 + $0xb8] sm:$0xf]
        %v1212 = vld [vmem:[%s9 + $0xbc] sm:$0xf]
        %v1213 = vld [vmem:[%s9 + $0xc0] sm:$0xf]
        %v1214 = vld [vmem:[%s9 + $0xc4] sm:$0xf]
        %v1215 = vld [vmem:[%s9 + $0xc8] sm:$0xf]
        %v1216 = vld [vmem:[%s9 + $0xcc] sm:$0xf]
        %v1217 = vld [vmem:[%s9 + $0xd0] sm:$0xf]
        %v1218 = vld [vmem:[%s9 + $0xd4] sm:$0xf]
        %v1219 = vld [vmem:[%s9 + $0xd8] sm:$0xf]
        %v1220 = vld [vmem:[%s9 + $0xdc] sm:$0xf]
        %v1221 = vld [vmem:[%s9 + $0xe0] sm:$0xf]
        %v1222 = vld [vmem:[%s9 + $0xe4] sm:$0xf]
        %v1223 = vld [vmem:[%s9 + $0xe8] sm:$0xf]
        %v1224 = vld [vmem:[%s9 + $0xec] sm:$0xf]
        %v1225 = vld [vmem:[%s9 + $0xf0] sm:$0xf]
        %v1226 = vld [vmem:[%s9 + $0xf4] sm:$0xf]
        %v1227 = vld [vmem:[%s9 + $0xf8] sm:$0xf]
        %v1228 = vld [vmem:[%s9 + $0xfc] sm:$0xf]
        %v1229 = vld [vmem:[%s10] sm:$0x1]
        %v1230 = vld [vmem:[#allocation8] sm:$0x1]
        %v1231 = vld [vmem:[#allocation10] sm:$0x1]
        %v1232 = vld [vmem:[%s13] sm:$0xf]
        %v1233 = vld [vmem:[%s13 + $0x4] sm:$0xf]
        %v1234 = vld [vmem:[%s13 + $0x8] sm:$0xf]
        %v1235 = vld [vmem:[%s13 + $0xc] sm:$0xf]
        %v1236 = vld [vmem:[%s13 + $0x10] sm:$0xf]
        %v1237 = vld [vmem:[%s13 + $0x14] sm:$0xf]
        %v1238 = vld [vmem:[%s13 + $0x18] sm:$0xf]
        %v1239 = vld [vmem:[%s13 + $0x1c] sm:$0xf]
        %v1240 = vld [vmem:[%s13 + $0x20] sm:$0xf]
        %v1241 = vld [vmem:[%s13 + $0x24] sm:$0xf]
        %v1242 = vld [vmem:[%s13 + $0x28] sm:$0xf]
        %v1243 = vld [vmem:[%s13 + $0x2c] sm:$0xf]
        %v1244 = vld [vmem:[%s13 + $0x30] sm:$0xf]
        %v1245 = vld [vmem:[%s13 + $0x34] sm:$0xf]
        %v1246 = vld [vmem:[%s13 + $0x38] sm:$0xf]
        %v1247 = vld [vmem:[%s13 + $0x3c] sm:$0xf]
        %v1248 = vld [vmem:[#allocation11] sm:$0x1]
        %v1249 = vld [vmem:[%s15] sm:$0xf]
        %v1250 = vld [vmem:[%s15 + $0x4] sm:$0xf]
        %v1251 = vld [vmem:[%s15 + $0x8] sm:$0xf]
        %v1252 = vld [vmem:[%s15 + $0xc] sm:$0xf]
        %v1253 = vld [vmem:[%s15 + $0x10] sm:$0xf]
        %v1254 = vld [vmem:[%s15 + $0x14] sm:$0xf]
        %v1255 = vld [vmem:[%s15 + $0x18] sm:$0xf]
        %v1256 = vld [vmem:[%s15 + $0x1c] sm:$0xf]
        %v1257 = vld [vmem:[%s15 + $0x20] sm:$0xf]
        %v1258 = vld [vmem:[%s15 + $0x24] sm:$0xf]
        %v1259 = vld [vmem:[%s15 + $0x28] sm:$0xf]
        %v1260 = vld [vmem:[%s15 + $0x2c] sm:$0xf]
        %v1261 = vld [vmem:[%s15 + $0x30] sm:$0xf]
        %v1262 = vld [vmem:[%s15 + $0x34] sm:$0xf]
        %v1263 = vld [vmem:[%s15 + $0x38] sm:$0xf]
        %v1264 = vld [vmem:[%s15 + $0x3c] sm:$0xf]
        %v1265 = vld [vmem:[#allocation13] sm:$0x1]
        %v1266 = vsel %vm1031, %v1064, 0.0
        %1267 = vadd.xlane.f32.xlu0 %v1266
        %v1268 = vpop.xlane.xlu0 %1267
        %v1269 = vmul.f32 %v1268, 0.03125
        %v1270 = vmul.f32 %v1064, %v1064
        %v1271 = vsel %vm1031, %v1270, 0.0
        %1272 = vadd.xlane.f32.xlu0 %v1271
        %v1273 = vpop.xlane.xlu0 %1272
        %v1274 = vmul.f32 %v1273, 0.03125
        %v1275 = vmul.f32 %v1269, %v1269
        %v1276 = vsub.f32 %v1274, %v1275
        %v1277 = vmax.f32 %v1276, 0.0
        %v1278 = vsub.f32 %v1064, %v1269
        %v1279 = vadd.f32 %v1277, 1e-05
        %v1280 = vrsqrt.pop %v1279
        %v1281 = vmul.f32 %v1280, %v1279
        %v1282 = vmul.f32 %v1281, %v1280
        %v1283 = vmul.f32 0.5, %v1282
        %v1284 = vsub.f32 1.5, %v1283
        %v1285 = vmul.f32 %v1280, %v1284
        %vm1286 = vweird.f32 %v1279
        %vm1287 = vweird.f32 %v1280
        %vm1288 = vmor %vm1286, %vm1287
        %v1289 = vsel %vm1288, %v1280, %v1285
        %v1290 = vmul.f32 %v1278, %v1289
        %v1292 = vperm.slane %v1065, 0
        %v1294 = vmul.f32 %v1290, %v1292
        %v1296 = vperm.slane %v1066, 0
        %v1298 = vadd.f32 %v1294, %v1296
        %v1299 = vpack.c.bf16 %v1298, %v1298
        %v1302 = vperm.slane %v1163, 0
        %v1303 = vperm.slane %v1163, 1
        %v1304 = vperm.slane %v1163, 2
        %v1305 = vperm.slane %v1163, 3
        %v1306 = vperm.slane %v1163, 4
        %v1307 = vperm.slane %v1163, 5
        %v1308 = vperm.slane %v1163, 6
        %v1309 = vperm.slane %v1163, 7
        %v1310 = vperm.slane %v1164, 0
        %v1311 = vperm.slane %v1164, 1
        %v1312 = vperm.slane %v1164, 2
        %v1313 = vperm.slane %v1164, 3
        %v1422 = vunpack.c.l.b16 %v1067
        %v1423 = vunpack.c.h.b16 %v1067
        %v1424 = vunpack.c.l.b16 %v1068
        %v1425 = vunpack.c.h.b16 %v1068
        %v1426 = vunpack.c.l.b16 %v1069
        %v1427 = vunpack.c.h.b16 %v1069
        %v1428 = vunpack.c.l.b16 %v1070
        %v1429 = vunpack.c.h.b16 %v1070
        %v1430 = vunpack.c.l.b16 %v1071
        %v1431 = vunpack.c.h.b16 %v1071
        %v1432 = vunpack.c.l.b16 %v1072
        %v1433 = vunpack.c.h.b16 %v1072
        %v1434 = vunpack.c.l.b16 %v1073
        %v1435 = vunpack.c.h.b16 %v1073
        %v1436 = vunpack.c.l.b16 %v1074
        %v1437 = vunpack.c.h.b16 %v1074
        %v1438 = vunpack.c.l.b16 %v1075
        %v1439 = vunpack.c.h.b16 %v1075
        %v1440 = vunpack.c.l.b16 %v1076
        %v1441 = vunpack.c.h.b16 %v1076
        %v1442 = vunpack.c.l.b16 %v1077
        %v1443 = vunpack.c.h.b16 %v1077
        %v1444 = vunpack.c.l.b16 %v1078
        %v1445 = vunpack.c.h.b16 %v1078
        %v1446 = vunpack.c.l.b16 %v1079
        %v1447 = vunpack.c.h.b16 %v1079
        %v1448 = vunpack.c.l.b16 %v1080
        %v1449 = vunpack.c.h.b16 %v1080
        %v1450 = vunpack.c.l.b16 %v1081
        %v1451 = vunpack.c.h.b16 %v1081
        %v1452 = vunpack.c.l.b16 %v1082
        %v1453 = vunpack.c.h.b16 %v1082
        %v1454 = vunpack.c.l.b16 %v1083
        %v1455 = vunpack.c.h.b16 %v1083
        %v1456 = vunpack.c.l.b16 %v1084
        %v1457 = vunpack.c.h.b16 %v1084
        %v1458 = vunpack.c.l.b16 %v1085
        %v1459 = vunpack.c.h.b16 %v1085
        %v1460 = vunpack.c.l.b16 %v1086
        %v1461 = vunpack.c.h.b16 %v1086
        %v1462 = vunpack.c.l.b16 %v1087
        %v1463 = vunpack.c.h.b16 %v1087
        %v1464 = vunpack.c.l.b16 %v1088
        %v1465 = vunpack.c.h.b16 %v1088
        %v1466 = vunpack.c.l.b16 %v1089
        %v1467 = vunpack.c.h.b16 %v1089
        %v1468 = vunpack.c.l.b16 %v1090
        %v1469 = vunpack.c.h.b16 %v1090
        %v1470 = vunpack.c.l.b16 %v1091
        %v1471 = vunpack.c.h.b16 %v1091
        %v1472 = vunpack.c.l.b16 %v1092
        %v1473 = vunpack.c.h.b16 %v1092
        %v1474 = vunpack.c.l.b16 %v1093
        %v1475 = vunpack.c.h.b16 %v1093
        %v1476 = vunpack.c.l.b16 %v1094
        %v1477 = vunpack.c.h.b16 %v1094
        %v1478 = vunpack.c.l.b16 %v1095
        %v1479 = vunpack.c.h.b16 %v1095
        %v1480 = vunpack.c.l.b16 %v1096
        %v1481 = vunpack.c.h.b16 %v1096
        %v1482 = vunpack.c.l.b16 %v1097
        %v1483 = vunpack.c.h.b16 %v1097
        %v1484 = vunpack.c.l.b16 %v1098
        %v1485 = vunpack.c.h.b16 %v1098
        %v1486 = vunpack.c.l.b16 %v1099
        %v1487 = vunpack.c.h.b16 %v1099
        %v1488 = vunpack.c.l.b16 %v1100
        %v1489 = vunpack.c.h.b16 %v1100
        %v1490 = vunpack.c.l.b16 %v1101
        %v1491 = vunpack.c.h.b16 %v1101
        %v1492 = vunpack.c.l.b16 %v1102
        %v1493 = vunpack.c.h.b16 %v1102
        %v1494 = vunpack.c.l.b16 %v1103
        %v1495 = vunpack.c.h.b16 %v1103
        %v1496 = vunpack.c.l.b16 %v1104
        %v1497 = vunpack.c.h.b16 %v1104
        %v1498 = vunpack.c.l.b16 %v1105
        %v1499 = vunpack.c.h.b16 %v1105
        %v1500 = vunpack.c.l.b16 %v1106
        %v1501 = vunpack.c.h.b16 %v1106
        %v1502 = vunpack.c.l.b16 %v1107
        %v1503 = vunpack.c.h.b16 %v1107
        %v1504 = vunpack.c.l.b16 %v1108
        %v1505 = vunpack.c.h.b16 %v1108
        %v1506 = vunpack.c.l.b16 %v1109
        %v1507 = vunpack.c.h.b16 %v1109
        %v1508 = vunpack.c.l.b16 %v1110
        %v1509 = vunpack.c.h.b16 %v1110
        %v1510 = vunpack.c.l.b16 %v1111
        %v1511 = vunpack.c.h.b16 %v1111
        %v1512 = vunpack.c.l.b16 %v1112
        %v1513 = vunpack.c.h.b16 %v1112
        %v1514 = vunpack.c.l.b16 %v1113
        %v1515 = vunpack.c.h.b16 %v1113
        %v1516 = vunpack.c.l.b16 %v1114
        %v1517 = vunpack.c.h.b16 %v1114
        %v1518 = vunpack.c.l.b16 %v1115
        %v1519 = vunpack.c.h.b16 %v1115
        %v1520 = vunpack.c.l.b16 %v1116
        %v1521 = vunpack.c.h.b16 %v1116
        %v1522 = vunpack.c.l.b16 %v1117
        %v1523 = vunpack.c.h.b16 %v1117
        %v1524 = vunpack.c.l.b16 %v1118
        %v1525 = vunpack.c.h.b16 %v1118
        %v1526 = vunpack.c.l.b16 %v1119
        %v1527 = vunpack.c.h.b16 %v1119
        %v1528 = vunpack.c.l.b16 %v1120
        %v1529 = vunpack.c.h.b16 %v1120
        %v1530 = vunpack.c.l.b16 %v1121
        %v1531 = vunpack.c.h.b16 %v1121
        %v1532 = vunpack.c.l.b16 %v1122
        %v1533 = vunpack.c.h.b16 %v1122
        %v1534 = vunpack.c.l.b16 %v1123
        %v1535 = vunpack.c.h.b16 %v1123
        %v1536 = vunpack.c.l.b16 %v1124
        %v1537 = vunpack.c.h.b16 %v1124
        %v1538 = vunpack.c.l.b16 %v1125
        %v1539 = vunpack.c.h.b16 %v1125
        %v1540 = vunpack.c.l.b16 %v1126
        %v1541 = vunpack.c.h.b16 %v1126
        %v1542 = vunpack.c.l.b16 %v1127
        %v1543 = vunpack.c.h.b16 %v1127
        %v1544 = vunpack.c.l.b16 %v1128
        %v1545 = vunpack.c.h.b16 %v1128
        %v1546 = vunpack.c.l.b16 %v1129
        %v1547 = vunpack.c.h.b16 %v1129
        %v1548 = vunpack.c.l.b16 %v1130
        %v1549 = vunpack.c.h.b16 %v1130
        %v1550 = vunpack.c.l.b16 %v1131
        %v1551 = vunpack.c.h.b16 %v1131
        %v1552 = vunpack.c.l.b16 %v1132
        %v1553 = vunpack.c.h.b16 %v1132
        %v1554 = vunpack.c.l.b16 %v1133
        %v1555 = vunpack.c.h.b16 %v1133
        %v1556 = vunpack.c.l.b16 %v1134
        %v1557 = vunpack.c.h.b16 %v1134
        %v1558 = vunpack.c.l.b16 %v1135
        %v1559 = vunpack.c.h.b16 %v1135
        %v1560 = vunpack.c.l.b16 %v1136
        %v1561 = vunpack.c.h.b16 %v1136
        %v1562 = vunpack.c.l.b16 %v1137
        %v1563 = vunpack.c.h.b16 %v1137
        %v1564 = vunpack.c.l.b16 %v1138
        %v1565 = vunpack.c.h.b16 %v1138
        %v1566 = vunpack.c.l.b16 %v1139
        %v1567 = vunpack.c.h.b16 %v1139
        %v1568 = vunpack.c.l.b16 %v1140
        %v1569 = vunpack.c.h.b16 %v1140
        %v1570 = vunpack.c.l.b16 %v1141
        %v1571 = vunpack.c.h.b16 %v1141
        %v1572 = vunpack.c.l.b16 %v1142
        %v1573 = vunpack.c.h.b16 %v1142
        %v1574 = vunpack.c.l.b16 %v1143
        %v1575 = vunpack.c.h.b16 %v1143
        %v1576 = vunpack.c.l.b16 %v1144
        %v1577 = vunpack.c.h.b16 %v1144
        %v1578 = vunpack.c.l.b16 %v1145
        %v1579 = vunpack.c.h.b16 %v1145
        %v1580 = vunpack.c.l.b16 %v1146
        %v1581 = vunpack.c.h.b16 %v1146
        %v1582 = vunpack.c.l.b16 %v1147
        %v1583 = vunpack.c.h.b16 %v1147
        %v1584 = vunpack.c.l.b16 %v1148
        %v1585 = vunpack.c.h.b16 %v1148
        %v1586 = vunpack.c.l.b16 %v1149
        %v1587 = vunpack.c.h.b16 %v1149
        %v1588 = vunpack.c.l.b16 %v1150
        %v1589 = vunpack.c.h.b16 %v1150
        %v1590 = vunpack.c.l.b16 %v1151
        %v1591 = vunpack.c.h.b16 %v1151
        %v1592 = vunpack.c.l.b16 %v1152
        %v1593 = vunpack.c.h.b16 %v1152
        %v1594 = vunpack.c.l.b16 %v1153
        %v1595 = vunpack.c.h.b16 %v1153
        %v1596 = vunpack.c.l.b16 %v1154
        %v1597 = vunpack.c.h.b16 %v1154
        %v1598 = vunpack.c.l.b16 %v1155
        %v1599 = vunpack.c.h.b16 %v1155
        %v1600 = vunpack.c.l.b16 %v1156
        %v1601 = vunpack.c.h.b16 %v1156
        %v1602 = vunpack.c.l.b16 %v1157
        %v1603 = vunpack.c.h.b16 %v1157
        %v1604 = vunpack.c.l.b16 %v1158
        %v1605 = vunpack.c.h.b16 %v1158
        %v1606 = vunpack.c.l.b16 %v1159
        %v1607 = vunpack.c.h.b16 %v1159
        %v1608 = vunpack.c.l.b16 %v1160
        %v1609 = vunpack.c.h.b16 %v1160
        %v1610 = vunpack.c.l.b16 %v1161
        %v1611 = vunpack.c.h.b16 %v1161
        %v1612 = vunpack.c.l.b16 %v1162
        %v1613 = vunpack.c.h.b16 %v1162
        %v1614 = vpack.c.b16 %v1434, %v1422
        %v1615 = vpack.c.b16 %v1435, %v1423
        %v1616 = vpack.c.b16 %v1436, %v1424
        %v1617 = vpack.c.b16 %v1437, %v1425
        %v1618 = vpack.c.b16 %v1438, %v1426
        %v1619 = vpack.c.b16 %v1439, %v1427
        %v1620 = vpack.c.b16 %v1440, %v1428
        %v1621 = vpack.c.b16 %v1441, %v1429
        %v1622 = vpack.c.b16 %v1442, %v1430
        %v1623 = vpack.c.b16 %v1443, %v1431
        %v1624 = vpack.c.b16 %v1444, %v1432
        %v1625 = vpack.c.b16 %v1445, %v1433
        %v1626 = vpack.c.b16 %v1458, %v1446
        %v1627 = vpack.c.b16 %v1459, %v1447
        %v1628 = vpack.c.b16 %v1460, %v1448
        %v1629 = vpack.c.b16 %v1461, %v1449
        %v1630 = vpack.c.b16 %v1462, %v1450
        %v1631 = vpack.c.b16 %v1463, %v1451
        %v1632 = vpack.c.b16 %v1464, %v1452
        %v1633 = vpack.c.b16 %v1465, %v1453
        %v1634 = vpack.c.b16 %v1466, %v1454
        %v1635 = vpack.c.b16 %v1467, %v1455
        %v1636 = vpack.c.b16 %v1468, %v1456
        %v1637 = vpack.c.b16 %v1469, %v1457
        %v1638 = vpack.c.b16 %v1482, %v1470
        %v1639 = vpack.c.b16 %v1483, %v1471
        %v1640 = vpack.c.b16 %v1484, %v1472
        %v1641 = vpack.c.b16 %v1485, %v1473
        %v1642 = vpack.c.b16 %v1486, %v1474
        %v1643 = vpack.c.b16 %v1487, %v1475
        %v1644 = vpack.c.b16 %v1488, %v1476
        %v1645 = vpack.c.b16 %v1489, %v1477
        %v1646 = vpack.c.b16 %v1490, %v1478
        %v1647 = vpack.c.b16 %v1491, %v1479
        %v1648 = vpack.c.b16 %v1492, %v1480
        %v1649 = vpack.c.b16 %v1493, %v1481
        %v1650 = vpack.c.b16 %v1506, %v1494
        %v1651 = vpack.c.b16 %v1507, %v1495
        %v1652 = vpack.c.b16 %v1508, %v1496
        %v1653 = vpack.c.b16 %v1509, %v1497
        %v1654 = vpack.c.b16 %v1510, %v1498
        %v1655 = vpack.c.b16 %v1511, %v1499
        %v1656 = vpack.c.b16 %v1512, %v1500
        %v1657 = vpack.c.b16 %v1513, %v1501
        %v1658 = vpack.c.b16 %v1514, %v1502
        %v1659 = vpack.c.b16 %v1515, %v1503
        %v1660 = vpack.c.b16 %v1516, %v1504
        %v1661 = vpack.c.b16 %v1517, %v1505
        %v1662 = vpack.c.b16 %v1530, %v1518
        %v1663 = vpack.c.b16 %v1531, %v1519
        %v1664 = vpack.c.b16 %v1532, %v1520
        %v1665 = vpack.c.b16 %v1533, %v1521
        %v1666 = vpack.c.b16 %v1534, %v1522
        %v1667 = vpack.c.b16 %v1535, %v1523
        %v1668 = vpack.c.b16 %v1536, %v1524
        %v1669 = vpack.c.b16 %v1537, %v1525
        %v1670 = vpack.c.b16 %v1538, %v1526
        %v1671 = vpack.c.b16 %v1539, %v1527
        %v1672 = vpack.c.b16 %v1540, %v1528
        %v1673 = vpack.c.b16 %v1541, %v1529
        %v1674 = vpack.c.b16 %v1554, %v1542
        %v1675 = vpack.c.b16 %v1555, %v1543
        %v1676 = vpack.c.b16 %v1556, %v1544
        %v1677 = vpack.c.b16 %v1557, %v1545
        %v1678 = vpack.c.b16 %v1558, %v1546
        %v1679 = vpack.c.b16 %v1559, %v1547
        %v1680 = vpack.c.b16 %v1560, %v1548
        %v1681 = vpack.c.b16 %v1561, %v1549
        %v1682 = vpack.c.b16 %v1562, %v1550
        %v1683 = vpack.c.b16 %v1563, %v1551
        %v1684 = vpack.c.b16 %v1564, %v1552
        %v1685 = vpack.c.b16 %v1565, %v1553
        %v1686 = vpack.c.b16 %v1578, %v1566
        %v1687 = vpack.c.b16 %v1579, %v1567
        %v1688 = vpack.c.b16 %v1580, %v1568
        %v1689 = vpack.c.b16 %v1581, %v1569
        %v1690 = vpack.c.b16 %v1582, %v1570
        %v1691 = vpack.c.b16 %v1583, %v1571
        %v1692 = vpack.c.b16 %v1584, %v1572
        %v1693 = vpack.c.b16 %v1585, %v1573
        %v1694 = vpack.c.b16 %v1586, %v1574
        %v1695 = vpack.c.b16 %v1587, %v1575
        %v1696 = vpack.c.b16 %v1588, %v1576
        %v1697 = vpack.c.b16 %v1589, %v1577
        %v1698 = vpack.c.b16 %v1602, %v1590
        %v1699 = vpack.c.b16 %v1603, %v1591
        %v1700 = vpack.c.b16 %v1604, %v1592
        %v1701 = vpack.c.b16 %v1605, %v1593
        %v1702 = vpack.c.b16 %v1606, %v1594
        %v1703 = vpack.c.b16 %v1607, %v1595
        %v1704 = vpack.c.b16 %v1608, %v1596
        %v1705 = vpack.c.b16 %v1609, %v1597
        %v1706 = vpack.c.b16 %v1610, %v1598
        %v1707 = vpack.c.b16 %v1611, %v1599
        %v1708 = vpack.c.b16 %v1612, %v1600
        %v1709 = vpack.c.b16 %v1613, %v1601
        %1806 = vmatpush.bf16.msra.mxu0 %v1698
        %1807 = vmatpush.bf16.msra.mxu0 %v1686
        %1808 = vmatpush.bf16.msra.mxu0 %v1674
        %1809 = vmatpush.bf16.msra.mxu0 %v1662
        %1810 = vmatpush.bf16.msra.mxu0 %v1650
        %1811 = vmatpush.bf16.msra.mxu0 %v1638
        %1812 = vmatpush.bf16.msra.mxu0 %v1626
        %1813 = vmatpush.bf16.msra.mxu0 %v1614
        %1814 = vmatmul.bf16.gmra.mxu0 %v1299
        %v1815 = vpop.f32.mrf.mxu0
        %v1816 = vadd.f32 %v1302, %v1815
        %v1817 = vpop.f32.mrf.mxu0
        %1818 = vdwg.mxu0
        %1819 = vmatpush.bf16.msra.mxu0 %v1699
        %1820 = vmatpush.bf16.msra.mxu0 %v1687
        %1821 = vmatpush.bf16.msra.mxu0 %v1675
        %1822 = vmatpush.bf16.msra.mxu0 %v1663
        %1823 = vmatpush.bf16.msra.mxu0 %v1651
        %1824 = vmatpush.bf16.msra.mxu0 %v1639
        %1825 = vmatpush.bf16.msra.mxu0 %v1627
        %1826 = vmatpush.bf16.msra.mxu0 %v1615
        %1827 = vmatmul.bf16.gmra.mxu0 %v1299
        %v1828 = vpop.f32.mrf.mxu0
        %v1829 = vadd.f32 %v1303, %v1828
        %v1830 = vpop.f32.mrf.mxu0
        %1831 = vdwg.mxu0
        %1832 = vmatpush.bf16.msra.mxu0 %v1700
        %1833 = vmatpush.bf16.msra.mxu0 %v1688
        %1834 = vmatpush.bf16.msra.mxu0 %v1676
        %1835 = vmatpush.bf16.msra.mxu0 %v1664
        %1836 = vmatpush.bf16.msra.mxu0 %v1652
        %1837 = vmatpush.bf16.msra.mxu0 %v1640
        %1838 = vmatpush.bf16.msra.mxu0 %v1628
        %1839 = vmatpush.bf16.msra.mxu0 %v1616
        %1840 = vmatmul.bf16.gmra.mxu0 %v1299
        %v1841 = vpop.f32.mrf.mxu0
        %v1842 = vadd.f32 %v1304, %v1841
        %v1843 = vpop.f32.mrf.mxu0
        %1844 = vdwg.mxu0
        %1845 = vmatpush.bf16.msra.mxu0 %v1701
        %1846 = vmatpush.bf16.msra.mxu0 %v1689
        %1847 = vmatpush.bf16.msra.mxu0 %v1677
        %1848 = vmatpush.bf16.msra.mxu0 %v1665
        %1849 = vmatpush.bf16.msra.mxu0 %v1653
        %1850 = vmatpush.bf16.msra.mxu0 %v1641
        %1851 = vmatpush.bf16.msra.mxu0 %v1629
        %1852 = vmatpush.bf16.msra.mxu0 %v1617
        %1853 = vmatmul.bf16.gmra.mxu0 %v1299
        %v1854 = vpop.f32.mrf.mxu0
        %v1855 = vadd.f32 %v1305, %v1854
        %v1856 = vpop.f32.mrf.mxu0
        %1857 = vdwg.mxu0
        %1858 = vmatpush.bf16.msra.mxu0 %v1702
        %1859 = vmatpush.bf16.msra.mxu0 %v1690
        %1860 = vmatpush.bf16.msra.mxu0 %v1678
        %1861 = vmatpush.bf16.msra.mxu0 %v1666
        %1862 = vmatpush.bf16.msra.mxu0 %v1654
        %1863 = vmatpush.bf16.msra.mxu0 %v1642
        %1864 = vmatpush.bf16.msra.mxu0 %v1630
        %1865 = vmatpush.bf16.msra.mxu0 %v1618
        %1866 = vmatmul.bf16.gmra.mxu0 %v1299
        %v1867 = vpop.f32.mrf.mxu0
        %v1868 = vadd.f32 %v1306, %v1867
        %v1869 = vpop.f32.mrf.mxu0
        %1870 = vdwg.mxu0
        %1871 = vmatpush.bf16.msra.mxu0 %v1703
        %1872 = vmatpush.bf16.msra.mxu0 %v1691
        %1873 = vmatpush.bf16.msra.mxu0 %v1679
        %1874 = vmatpush.bf16.msra.mxu0 %v1667
        %1875 = vmatpush.bf16.msra.mxu0 %v1655
        %1876 = vmatpush.bf16.msra.mxu0 %v1643
        %1877 = vmatpush.bf16.msra.mxu0 %v1631
        %1878 = vmatpush.bf16.msra.mxu0 %v1619
        %1879 = vmatmul.bf16.gmra.mxu0 %v1299
        %v1880 = vpop.f32.mrf.mxu0
        %v1881 = vadd.f32 %v1307, %v1880
        %v1882 = vpop.f32.mrf.mxu0
        %1883 = vdwg.mxu0
        %1884 = vmatpush.bf16.msra.mxu0 %v1704
        %1885 = vmatpush.bf16.msra.mxu0 %v1692
        %1886 = vmatpush.bf16.msra.mxu0 %v1680
        %1887 = vmatpush.bf16.msra.mxu0 %v1668
        %1888 = vmatpush.bf16.msra.mxu0 %v1656
        %1889 = vmatpush.bf16.msra.mxu0 %v1644
        %1890 = vmatpush.bf16.msra.mxu0 %v1632
        %1891 = vmatpush.bf16.msra.mxu0 %v1620
        %1892 = vmatmul.bf16.gmra.mxu0 %v1299
        %v1893 = vpop.f32.mrf.mxu0
        %v1894 = vadd.f32 %v1308, %v1893
        %v1895 = vpop.f32.mrf.mxu0
        %1896 = vdwg.mxu0
        %1897 = vmatpush.bf16.msra.mxu0 %v1705
        %1898 = vmatpush.bf16.msra.mxu0 %v1693
        %1899 = vmatpush.bf16.msra.mxu0 %v1681
        %1900 = vmatpush.bf16.msra.mxu0 %v1669
        %1901 = vmatpush.bf16.msra.mxu0 %v1657
        %1902 = vmatpush.bf16.msra.mxu0 %v1645
        %1903 = vmatpush.bf16.msra.mxu0 %v1633
        %1904 = vmatpush.bf16.msra.mxu0 %v1621
        %1905 = vmatmul.bf16.gmra.mxu0 %v1299
        %v1906 = vpop.f32.mrf.mxu0
        %v1907 = vadd.f32 %v1309, %v1906
        %v1908 = vpop.f32.mrf.mxu0
        %1909 = vdwg.mxu0
        %1910 = vmatpush.bf16.msra.mxu0 %v1706
        %1911 = vmatpush.bf16.msra.mxu0 %v1694
        %1912 = vmatpush.bf16.msra.mxu0 %v1682
        %1913 = vmatpush.bf16.msra.mxu0 %v1670
        %1914 = vmatpush.bf16.msra.mxu0 %v1658
        %1915 = vmatpush.bf16.msra.mxu0 %v1646
        %1916 = vmatpush.bf16.msra.mxu0 %v1634
        %1917 = vmatpush.bf16.msra.mxu0 %v1622
        %1918 = vmatmul.bf16.gmra.mxu0 %v1299
        %v1919 = vpop.f32.mrf.mxu0
        %v1920 = vadd.f32 %v1310, %v1919
        %v1921 = vpop.f32.mrf.mxu0
        %1922 = vdwg.mxu0
        %1923 = vmatpush.bf16.msra.mxu0 %v1707
        %1924 = vmatpush.bf16.msra.mxu0 %v1695
        %1925 = vmatpush.bf16.msra.mxu0 %v1683
        %1926 = vmatpush.bf16.msra.mxu0 %v1671
        %1927 = vmatpush.bf16.msra.mxu0 %v1659
        %1928 = vmatpush.bf16.msra.mxu0 %v1647
        %1929 = vmatpush.bf16.msra.mxu0 %v1635
        %1930 = vmatpush.bf16.msra.mxu0 %v1623
        %1931 = vmatmul.bf16.gmra.mxu0 %v1299
        %v1932 = vpop.f32.mrf.mxu0
        %v1933 = vadd.f32 %v1311, %v1932
        %v1934 = vpop.f32.mrf.mxu0
        %1935 = vdwg.mxu0
        %1936 = vmatpush.bf16.msra.mxu0 %v1708
        %1937 = vmatpush.bf16.msra.mxu0 %v1696
        %1938 = vmatpush.bf16.msra.mxu0 %v1684
        %1939 = vmatpush.bf16.msra.mxu0 %v1672
        %1940 = vmatpush.bf16.msra.mxu0 %v1660
        %1941 = vmatpush.bf16.msra.mxu0 %v1648
        %1942 = vmatpush.bf16.msra.mxu0 %v1636
        %1943 = vmatpush.bf16.msra.mxu0 %v1624
        %1944 = vmatmul.bf16.gmra.mxu0 %v1299
        %v1945 = vpop.f32.mrf.mxu0
        %v1946 = vadd.f32 %v1312, %v1945
        %v1947 = vpop.f32.mrf.mxu0
        %1948 = vdwg.mxu0
        %1949 = vmatpush.bf16.msra.mxu0 %v1709
        %1950 = vmatpush.bf16.msra.mxu0 %v1697
        %1951 = vmatpush.bf16.msra.mxu0 %v1685
        %1952 = vmatpush.bf16.msra.mxu0 %v1673
        %1953 = vmatpush.bf16.msra.mxu0 %v1661
        %1954 = vmatpush.bf16.msra.mxu0 %v1649
        %1955 = vmatpush.bf16.msra.mxu0 %v1637
        %1956 = vmatpush.bf16.msra.mxu0 %v1625
        %1957 = vmatmul.bf16.gmra.mxu0 %v1299
        %v1958 = vpop.f32.mrf.mxu0
        %v1959 = vadd.f32 %v1313, %v1958
        %v1960 = vpop.f32.mrf.mxu0
        %1961 = vdwg.mxu0
        %v1962 = vmul.f32 %v1816, 0.35355338
        %v1963 = vpack.c.bf16 %v1962, %v1962
        %v1964 = vpack.c.bf16 %v1868, %v1868
        %1965 = vmatpush.bf16.xpose.msra.mxu0 0
        %1966 = vmatpush.bf16.xpose.msra.mxu0 0
        %1967 = vmatpush.bf16.xpose.msra.mxu0 0
        %1968 = vmatpush.bf16.xpose.msra.mxu0 0
        %1969 = vmatpush.bf16.xpose.msra.mxu0 0
        %1970 = vmatpush.bf16.xpose.msra.mxu0 0
        %1971 = vmatpush.bf16.xpose.msra.mxu0 0
        %1972 = vmatpush.bf16.xpose.msra.mxu0 %v1964
        %1973 = vmatmul.bf16.gmra.mxu0 %v1963
        %v1974 = vpop.f32.mrf.mxu0
        %v1975 = vadd.f32 0.0, %v1974
        %v1976 = vpop.f32.mrf.mxu0
        %1977 = vdwg.mxu0
        %vm1978 = vcmask 36864
        %v1979 = vsel %vm1978, %v1975, -inf
        %1980 = vmax.xlane.f32.xlu0 %v1979
        %v1981 = vpop.xlane.xlu0 %1980
        %v1982 = vsub.f32 %v1975, %v1981
        %v1983 = vmul.f32 %v1982, 1.442695
        %v1984 = vpow.pop %v1983
        %v1985 = vsel %vm1978, %v1984, 0.0
        %1986 = vadd.xlane.f32.xlu0 %v1985
        %v1987 = vpop.xlane.xlu0 %1986
        %v1988 = vrcp.pop %v1987
        %v1989 = vmul.f32 %v1984, %v1988
        %v1990 = vpack.c.bf16 %v1989, %v1989
        %v1991 = vpack.c.bf16 %v1920, %v1920
        %vm1992 = vcmask 39936
        %v1994 = vsel %vm1992, %v1990, 0
        %vm1996 = vcmask 1041408
        %vm1997 = vcmask 1042432
        %v1998 = vsel %vm1996, 4294967295, 65535
        %v1999 = vsel %vm1997, %v1998, 0
        %v2001 = vand.u32 %v1991, %v1999
        %2003 = vmatpush.bf16.msra.mxu0 0
        %2004 = vmatpush.bf16.msra.mxu0 0
        %2005 = vmatpush.bf16.msra.mxu0 0
        %2006 = vmatpush.bf16.msra.mxu0 0
        %2007 = vmatpush.bf16.msra.mxu0 0
        %2008 = vmatpush.bf16.msra.mxu0 0
        %2009 = vmatpush.bf16.msra.mxu0 0
        %2010 = vmatpush.bf16.msra.mxu0 %v2001
        %2011 = vmatmul.bf16.gmra.mxu0 %v1994
        %v2012 = vpop.f32.mrf.mxu0
        %v2013 = vadd.f32 0.0, %v2012
        %v2014 = vpop.f32.mrf.mxu0
        %2015 = vdwg.mxu0
        %v2016 = vmul.f32 %v1829, 0.35355338
        %v2017 = vpack.c.bf16 %v2016, %v2016
        %v2018 = vpack.c.bf16 %v1881, %v1881
        %2019 = vmatpush.bf16.xpose.msra.mxu0 0
        %2020 = vmatpush.bf16.xpose.msra.mxu0 0
        %2021 = vmatpush.bf16.xpose.msra.mxu0 0
        %2022 = vmatpush.bf16.xpose.msra.mxu0 0
        %2023 = vmatpush.bf16.xpose.msra.mxu0 0
        %2024 = vmatpush.bf16.xpose.msra.mxu0 0
        %2025 = vmatpush.bf16.xpose.msra.mxu0 0
        %2026 = vmatpush.bf16.xpose.msra.mxu0 %v2018
        %2027 = vmatmul.bf16.gmra.mxu0 %v2017
        %v2028 = vpop.f32.mrf.mxu0
        %v2029 = vadd.f32 0.0, %v2028
        %v2030 = vpop.f32.mrf.mxu0
        %2031 = vdwg.mxu0
        %v2032 = vsel %vm1978, %v2029, -inf
        %2033 = vmax.xlane.f32.xlu0 %v2032
        %v2034 = vpop.xlane.xlu0 %2033
        %v2035 = vsub.f32 %v2029, %v2034
        %v2036 = vmul.f32 %v2035, 1.442695
        %v2037 = vpow.pop %v2036
        %v2038 = vsel %vm1978, %v2037, 0.0
        %2039 = vadd.xlane.f32.xlu0 %v2038
        %v2040 = vpop.xlane.xlu0 %2039
        %v2041 = vrcp.pop %v2040
        %v2042 = vmul.f32 %v2037, %v2041
        %v2043 = vpack.c.bf16 %v2042, %v2042
        %v2044 = vpack.c.bf16 %v1933, %v1933
        %v2046 = vsel %vm1992, %v2043, 0
        %v2049 = vand.u32 %v2044, %v1999
        %2051 = vmatpush.bf16.msra.mxu0 0
        %2052 = vmatpush.bf16.msra.mxu0 0
        %2053 = vmatpush.bf16.msra.mxu0 0
        %2054 = vmatpush.bf16.msra.mxu0 0
        %2055 = vmatpush.bf16.msra.mxu0 0
        %2056 = vmatpush.bf16.msra.mxu0 0
        %2057 = vmatpush.bf16.msra.mxu0 0
        %2058 = vmatpush.bf16.msra.mxu0 %v2049
        %2059 = vmatmul.bf16.gmra.mxu0 %v2046
        %v2060 = vpop.f32.mrf.mxu0
        %v2061 = vadd.f32 0.0, %v2060
        %v2062 = vpop.f32.mrf.mxu0
        %2063 = vdwg.mxu0
        %v2064 = vmul.f32 %v1842, 0.35355338
        %v2065 = vpack.c.bf16 %v2064, %v2064
        %v2066 = vpack.c.bf16 %v1894, %v1894
        %2067 = vmatpush.bf16.xpose.msra.mxu0 0
        %2068 = vmatpush.bf16.xpose.msra.mxu0 0
        %2069 = vmatpush.bf16.xpose.msra.mxu0 0
        %2070 = vmatpush.bf16.xpose.msra.mxu0 0
        %2071 = vmatpush.bf16.xpose.msra.mxu0 0
        %2072 = vmatpush.bf16.xpose.msra.mxu0 0
        %2073 = vmatpush.bf16.xpose.msra.mxu0 0
        %2074 = vmatpush.bf16.xpose.msra.mxu0 %v2066
        %2075 = vmatmul.bf16.gmra.mxu0 %v2065
        %v2076 = vpop.f32.mrf.mxu0
        %v2077 = vadd.f32 0.0, %v2076
        %v2078 = vpop.f32.mrf.mxu0
        %2079 = vdwg.mxu0
        %v2080 = vsel %vm1978, %v2077, -inf
        %2081 = vmax.xlane.f32.xlu0 %v2080
        %v2082 = vpop.xlane.xlu0 %2081
        %v2083 = vsub.f32 %v2077, %v2082
        %v2084 = vmul.f32 %v2083, 1.442695
        %v2085 = vpow.pop %v2084
        %v2086 = vsel %vm1978, %v2085, 0.0
        %2087 = vadd.xlane.f32.xlu0 %v2086
        %v2088 = vpop.xlane.xlu0 %2087
        %v2089 = vrcp.pop %v2088
        %v2090 = vmul.f32 %v2085, %v2089
        %v2091 = vpack.c.bf16 %v2090, %v2090
        %v2092 = vpack.c.bf16 %v1946, %v1946
        %v2094 = vsel %vm1992, %v2091, 0
        %v2097 = vand.u32 %v2092, %v1999
        %2099 = vmatpush.bf16.msra.mxu0 0
        %2100 = vmatpush.bf16.msra.mxu0 0
        %2101 = vmatpush.bf16.msra.mxu0 0
        %2102 = vmatpush.bf16.msra.mxu0 0
        %2103 = vmatpush.bf16.msra.mxu0 0
        %2104 = vmatpush.bf16.msra.mxu0 0
        %2105 = vmatpush.bf16.msra.mxu0 0
        %2106 = vmatpush.bf16.msra.mxu0 %v2097
        %2107 = vmatmul.bf16.gmra.mxu0 %v2094
        %v2108 = vpop.f32.mrf.mxu0
        %v2109 = vadd.f32 0.0, %v2108
        %v2110 = vpop.f32.mrf.mxu0
        %2111 = vdwg.mxu0
        %v2112 = vmul.f32 %v1855, 0.35355338
        %v2113 = vpack.c.bf16 %v2112, %v2112
        %v2114 = vpack.c.bf16 %v1907, %v1907
        %2115 = vmatpush.bf16.xpose.msra.mxu0 0
        %2116 = vmatpush.bf16.xpose.msra.mxu0 0
        %2117 = vmatpush.bf16.xpose.msra.mxu0 0
        %2118 = vmatpush.bf16.xpose.msra.mxu0 0
        %2119 = vmatpush.bf16.xpose.msra.mxu0 0
        %2120 = vmatpush.bf16.xpose.msra.mxu0 0
        %2121 = vmatpush.bf16.xpose.msra.mxu0 0
        %2122 = vmatpush.bf16.xpose.msra.mxu0 %v2114
        %2123 = vmatmul.bf16.gmra.mxu0 %v2113
        %v2124 = vpop.f32.mrf.mxu0
        %v2125 = vadd.f32 0.0, %v2124
        %v2126 = vpop.f32.mrf.mxu0
        %2127 = vdwg.mxu0
        %v2128 = vsel %vm1978, %v2125, -inf
        %2129 = vmax.xlane.f32.xlu0 %v2128
        %v2130 = vpop.xlane.xlu0 %2129
        %v2131 = vsub.f32 %v2125, %v2130
        %v2132 = vmul.f32 %v2131, 1.442695
        %v2133 = vpow.pop %v2132
        %v2134 = vsel %vm1978, %v2133, 0.0
        %2135 = vadd.xlane.f32.xlu0 %v2134
        %v2136 = vpop.xlane.xlu0 %2135
        %v2137 = vrcp.pop %v2136
        %v2138 = vmul.f32 %v2133, %v2137
        %v2139 = vpack.c.bf16 %v2138, %v2138
        %v2140 = vpack.c.bf16 %v1959, %v1959
        %v2142 = vsel %vm1992, %v2139, 0
        %v2145 = vand.u32 %v2140, %v1999
        %2147 = vmatpush.bf16.msra.mxu0 0
        %2148 = vmatpush.bf16.msra.mxu0 0
        %2149 = vmatpush.bf16.msra.mxu0 0
        %2150 = vmatpush.bf16.msra.mxu0 0
        %2151 = vmatpush.bf16.msra.mxu0 0
        %2152 = vmatpush.bf16.msra.mxu0 0
        %2153 = vmatpush.bf16.msra.mxu0 0
        %2154 = vmatpush.bf16.msra.mxu0 %v2145
        %2155 = vmatmul.bf16.gmra.mxu0 %v2142
        %v2156 = vpop.f32.mrf.mxu0
        %v2157 = vadd.f32 0.0, %v2156
        %v2158 = vpop.f32.mrf.mxu0
        %2159 = vdwg.mxu0
        %v2160 = vpack.c.bf16 %v2013, %v2013
        %v2161 = vpack.c.bf16 %v2061, %v2061
        %v2162 = vpack.c.bf16 %v2109, %v2109
        %v2163 = vpack.c.bf16 %v2157, %v2157
        %v2228 = vunpack.c.l.b16 %v1165
        %v2229 = vunpack.c.l.b16 %v1166
        %v2230 = vunpack.c.l.b16 %v1167
        %v2231 = vunpack.c.l.b16 %v1168
        %v2232 = vunpack.c.l.b16 %v1169
        %v2233 = vunpack.c.l.b16 %v1170
        %v2234 = vunpack.c.l.b16 %v1171
        %v2235 = vunpack.c.l.b16 %v1172
        %v2236 = vunpack.c.l.b16 %v1173
        %v2237 = vunpack.c.l.b16 %v1174
        %v2238 = vunpack.c.l.b16 %v1175
        %v2239 = vunpack.c.l.b16 %v1176
        %v2240 = vunpack.c.l.b16 %v1177
        %v2241 = vunpack.c.l.b16 %v1178
        %v2242 = vunpack.c.l.b16 %v1179
        %v2243 = vunpack.c.l.b16 %v1180
        %v2244 = vunpack.c.l.b16 %v1181
        %v2245 = vunpack.c.l.b16 %v1182
        %v2246 = vunpack.c.l.b16 %v1183
        %v2247 = vunpack.c.l.b16 %v1184
        %v2248 = vunpack.c.l.b16 %v1185
        %v2249 = vunpack.c.l.b16 %v1186
        %v2250 = vunpack.c.l.b16 %v1187
        %v2251 = vunpack.c.l.b16 %v1188
        %v2252 = vunpack.c.l.b16 %v1189
        %v2253 = vunpack.c.l.b16 %v1190
        %v2254 = vunpack.c.l.b16 %v1191
        %v2255 = vunpack.c.l.b16 %v1192
        %v2256 = vunpack.c.l.b16 %v1193
        %v2257 = vunpack.c.l.b16 %v1194
        %v2258 = vunpack.c.l.b16 %v1195
        %v2259 = vunpack.c.l.b16 %v1196
        %v2260 = vunpack.c.l.b16 %v1197
        %v2261 = vunpack.c.l.b16 %v1198
        %v2262 = vunpack.c.l.b16 %v1199
        %v2263 = vunpack.c.l.b16 %v1200
        %v2264 = vunpack.c.l.b16 %v1201
        %v2265 = vunpack.c.l.b16 %v1202
        %v2266 = vunpack.c.l.b16 %v1203
        %v2267 = vunpack.c.l.b16 %v1204
        %v2268 = vunpack.c.l.b16 %v1205
        %v2269 = vunpack.c.l.b16 %v1206
        %v2270 = vunpack.c.l.b16 %v1207
        %v2271 = vunpack.c.l.b16 %v1208
        %v2272 = vunpack.c.l.b16 %v1209
        %v2273 = vunpack.c.l.b16 %v1210
        %v2274 = vunpack.c.l.b16 %v1211
        %v2275 = vunpack.c.l.b16 %v1212
        %v2276 = vunpack.c.l.b16 %v1213
        %v2277 = vunpack.c.l.b16 %v1214
        %v2278 = vunpack.c.l.b16 %v1215
        %v2279 = vunpack.c.l.b16 %v1216
        %v2280 = vunpack.c.l.b16 %v1217
        %v2281 = vunpack.c.l.b16 %v1218
        %v2282 = vunpack.c.l.b16 %v1219
        %v2283 = vunpack.c.l.b16 %v1220
        %v2284 = vunpack.c.l.b16 %v1221
        %v2285 = vunpack.c.l.b16 %v1222
        %v2286 = vunpack.c.l.b16 %v1223
        %v2287 = vunpack.c.l.b16 %v1224
        %v2288 = vunpack.c.l.b16 %v1225
        %v2289 = vunpack.c.l.b16 %v1226
        %v2290 = vunpack.c.l.b16 %v1227
        %v2291 = vunpack.c.l.b16 %v1228
        %v2292 = vpack.c.b16 %v2229, %v2228
        %v2293 = vpack.c.b16 %v2231, %v2230
        %v2294 = vpack.c.b16 %v2233, %v2232
        %v2295 = vpack.c.b16 %v2235, %v2234
        %v2296 = vpack.c.b16 %v2237, %v2236
        %v2297 = vpack.c.b16 %v2239, %v2238
        %v2298 = vpack.c.b16 %v2241, %v2240
        %v2299 = vpack.c.b16 %v2243, %v2242
        %v2300 = vpack.c.b16 %v2245, %v2244
        %v2301 = vpack.c.b16 %v2247, %v2246
        %v2302 = vpack.c.b16 %v2249, %v2248
        %v2303 = vpack.c.b16 %v2251, %v2250
        %v2304 = vpack.c.b16 %v2253, %v2252
        %v2305 = vpack.c.b16 %v2255, %v2254
        %v2306 = vpack.c.b16 %v2257, %v2256
        %v2307 = vpack.c.b16 %v2259, %v2258
        %v2308 = vpack.c.b16 %v2261, %v2260
        %v2309 = vpack.c.b16 %v2263, %v2262
        %v2310 = vpack.c.b16 %v2265, %v2264
        %v2311 = vpack.c.b16 %v2267, %v2266
        %v2312 = vpack.c.b16 %v2269, %v2268
        %v2313 = vpack.c.b16 %v2271, %v2270
        %v2314 = vpack.c.b16 %v2273, %v2272
        %v2315 = vpack.c.b16 %v2275, %v2274
        %v2316 = vpack.c.b16 %v2277, %v2276
        %v2317 = vpack.c.b16 %v2279, %v2278
        %v2318 = vpack.c.b16 %v2281, %v2280
        %v2319 = vpack.c.b16 %v2283, %v2282
        %v2320 = vpack.c.b16 %v2285, %v2284
        %v2321 = vpack.c.b16 %v2287, %v2286
        %v2322 = vpack.c.b16 %v2289, %v2288
        %v2323 = vpack.c.b16 %v2291, %v2290
        %2356 = vmatpush.bf16.msra.mxu0 %v2299
        %2357 = vmatpush.bf16.msra.mxu0 %v2298
        %2358 = vmatpush.bf16.msra.mxu0 %v2297
        %2359 = vmatpush.bf16.msra.mxu0 %v2296
        %2360 = vmatpush.bf16.msra.mxu0 %v2295
        %2361 = vmatpush.bf16.msra.mxu0 %v2294
        %2362 = vmatpush.bf16.msra.mxu0 %v2293
        %2363 = vmatpush.bf16.msra.mxu0 %v2292
        %2364 = vmatmul.bf16.gmra.mxu0 %v2160
        %v2365 = vpop.f32.mrf.mxu0
        %v2366 = vadd.f32 0.0, %v2365
        %v2367 = vpop.f32.mrf.mxu0
        %2368 = vdwg.mxu0
        %2369 = vmatpush.bf16.msra.mxu0 %v2307
        %2370 = vmatpush.bf16.msra.mxu0 %v2306
        %2371 = vmatpush.bf16.msra.mxu0 %v2305
        %2372 = vmatpush.bf16.msra.mxu0 %v2304
        %2373 = vmatpush.bf16.msra.mxu0 %v2303
        %2374 = vmatpush.bf16.msra.mxu0 %v2302
        %2375 = vmatpush.bf16.msra.mxu0 %v2301
        %2376 = vmatpush.bf16.msra.mxu0 %v2300
        %2377 = vmatmul.bf16.gmra.mxu0 %v2161
        %v2378 = vpop.f32.mrf.mxu0
        %v2379 = vadd.f32 %v2366, %v2378
        %v2380 = vpop.f32.mrf.mxu0
        %2381 = vdwg.mxu0
        %2382 = vmatpush.bf16.msra.mxu0 %v2315
        %2383 = vmatpush.bf16.msra.mxu0 %v2314
        %2384 = vmatpush.bf16.msra.mxu0 %v2313
        %2385 = vmatpush.bf16.msra.mxu0 %v2312
        %2386 = vmatpush.bf16.msra.mxu0 %v2311
        %2387 = vmatpush.bf16.msra.mxu0 %v2310
        %2388 = vmatpush.bf16.msra.mxu0 %v2309
        %2389 = vmatpush.bf16.msra.mxu0 %v2308
        %2390 = vmatmul.bf16.gmra.mxu0 %v2162
        %v2391 = vpop.f32.mrf.mxu0
        %v2392 = vadd.f32 %v2379, %v2391
        %v2393 = vpop.f32.mrf.mxu0
        %2394 = vdwg.mxu0
        %2395 = vmatpush.bf16.msra.mxu0 %v2323
        %2396 = vmatpush.bf16.msra.mxu0 %v2322
        %2397 = vmatpush.bf16.msra.mxu0 %v2321
        %2398 = vmatpush.bf16.msra.mxu0 %v2320
        %2399 = vmatpush.bf16.msra.mxu0 %v2319
        %2400 = vmatpush.bf16.msra.mxu0 %v2318
        %2401 = vmatpush.bf16.msra.mxu0 %v2317
        %2402 = vmatpush.bf16.msra.mxu0 %v2316
        %2403 = vmatmul.bf16.gmra.mxu0 %v2163
        %v2404 = vpop.f32.mrf.mxu0
        %v2405 = vadd.f32 %v2392, %v2404
        %v2406 = vpop.f32.mrf.mxu0
        %2407 = vdwg.mxu0
        %v2408 = vadd.f32 %v1064, %v2405
        %v2410 = vperm.slane %v1229, 0
        %v2412 = vadd.f32 %v2408, %v2410
        %v2413 = vsel %vm1031, %v2412, 0.0
        %2414 = vadd.xlane.f32.xlu0 %v2413
        %v2415 = vpop.xlane.xlu0 %2414
        %v2416 = vmul.f32 %v2415, 0.03125
        %v2417 = vmul.f32 %v2412, %v2412
        %v2418 = vsel %vm1031, %v2417, 0.0
        %2419 = vadd.xlane.f32.xlu0 %v2418
        %v2420 = vpop.xlane.xlu0 %2419
        %v2421 = vmul.f32 %v2420, 0.03125
        %v2422 = vmul.f32 %v2416, %v2416
        %v2423 = vsub.f32 %v2421, %v2422
        %v2424 = vmax.f32 %v2423, 0.0
        %v2425 = vsub.f32 %v2412, %v2416
        %v2426 = vadd.f32 %v2424, 1e-05
        %v2427 = vrsqrt.pop %v2426
        %v2428 = vmul.f32 %v2427, %v2426
        %v2429 = vmul.f32 %v2428, %v2427
        %v2430 = vmul.f32 0.5, %v2429
        %v2431 = vsub.f32 1.5, %v2430
        %v2432 = vmul.f32 %v2427, %v2431
        %vm2433 = vweird.f32 %v2426
        %vm2434 = vweird.f32 %v2427
        %vm2435 = vmor %vm2433, %vm2434
        %v2436 = vsel %vm2435, %v2427, %v2432
        %v2437 = vmul.f32 %v2425, %v2436
        %v2439 = vperm.slane %v1230, 0
        %v2441 = vmul.f32 %v2437, %v2439
        %v2443 = vperm.slane %v1231, 0
        %v2445 = vadd.f32 %v2441, %v2443
        %v2446 = vpack.c.bf16 %v2445, %v2445
        %v2448 = vperm.slane %v1248, 0
        %v2466 = vunpack.c.l.b16 %v1232
        %v2467 = vunpack.c.l.b16 %v1233
        %v2468 = vunpack.c.l.b16 %v1234
        %v2469 = vunpack.c.l.b16 %v1235
        %v2470 = vunpack.c.l.b16 %v1236
        %v2471 = vunpack.c.l.b16 %v1237
        %v2472 = vunpack.c.l.b16 %v1238
        %v2473 = vunpack.c.l.b16 %v1239
        %v2474 = vunpack.c.l.b16 %v1240
        %v2475 = vunpack.c.l.b16 %v1241
        %v2476 = vunpack.c.l.b16 %v1242
        %v2477 = vunpack.c.l.b16 %v1243
        %v2478 = vunpack.c.l.b16 %v1244
        %v2479 = vunpack.c.l.b16 %v1245
        %v2480 = vunpack.c.l.b16 %v1246
        %v2481 = vunpack.c.l.b16 %v1247
        %v2482 = vpack.c.b16 %v2467, %v2466
        %v2483 = vpack.c.b16 %v2469, %v2468
        %v2484 = vpack.c.b16 %v2471, %v2470
        %v2485 = vpack.c.b16 %v2473, %v2472
        %v2486 = vpack.c.b16 %v2475, %v2474
        %v2487 = vpack.c.b16 %v2477, %v2476
        %v2488 = vpack.c.b16 %v2479, %v2478
        %v2489 = vpack.c.b16 %v2481, %v2480
        %2498 = vmatpush.bf16.msra.mxu0 %v2489
        %2499 = vmatpush.bf16.msra.mxu0 %v2488
        %2500 = vmatpush.bf16.msra.mxu0 %v2487
        %2501 = vmatpush.bf16.msra.mxu0 %v2486
        %2502 = vmatpush.bf16.msra.mxu0 %v2485
        %2503 = vmatpush.bf16.msra.mxu0 %v2484
        %2504 = vmatpush.bf16.msra.mxu0 %v2483
        %2505 = vmatpush.bf16.msra.mxu0 %v2482
        %2506 = vmatmul.bf16.gmra.mxu0 %v2446
        %v2507 = vpop.f32.mrf.mxu0
        %v2508 = vadd.f32 %v2448, %v2507
        %v2509 = vpop.f32.mrf.mxu0
        %2510 = vdwg.mxu0
        %v2511 = vmul.f32 %v2508, 1.702
        %v2512 = vxor.u32 %v2511, 2147483648
        %v2513 = vmul.f32 %v2512, 1.442695
        %v2514 = vpow.pop %v2513
        %v2515 = vadd.f32 %v2514, 1.0
        %v2516 = vrcp.pop %v2515
        %v2517 = vmul.f32 %v2515, %v2516
        %v2518 = vsub.f32 1.0, %v2517
        %v2519 = vmul.f32 %v2516, %v2518
        %v2520 = vadd.f32 %v2516, %v2519
        %vm2521 = vweird.f32 %v2515
        %vm2522 = vweird.f32 %v2516
        %vm2523 = vmor %vm2521, %vm2522
        %v2524 = vsel %vm2523, %v2516, %v2520
        %v2525 = vand.u32 2147483647, %v2515
        %vm2526 = vcmp.eq.f32.partialorder %v2525, 8.507059e+37
        %v2527 = vand.u32 %v2515, 2147483648
        %v2528 = vor.u32 1.1754944e-38, %v2527
        %v2529 = vsel %vm2526, %v2528, %v2524
        %v2530 = vmul.f32 1.0, %v2529
        %v2531 = vmul.f32 %v2508, %v2530
        %v2532 = vpack.c.bf16 %v2531, %v2531
        %v2534 = vperm.slane %v1265, 0
        %v2552 = vunpack.c.l.b16 %v1249
        %v2553 = vunpack.c.l.b16 %v1250
        %v2554 = vunpack.c.l.b16 %v1251
        %v2555 = vunpack.c.l.b16 %v1252
        %v2556 = vunpack.c.l.b16 %v1253
        %v2557 = vunpack.c.l.b16 %v1254
        %v2558 = vunpack.c.l.b16 %v1255
        %v2559 = vunpack.c.l.b16 %v1256
        %v2560 = vunpack.c.l.b16 %v1257
        %v2561 = vunpack.c.l.b16 %v1258
        %v2562 = vunpack.c.l.b16 %v1259
        %v2563 = vunpack.c.l.b16 %v1260
        %v2564 = vunpack.c.l.b16 %v1261
        %v2565 = vunpack.c.l.b16 %v1262
        %v2566 = vunpack.c.l.b16 %v1263
        %v2567 = vunpack.c.l.b16 %v1264
        %v2568 = vpack.c.b16 %v2553, %v2552
        %v2569 = vpack.c.b16 %v2555, %v2554
        %v2570 = vpack.c.b16 %v2557, %v2556
        %v2571 = vpack.c.b16 %v2559, %v2558
        %v2572 = vpack.c.b16 %v2561, %v2560
        %v2573 = vpack.c.b16 %v2563, %v2562
        %v2574 = vpack.c.b16 %v2565, %v2564
        %v2575 = vpack.c.b16 %v2567, %v2566
        %2584 = vmatpush.bf16.msra.mxu0 %v2575
        %2585 = vmatpush.bf16.msra.mxu0 %v2574
        %2586 = vmatpush.bf16.msra.mxu0 %v2573
        %2587 = vmatpush.bf16.msra.mxu0 %v2572
        %2588 = vmatpush.bf16.msra.mxu0 %v2571
        %2589 = vmatpush.bf16.msra.mxu0 %v2570
        %2590 = vmatpush.bf16.msra.mxu0 %v2569
        %2591 = vmatpush.bf16.msra.mxu0 %v2568
        %2592 = vmatmul.bf16.gmra.mxu0 %v2532
        %v2593 = vpop.f32.mrf.mxu0
        %v2594 = vadd.f32 %v2534, %v2593
        %v2595 = vpop.f32.mrf.mxu0
        %2596 = vdwg.mxu0
        %v2597 = vadd.f32 %v2412, %v2594
        %s2598 = scalar_lea.vmem %s5, 1
        %v2599 = vld [vmem:[%s2598] sm:$0x1]
        %s2600 = scalar_lea.vmem %s6, 1
        %v2601 = vld [vmem:[%s2600] sm:$0x1]
        %s2602 = scalar_lea.vmem [#allocation5], 768
        %v2603 = vld [vmem:[%s2602] sm:$0xff]
        %v2604 = vld [vmem:[%s2602 + $0x8] sm:$0xff]
        %v2605 = vld [vmem:[%s2602 + $0x10] sm:$0xff]
        %v2606 = vld [vmem:[%s2602 + $0x18] sm:$0xff]
        %v2607 = vld [vmem:[%s2602 + $0x20] sm:$0xff]
        %v2608 = vld [vmem:[%s2602 + $0x28] sm:$0xff]
        %v2609 = vld [vmem:[%s2602 + $0x30] sm:$0xff]
        %v2610 = vld [vmem:[%s2602 + $0x38] sm:$0xff]
        %v2611 = vld [vmem:[%s2602 + $0x40] sm:$0xff]
        %v2612 = vld [vmem:[%s2602 + $0x48] sm:$0xff]
        %v2613 = vld [vmem:[%s2602 + $0x50] sm:$0xff]
        %v2614 = vld [vmem:[%s2602 + $0x58] sm:$0xff]
        %v2615 = vld [vmem:[%s2602 + $0x60] sm:$0xff]
        %v2616 = vld [vmem:[%s2602 + $0x68] sm:$0xff]
        %v2617 = vld [vmem:[%s2602 + $0x70] sm:$0xff]
        %v2618 = vld [vmem:[%s2602 + $0x78] sm:$0xff]
        %v2619 = vld [vmem:[%s2602 + $0x80] sm:$0xff]
        %v2620 = vld [vmem:[%s2602 + $0x88] sm:$0xff]
        %v2621 = vld [vmem:[%s2602 + $0x90] sm:$0xff]
        %v2622 = vld [vmem:[%s2602 + $0x98] sm:$0xff]
        %v2623 = vld [vmem:[%s2602 + $0xa0] sm:$0xff]
        %v2624 = vld [vmem:[%s2602 + $0xa8] sm:$0xff]
        %v2625 = vld [vmem:[%s2602 + $0xb0] sm:$0xff]
        %v2626 = vld [vmem:[%s2602 + $0xb8] sm:$0xff]
        %v2627 = vld [vmem:[%s2602 + $0xc0] sm:$0xff]
        %v2628 = vld [vmem:[%s2602 + $0xc8] sm:$0xff]
        %v2629 = vld [vmem:[%s2602 + $0xd0] sm:$0xff]
        %v2630 = vld [vmem:[%s2602 + $0xd8] sm:$0xff]
        %v2631 = vld [vmem:[%s2602 + $0xe0] sm:$0xff]
        %v2632 = vld [vmem:[%s2602 + $0xe8] sm:$0xff]
        %v2633 = vld [vmem:[%s2602 + $0xf0] sm:$0xff]
        %v2634 = vld [vmem:[%s2602 + $0xf8] sm:$0xff]
        %v2635 = vld [vmem:[%s2602 + $0x100] sm:$0xff]
        %v2636 = vld [vmem:[%s2602 + $0x108] sm:$0xff]
        %v2637 = vld [vmem:[%s2602 + $0x110] sm:$0xff]
        %v2638 = vld [vmem:[%s2602 + $0x118] sm:$0xff]
        %v2639 = vld [vmem:[%s2602 + $0x120] sm:$0xff]
        %v2640 = vld [vmem:[%s2602 + $0x128] sm:$0xff]
        %v2641 = vld [vmem:[%s2602 + $0x130] sm:$0xff]
        %v2642 = vld [vmem:[%s2602 + $0x138] sm:$0xff]
        %v2643 = vld [vmem:[%s2602 + $0x140] sm:$0xff]
        %v2644 = vld [vmem:[%s2602 + $0x148] sm:$0xff]
        %v2645 = vld [vmem:[%s2602 + $0x150] sm:$0xff]
        %v2646 = vld [vmem:[%s2602 + $0x158] sm:$0xff]
        %v2647 = vld [vmem:[%s2602 + $0x160] sm:$0xff]
        %v2648 = vld [vmem:[%s2602 + $0x168] sm:$0xff]
        %v2649 = vld [vmem:[%s2602 + $0x170] sm:$0xff]
        %v2650 = vld [vmem:[%s2602 + $0x178] sm:$0xff]
        %v2651 = vld [vmem:[%s2602 + $0x180] sm:$0xff]
        %v2652 = vld [vmem:[%s2602 + $0x188] sm:$0xff]
        %v2653 = vld [vmem:[%s2602 + $0x190] sm:$0xff]
        %v2654 = vld [vmem:[%s2602 + $0x198] sm:$0xff]
        %v2655 = vld [vmem:[%s2602 + $0x1a0] sm:$0xff]
        %v2656 = vld [vmem:[%s2602 + $0x1a8] sm:$0xff]
        %v2657 = vld [vmem:[%s2602 + $0x1b0] sm:$0xff]
        %v2658 = vld [vmem:[%s2602 + $0x1b8] sm:$0xff]
        %v2659 = vld [vmem:[%s2602 + $0x1c0] sm:$0xff]
        %v2660 = vld [vmem:[%s2602 + $0x1c8] sm:$0xff]
        %v2661 = vld [vmem:[%s2602 + $0x1d0] sm:$0xff]
        %v2662 = vld [vmem:[%s2602 + $0x1d8] sm:$0xff]
        %v2663 = vld [vmem:[%s2602 + $0x1e0] sm:$0xff]
        %v2664 = vld [vmem:[%s2602 + $0x1e8] sm:$0xff]
        %v2665 = vld [vmem:[%s2602 + $0x1f0] sm:$0xff]
        %v2666 = vld [vmem:[%s2602 + $0x1f8] sm:$0xff]
        %v2667 = vld [vmem:[%s2602 + $0x200] sm:$0xff]
        %v2668 = vld [vmem:[%s2602 + $0x208] sm:$0xff]
        %v2669 = vld [vmem:[%s2602 + $0x210] sm:$0xff]
        %v2670 = vld [vmem:[%s2602 + $0x218] sm:$0xff]
        %v2671 = vld [vmem:[%s2602 + $0x220] sm:$0xff]
        %v2672 = vld [vmem:[%s2602 + $0x228] sm:$0xff]
        %v2673 = vld [vmem:[%s2602 + $0x230] sm:$0xff]
        %v2674 = vld [vmem:[%s2602 + $0x238] sm:$0xff]
        %v2675 = vld [vmem:[%s2602 + $0x240] sm:$0xff]
        %v2676 = vld [vmem:[%s2602 + $0x248] sm:$0xff]
        %v2677 = vld [vmem:[%s2602 + $0x250] sm:$0xff]
        %v2678 = vld [vmem:[%s2602 + $0x258] sm:$0xff]
        %v2679 = vld [vmem:[%s2602 + $0x260] sm:$0xff]
        %v2680 = vld [vmem:[%s2602 + $0x268] sm:$0xff]
        %v2681 = vld [vmem:[%s2602 + $0x270] sm:$0xff]
        %v2682 = vld [vmem:[%s2602 + $0x278] sm:$0xff]
        %v2683 = vld [vmem:[%s2602 + $0x280] sm:$0xff]
        %v2684 = vld [vmem:[%s2602 + $0x288] sm:$0xff]
        %v2685 = vld [vmem:[%s2602 + $0x290] sm:$0xff]
        %v2686 = vld [vmem:[%s2602 + $0x298] sm:$0xff]
        %v2687 = vld [vmem:[%s2602 + $0x2a0] sm:$0xff]
        %v2688 = vld [vmem:[%s2602 + $0x2a8] sm:$0xff]
        %v2689 = vld [vmem:[%s2602 + $0x2b0] sm:$0xff]
        %v2690 = vld [vmem:[%s2602 + $0x2b8] sm:$0xff]
        %v2691 = vld [vmem:[%s2602 + $0x2c0] sm:$0xff]
        %v2692 = vld [vmem:[%s2602 + $0x2c8] sm:$0xff]
        %v2693 = vld [vmem:[%s2602 + $0x2d0] sm:$0xff]
        %v2694 = vld [vmem:[%s2602 + $0x2d8] sm:$0xff]
        %v2695 = vld [vmem:[%s2602 + $0x2e0] sm:$0xff]
        %v2696 = vld [vmem:[%s2602 + $0x2e8] sm:$0xff]
        %v2697 = vld [vmem:[%s2602 + $0x2f0] sm:$0xff]
        %v2698 = vld [vmem:[%s2602 + $0x2f8] sm:$0xff]
        %s2699 = scalar_lea.vmem [#allocation7], 12
        %v2700 = vld [vmem:[%s2699] sm:$0xff]
        %v2701 = vld [vmem:[%s2699 + $0x8] sm:$0xf]
        %s2702 = scalar_lea.vmem %s9, 256
        %v2703 = vld [vmem:[%s2702] sm:$0xf]
        %v2704 = vld [vmem:[%s2702 + $0x4] sm:$0xf]
        %v2705 = vld [vmem:[%s2702 + $0x8] sm:$0xf]
        %v2706 = vld [vmem:[%s2702 + $0xc] sm:$0xf]
        %v2707 = vld [vmem:[%s2702 + $0x10] sm:$0xf]
        %v2708 = vld [vmem:[%s2702 + $0x14] sm:$0xf]
        %v2709 = vld [vmem:[%s2702 + $0x18] sm:$0xf]
        %v2710 = vld [vmem:[%s2702 + $0x1c] sm:$0xf]
        %v2711 = vld [vmem:[%s2702 + $0x20] sm:$0xf]
        %v2712 = vld [vmem:[%s2702 + $0x24] sm:$0xf]
        %v2713 = vld [vmem:[%s2702 + $0x28] sm:$0xf]
        %v2714 = vld [vmem:[%s2702 + $0x2c] sm:$0xf]
        %v2715 = vld [vmem:[%s2702 + $0x30] sm:$0xf]
        %v2716 = vld [vmem:[%s2702 + $0x34] sm:$0xf]
        %v2717 = vld [vmem:[%s2702 + $0x38] sm:$0xf]
        %v2718 = vld [vmem:[%s2702 + $0x3c] sm:$0xf]
        %v2719 = vld [vmem:[%s2702 + $0x40] sm:$0xf]
        %v2720 = vld [vmem:[%s2702 + $0x44] sm:$0xf]
        %v2721 = vld [vmem:[%s2702 + $0x48] sm:$0xf]
        %v2722 = vld [vmem:[%s2702 + $0x4c] sm:$0xf]
        %v2723 = vld [vmem:[%s2702 + $0x50] sm:$0xf]
        %v2724 = vld [vmem:[%s2702 + $0x54] sm:$0xf]
        %v2725 = vld [vmem:[%s2702 + $0x58] sm:$0xf]
        %v2726 = vld [vmem:[%s2702 + $0x5c] sm:$0xf]
        %v2727 = vld [vmem:[%s2702 + $0x60] sm:$0xf]
        %v2728 = vld [vmem:[%s2702 + $0x64] sm:$0xf]
        %v2729 = vld [vmem:[%s2702 + $0x68] sm:$0xf]
        %v2730 = vld [vmem:[%s2702 + $0x6c] sm:$0xf]
        %v2731 = vld [vmem:[%s2702 + $0x70] sm:$0xf]
        %v2732 = vld [vmem:[%s2702 + $0x74] sm:$0xf]
        %v2733 = vld [vmem:[%s2702 + $0x78] sm:$0xf]
        %v2734 = vld [vmem:[%s2702 + $0x7c] sm:$0xf]
        %v2735 = vld [vmem:[%s2702 + $0x80] sm:$0xf]
        %v2736 = vld [vmem:[%s2702 + $0x84] sm:$0xf]
        %v2737 = vld [vmem:[%s2702 + $0x88] sm:$0xf]
        %v2738 = vld [vmem:[%s2702 + $0x8c] sm:$0xf]
        %v2739 = vld [vmem:[%s2702 + $0x90] sm:$0xf]
        %v2740 = vld [vmem:[%s2702 + $0x94] sm:$0xf]
        %v2741 = vld [vmem:[%s2702 + $0x98] sm:$0xf]
        %v2742 = vld [vmem:[%s2702 + $0x9c] sm:$0xf]
        %v2743 = vld [vmem:[%s2702 + $0xa0] sm:$0xf]
        %v2744 = vld [vmem:[%s2702 + $0xa4] sm:$0xf]
        %v2745 = vld [vmem:[%s2702 + $0xa8] sm:$0xf]
        %v2746 = vld [vmem:[%s2702 + $0xac] sm:$0xf]
        %v2747 = vld [vmem:[%s2702 + $0xb0] sm:$0xf]
        %v2748 = vld [vmem:[%s2702 + $0xb4] sm:$0xf]
        %v2749 = vld [vmem:[%s2702 + $0xb8] sm:$0xf]
        %v2750 = vld [vmem:[%s2702 + $0xbc] sm:$0xf]
        %v2751 = vld [vmem:[%s2702 + $0xc0] sm:$0xf]
        %v2752 = vld [vmem:[%s2702 + $0xc4] sm:$0xf]
        %v2753 = vld [vmem:[%s2702 + $0xc8] sm:$0xf]
        %v2754 = vld [vmem:[%s2702 + $0xcc] sm:$0xf]
        %v2755 = vld [vmem:[%s2702 + $0xd0] sm:$0xf]
        %v2756 = vld [vmem:[%s2702 + $0xd4] sm:$0xf]
        %v2757 = vld [vmem:[%s2702 + $0xd8] sm:$0xf]
        %v2758 = vld [vmem:[%s2702 + $0xdc] sm:$0xf]
        %v2759 = vld [vmem:[%s2702 + $0xe0] sm:$0xf]
        %v2760 = vld [vmem:[%s2702 + $0xe4] sm:$0xf]
        %v2761 = vld [vmem:[%s2702 + $0xe8] sm:$0xf]
        %v2762 = vld [vmem:[%s2702 + $0xec] sm:$0xf]
        %v2763 = vld [vmem:[%s2702 + $0xf0] sm:$0xf]
        %v2764 = vld [vmem:[%s2702 + $0xf4] sm:$0xf]
        %v2765 = vld [vmem:[%s2702 + $0xf8] sm:$0xf]
        %v2766 = vld [vmem:[%s2702 + $0xfc] sm:$0xf]
        %s2767 = scalar_lea.vmem %s10, 1
        %v2768 = vld [vmem:[%s2767] sm:$0x1]
        %s2769 = scalar_lea.vmem [#allocation8], 1
        %v2770 = vld [vmem:[%s2769] sm:$0x1]
        %s2771 = scalar_lea.vmem [#allocation10], 1
        %v2772 = vld [vmem:[%s2771] sm:$0x1]
        %s2773 = scalar_lea.vmem %s13, 64
        %v2774 = vld [vmem:[%s2773] sm:$0xf]
        %v2775 = vld [vmem:[%s2773 + $0x4] sm:$0xf]
        %v2776 = vld [vmem:[%s2773 + $0x8] sm:$0xf]
        %v2777 = vld [vmem:[%s2773 + $0xc] sm:$0xf]
        %v2778 = vld [vmem:[%s2773 + $0x10] sm:$0xf]
        %v2779 = vld [vmem:[%s2773 + $0x14] sm:$0xf]
        %v2780 = vld [vmem:[%s2773 + $0x18] sm:$0xf]
        %v2781 = vld [vmem:[%s2773 + $0x1c] sm:$0xf]
        %v2782 = vld [vmem:[%s2773 + $0x20] sm:$0xf]
        %v2783 = vld [vmem:[%s2773 + $0x24] sm:$0xf]
        %v2784 = vld [vmem:[%s2773 + $0x28] sm:$0xf]
        %v2785 = vld [vmem:[%s2773 + $0x2c] sm:$0xf]
        %v2786 = vld [vmem:[%s2773 + $0x30] sm:$0xf]
        %v2787 = vld [vmem:[%s2773 + $0x34] sm:$0xf]
        %v2788 = vld [vmem:[%s2773 + $0x38] sm:$0xf]
        %v2789 = vld [vmem:[%s2773 + $0x3c] sm:$0xf]
        %s2790 = scalar_lea.vmem [#allocation11], 1
        %v2791 = vld [vmem:[%s2790] sm:$0x1]
        %s2792 = scalar_lea.vmem %s15, 64
        %v2793 = vld [vmem:[%s2792] sm:$0xf]
        %v2794 = vld [vmem:[%s2792 + $0x4] sm:$0xf]
        %v2795 = vld [vmem:[%s2792 + $0x8] sm:$0xf]
        %v2796 = vld [vmem:[%s2792 + $0xc] sm:$0xf]
        %v2797 = vld [vmem:[%s2792 + $0x10] sm:$0xf]
        %v2798 = vld [vmem:[%s2792 + $0x14] sm:$0xf]
        %v2799 = vld [vmem:[%s2792 + $0x18] sm:$0xf]
        %v2800 = vld [vmem:[%s2792 + $0x1c] sm:$0xf]
        %v2801 = vld [vmem:[%s2792 + $0x20] sm:$0xf]
        %v2802 = vld [vmem:[%s2792 + $0x24] sm:$0xf]
        %v2803 = vld [vmem:[%s2792 + $0x28] sm:$0xf]
        %v2804 = vld [vmem:[%s2792 + $0x2c] sm:$0xf]
        %v2805 = vld [vmem:[%s2792 + $0x30] sm:$0xf]
        %v2806 = vld [vmem:[%s2792 + $0x34] sm:$0xf]
        %v2807 = vld [vmem:[%s2792 + $0x38] sm:$0xf]
        %v2808 = vld [vmem:[%s2792 + $0x3c] sm:$0xf]
        %s2809 = scalar_lea.vmem [#allocation13], 1
        %v2810 = vld [vmem:[%s2809] sm:$0x1]
        %v2811 = vsel %vm1031, %v2597, 0.0
        %2812 = vadd.xlane.f32.xlu0 %v2811
        %v2813 = vpop.xlane.xlu0 %2812
        %v2814 = vmul.f32 %v2813, 0.03125
        %v2815 = vmul.f32 %v2597, %v2597
        %v2816 = vsel %vm1031, %v2815, 0.0
        %2817 = vadd.xlane.f32.xlu0 %v2816
        %v2818 = vpop.xlane.xlu0 %2817
        %v2819 = vmul.f32 %v2818, 0.03125
        %v2820 = vmul.f32 %v2814, %v2814
        %v2821 = vsub.f32 %v2819, %v2820
        %v2822 = vmax.f32 %v2821, 0.0
        %v2823 = vsub.f32 %v2597, %v2814
        %v2824 = vadd.f32 %v2822, 1e-05
        %v2825 = vrsqrt.pop %v2824
        %v2826 = vmul.f32 %v2825, %v2824
        %v2827 = vmul.f32 %v2826, %v2825
        %v2828 = vmul.f32 0.5, %v2827
        %v2829 = vsub.f32 1.5, %v2828
        %v2830 = vmul.f32 %v2825, %v2829
        %vm2831 = vweird.f32 %v2824
        %vm2832 = vweird.f32 %v2825
        %vm2833 = vmor %vm2831, %vm2832
        %v2834 = vsel %vm2833, %v2825, %v2830
        %v2835 = vmul.f32 %v2823, %v2834
        %v2837 = vperm.slane %v2599, 0
        %v2839 = vmul.f32 %v2835, %v2837
        %v2841 = vperm.slane %v2601, 0
        %v2843 = vadd.f32 %v2839, %v2841
        %v2844 = vpack.c.bf16 %v2843, %v2843
        %v2847 = vperm.slane %v2700, 0
        %v2848 = vperm.slane %v2700, 1
        %v2849 = vperm.slane %v2700, 2
        %v2850 = vperm.slane %v2700, 3
        %v2851 = vperm.slane %v2700, 4
        %v2852 = vperm.slane %v2700, 5
        %v2853 = vperm.slane %v2700, 6
        %v2854 = vperm.slane %v2700, 7
        %v2855 = vperm.slane %v2701, 0
        %v2856 = vperm.slane %v2701, 1
        %v2857 = vperm.slane %v2701, 2
        %v2858 = vperm.slane %v2701, 3
        %v2967 = vunpack.c.l.b16 %v2603
        %v2968 = vunpack.c.h.b16 %v2603
        %v2969 = vunpack.c.l.b16 %v2604
        %v2970 = vunpack.c.h.b16 %v2604
        %v2971 = vunpack.c.l.b16 %v2605
        %v2972 = vunpack.c.h.b16 %v2605
        %v2973 = vunpack.c.l.b16 %v2606
        %v2974 = vunpack.c.h.b16 %v2606
        %v2975 = vunpack.c.l.b16 %v2607
        %v2976 = vunpack.c.h.b16 %v2607
        %v2977 = vunpack.c.l.b16 %v2608
        %v2978 = vunpack.c.h.b16 %v2608
        %v2979 = vunpack.c.l.b16 %v2609
        %v2980 = vunpack.c.h.b16 %v2609
        %v2981 = vunpack.c.l.b16 %v2610
        %v2982 = vunpack.c.h.b16 %v2610
        %v2983 = vunpack.c.l.b16 %v2611
        %v2984 = vunpack.c.h.b16 %v2611
        %v2985 = vunpack.c.l.b16 %v2612
        %v2986 = vunpack.c.h.b16 %v2612
        %v2987 = vunpack.c.l.b16 %v2613
        %v2988 = vunpack.c.h.b16 %v2613
        %v2989 = vunpack.c.l.b16 %v2614
        %v2990 = vunpack.c.h.b16 %v2614
        %v2991 = vunpack.c.l.b16 %v2615
        %v2992 = vunpack.c.h.b16 %v2615
        %v2993 = vunpack.c.l.b16 %v2616
        %v2994 = vunpack.c.h.b16 %v2616
        %v2995 = vunpack.c.l.b16 %v2617
        %v2996 = vunpack.c.h.b16 %v2617
        %v2997 = vunpack.c.l.b16 %v2618
        %v2998 = vunpack.c.h.b16 %v2618
        %v2999 = vunpack.c.l.b16 %v2619
        %v3000 = vunpack.c.h.b16 %v2619
        %v3001 = vunpack.c.l.b16 %v2620
        %v3002 = vunpack.c.h.b16 %v2620
        %v3003 = vunpack.c.l.b16 %v2621
        %v3004 = vunpack.c.h.b16 %v2621
        %v3005 = vunpack.c.l.b16 %v2622
        %v3006 = vunpack.c.h.b16 %v2622
        %v3007 = vunpack.c.l.b16 %v2623
        %v3008 = vunpack.c.h.b16 %v2623
        %v3009 = vunpack.c.l.b16 %v2624
        %v3010 = vunpack.c.h.b16 %v2624
        %v3011 = vunpack.c.l.b16 %v2625
        %v3012 = vunpack.c.h.b16 %v2625
        %v3013 = vunpack.c.l.b16 %v2626
        %v3014 = vunpack.c.h.b16 %v2626
        %v3015 = vunpack.c.l.b16 %v2627
        %v3016 = vunpack.c.h.b16 %v2627
        %v3017 = vunpack.c.l.b16 %v2628
        %v3018 = vunpack.c.h.b16 %v2628
        %v3019 = vunpack.c.l.b16 %v2629
        %v3020 = vunpack.c.h.b16 %v2629
        %v3021 = vunpack.c.l.b16 %v2630
        %v3022 = vunpack.c.h.b16 %v2630
        %v3023 = vunpack.c.l.b16 %v2631
        %v3024 = vunpack.c.h.b16 %v2631
        %v3025 = vunpack.c.l.b16 %v2632
        %v3026 = vunpack.c.h.b16 %v2632
        %v3027 = vunpack.c.l.b16 %v2633
        %v3028 = vunpack.c.h.b16 %v2633
        %v3029 = vunpack.c.l.b16 %v2634
        %v3030 = vunpack.c.h.b16 %v2634
        %v3031 = vunpack.c.l.b16 %v2635
        %v3032 = vunpack.c.h.b16 %v2635
        %v3033 = vunpack.c.l.b16 %v2636
        %v3034 = vunpack.c.h.b16 %v2636
        %v3035 = vunpack.c.l.b16 %v2637
        %v3036 = vunpack.c.h.b16 %v2637
        %v3037 = vunpack.c.l.b16 %v2638
        %v3038 = vunpack.c.h.b16 %v2638
        %v3039 = vunpack.c.l.b16 %v2639
        %v3040 = vunpack.c.h.b16 %v2639
        %v3041 = vunpack.c.l.b16 %v2640
        %v3042 = vunpack.c.h.b16 %v2640
        %v3043 = vunpack.c.l.b16 %v2641
        %v3044 = vunpack.c.h.b16 %v2641
        %v3045 = vunpack.c.l.b16 %v2642
        %v3046 = vunpack.c.h.b16 %v2642
        %v3047 = vunpack.c.l.b16 %v2643
        %v3048 = vunpack.c.h.b16 %v2643
        %v3049 = vunpack.c.l.b16 %v2644
        %v3050 = vunpack.c.h.b16 %v2644
        %v3051 = vunpack.c.l.b16 %v2645
        %v3052 = vunpack.c.h.b16 %v2645
        %v3053 = vunpack.c.l.b16 %v2646
        %v3054 = vunpack.c.h.b16 %v2646
        %v3055 = vunpack.c.l.b16 %v2647
        %v3056 = vunpack.c.h.b16 %v2647
        %v3057 = vunpack.c.l.b16 %v2648
        %v3058 = vunpack.c.h.b16 %v2648
        %v3059 = vunpack.c.l.b16 %v2649
        %v3060 = vunpack.c.h.b16 %v2649
        %v3061 = vunpack.c.l.b16 %v2650
        %v3062 = vunpack.c.h.b16 %v2650
        %v3063 = vunpack.c.l.b16 %v2651
        %v3064 = vunpack.c.h.b16 %v2651
        %v3065 = vunpack.c.l.b16 %v2652
        %v3066 = vunpack.c.h.b16 %v2652
        %v3067 = vunpack.c.l.b16 %v2653
        %v3068 = vunpack.c.h.b16 %v2653
        %v3069 = vunpack.c.l.b16 %v2654
        %v3070 = vunpack.c.h.b16 %v2654
        %v3071 = vunpack.c.l.b16 %v2655
        %v3072 = vunpack.c.h.b16 %v2655
        %v3073 = vunpack.c.l.b16 %v2656
        %v3074 = vunpack.c.h.b16 %v2656
        %v3075 = vunpack.c.l.b16 %v2657
        %v3076 = vunpack.c.h.b16 %v2657
        %v3077 = vunpack.c.l.b16 %v2658
        %v3078 = vunpack.c.h.b16 %v2658
        %v3079 = vunpack.c.l.b16 %v2659
        %v3080 = vunpack.c.h.b16 %v2659
        %v3081 = vunpack.c.l.b16 %v2660
        %v3082 = vunpack.c.h.b16 %v2660
        %v3083 = vunpack.c.l.b16 %v2661
        %v3084 = vunpack.c.h.b16 %v2661
        %v3085 = vunpack.c.l.b16 %v2662
        %v3086 = vunpack.c.h.b16 %v2662
        %v3087 = vunpack.c.l.b16 %v2663
        %v3088 = vunpack.c.h.b16 %v2663
        %v3089 = vunpack.c.l.b16 %v2664
        %v3090 = vunpack.c.h.b16 %v2664
        %v3091 = vunpack.c.l.b16 %v2665
        %v3092 = vunpack.c.h.b16 %v2665
        %v3093 = vunpack.c.l.b16 %v2666
        %v3094 = vunpack.c.h.b16 %v2666
        %v3095 = vunpack.c.l.b16 %v2667
        %v3096 = vunpack.c.h.b16 %v2667
        %v3097 = vunpack.c.l.b16 %v2668
        %v3098 = vunpack.c.h.b16 %v2668
        %v3099 = vunpack.c.l.b16 %v2669
        %v3100 = vunpack.c.h.b16 %v2669
        %v3101 = vunpack.c.l.b16 %v2670
        %v3102 = vunpack.c.h.b16 %v2670
        %v3103 = vunpack.c.l.b16 %v2671
        %v3104 = vunpack.c.h.b16 %v2671
        %v3105 = vunpack.c.l.b16 %v2672
        %v3106 = vunpack.c.h.b16 %v2672
        %v3107 = vunpack.c.l.b16 %v2673
        %v3108 = vunpack.c.h.b16 %v2673
        %v3109 = vunpack.c.l.b16 %v2674
        %v3110 = vunpack.c.h.b16 %v2674
        %v3111 = vunpack.c.l.b16 %v2675
        %v3112 = vunpack.c.h.b16 %v2675
        %v3113 = vunpack.c.l.b16 %v2676
        %v3114 = vunpack.c.h.b16 %v2676
        %v3115 = vunpack.c.l.b16 %v2677
        %v3116 = vunpack.c.h.b16 %v2677
        %v3117 = vunpack.c.l.b16 %v2678
        %v3118 = vunpack.c.h.b16 %v2678
        %v3119 = vunpack.c.l.b16 %v2679
        %v3120 = vunpack.c.h.b16 %v2679
        %v3121 = vunpack.c.l.b16 %v2680
        %v3122 = vunpack.c.h.b16 %v2680
        %v3123 = vunpack.c.l.b16 %v2681
        %v3124 = vunpack.c.h.b16 %v2681
        %v3125 = vunpack.c.l.b16 %v2682
        %v3126 = vunpack.c.h.b16 %v2682
        %v3127 = vunpack.c.l.b16 %v2683
        %v3128 = vunpack.c.h.b16 %v2683
        %v3129 = vunpack.c.l.b16 %v2684
        %v3130 = vunpack.c.h.b16 %v2684
        %v3131 = vunpack.c.l.b16 %v2685
        %v3132 = vunpack.c.h.b16 %v2685
        %v3133 = vunpack.c.l.b16 %v2686
        %v3134 = vunpack.c.h.b16 %v2686
        %v3135 = vunpack.c.l.b16 %v2687
        %v3136 = vunpack.c.h.b16 %v2687
        %v3137 = vunpack.c.l.b16 %v2688
        %v3138 = vunpack.c.h.b16 %v2688
        %v3139 = vunpack.c.l.b16 %v2689
        %v3140 = vunpack.c.h.b16 %v2689
        %v3141 = vunpack.c.l.b16 %v2690
        %v3142 = vunpack.c.h.b16 %v2690
        %v3143 = vunpack.c.l.b16 %v2691
        %v3144 = vunpack.c.h.b16 %v2691
        %v3145 = vunpack.c.l.b16 %v2692
        %v3146 = vunpack.c.h.b16 %v2692
        %v3147 = vunpack.c.l.b16 %v2693
        %v3148 = vunpack.c.h.b16 %v2693
        %v3149 = vunpack.c.l.b16 %v2694
        %v3150 = vunpack.c.h.b16 %v2694
        %v3151 = vunpack.c.l.b16 %v2695
        %v3152 = vunpack.c.h.b16 %v2695
        %v3153 = vunpack.c.l.b16 %v2696
        %v3154 = vunpack.c.h.b16 %v2696
        %v3155 = vunpack.c.l.b16 %v2697
        %v3156 = vunpack.c.h.b16 %v2697
        %v3157 = vunpack.c.l.b16 %v2698
        %v3158 = vunpack.c.h.b16 %v2698
        %v3159 = vpack.c.b16 %v2979, %v2967
        %v3160 = vpack.c.b16 %v2980, %v2968
        %v3161 = vpack.c.b16 %v2981, %v2969
        %v3162 = vpack.c.b16 %v2982, %v2970
        %v3163 = vpack.c.b16 %v2983, %v2971
        %v3164 = vpack.c.b16 %v2984, %v2972
        %v3165 = vpack.c.b16 %v2985, %v2973
        %v3166 = vpack.c.b16 %v2986, %v2974
        %v3167 = vpack.c.b16 %v2987, %v2975
        %v3168 = vpack.c.b16 %v2988, %v2976
        %v3169 = vpack.c.b16 %v2989, %v2977
        %v3170 = vpack.c.b16 %v2990, %v2978
        %v3171 = vpack.c.b16 %v3003, %v2991
        %v3172 = vpack.c.b16 %v3004, %v2992
        %v3173 = vpack.c.b16 %v3005, %v2993
        %v3174 = vpack.c.b16 %v3006, %v2994
        %v3175 = vpack.c.b16 %v3007, %v2995
        %v3176 = vpack.c.b16 %v3008, %v2996
        %v3177 = vpack.c.b16 %v3009, %v2997
        %v3178 = vpack.c.b16 %v3010, %v2998
        %v3179 = vpack.c.b16 %v3011, %v2999
        %v3180 = vpack.c.b16 %v3012, %v3000
        %v3181 = vpack.c.b16 %v3013, %v3001
        %v3182 = vpack.c.b16 %v3014, %v3002
        %v3183 = vpack.c.b16 %v3027, %v3015
        %v3184 = vpack.c.b16 %v3028, %v3016
        %v3185 = vpack.c.b16 %v3029, %v3017
        %v3186 = vpack.c.b16 %v3030, %v3018
        %v3187 = vpack.c.b16 %v3031, %v3019
        %v3188 = vpack.c.b16 %v3032, %v3020
        %v3189 = vpack.c.b16 %v3033, %v3021
        %v3190 = vpack.c.b16 %v3034, %v3022
        %v3191 = vpack.c.b16 %v3035, %v3023
        %v3192 = vpack.c.b16 %v3036, %v3024
        %v3193 = vpack.c.b16 %v3037, %v3025
        %v3194 = vpack.c.b16 %v3038, %v3026
        %v3195 = vpack.c.b16 %v3051, %v3039
        %v3196 = vpack.c.b16 %v3052, %v3040
        %v3197 = vpack.c.b16 %v3053, %v3041
        %v3198 = vpack.c.b16 %v3054, %v3042
        %v3199 = vpack.c.b16 %v3055, %v3043
        %v3200 = vpack.c.b16 %v3056, %v3044
        %v3201 = vpack.c.b16 %v3057, %v3045
        %v3202 = vpack.c.b16 %v3058, %v3046
        %v3203 = vpack.c.b16 %v3059, %v3047
        %v3204 = vpack.c.b16 %v3060, %v3048
        %v3205 = vpack.c.b16 %v3061, %v3049
        %v3206 = vpack.c.b16 %v3062, %v3050
        %v3207 = vpack.c.b16 %v3075, %v3063
        %v3208 = vpack.c.b16 %v3076, %v3064
        %v3209 = vpack.c.b16 %v3077, %v3065
        %v3210 = vpack.c.b16 %v3078, %v3066
        %v3211 = vpack.c.b16 %v3079, %v3067
        %v3212 = vpack.c.b16 %v3080, %v3068
        %v3213 = vpack.c.b16 %v3081, %v3069
        %v3214 = vpack.c.b16 %v3082, %v3070
        %v3215 = vpack.c.b16 %v3083, %v3071
        %v3216 = vpack.c.b16 %v3084, %v3072
        %v3217 = vpack.c.b16 %v3085, %v3073
        %v3218 = vpack.c.b16 %v3086, %v3074
        %v3219 = vpack.c.b16 %v3099, %v3087
        %v3220 = vpack.c.b16 %v3100, %v3088
        %v3221 = vpack.c.b16 %v3101, %v3089
        %v3222 = vpack.c.b16 %v3102, %v3090
        %v3223 = vpack.c.b16 %v3103, %v3091
        %v3224 = vpack.c.b16 %v3104, %v3092
        %v3225 = vpack.c.b16 %v3105, %v3093
        %v3226 = vpack.c.b16 %v3106, %v3094
        %v3227 = vpack.c.b16 %v3107, %v3095
        %v3228 = vpack.c.b16 %v3108, %v3096
        %v3229 = vpack.c.b16 %v3109, %v3097
        %v3230 = vpack.c.b16 %v3110, %v3098
        %v3231 = vpack.c.b16 %v3123, %v3111
        %v3232 = vpack.c.b16 %v3124, %v3112
        %v3233 = vpack.c.b16 %v3125, %v3113
        %v3234 = vpack.c.b16 %v3126, %v3114
        %v3235 = vpack.c.b16 %v3127, %v3115
        %v3236 = vpack.c.b16 %v3128, %v3116
        %v3237 = vpack.c.b16 %v3129, %v3117
        %v3238 = vpack.c.b16 %v3130, %v3118
        %v3239 = vpack.c.b16 %v3131, %v3119
        %v3240 = vpack.c.b16 %v3132, %v3120
        %v3241 = vpack.c.b16 %v3133, %v3121
        %v3242 = vpack.c.b16 %v3134, %v3122
        %v3243 = vpack.c.b16 %v3147, %v3135
        %v3244 = vpack.c.b16 %v3148, %v3136
        %v3245 = vpack.c.b16 %v3149, %v3137
        %v3246 = vpack.c.b16 %v3150, %v3138
        %v3247 = vpack.c.b16 %v3151, %v3139
        %v3248 = vpack.c.b16 %v3152, %v3140
        %v3249 = vpack.c.b16 %v3153, %v3141
        %v3250 = vpack.c.b16 %v3154, %v3142
        %v3251 = vpack.c.b16 %v3155, %v3143
        %v3252 = vpack.c.b16 %v3156, %v3144
        %v3253 = vpack.c.b16 %v3157, %v3145
        %v3254 = vpack.c.b16 %v3158, %v3146
        %3351 = vmatpush.bf16.msra.mxu0 %v3243
        %3352 = vmatpush.bf16.msra.mxu0 %v3231
        %3353 = vmatpush.bf16.msra.mxu0 %v3219
        %3354 = vmatpush.bf16.msra.mxu0 %v3207
        %3355 = vmatpush.bf16.msra.mxu0 %v3195
        %3356 = vmatpush.bf16.msra.mxu0 %v3183
        %3357 = vmatpush.bf16.msra.mxu0 %v3171
        %3358 = vmatpush.bf16.msra.mxu0 %v3159
        %3359 = vmatmul.bf16.gmra.mxu0 %v2844
        %v3360 = vpop.f32.mrf.mxu0
        %v3361 = vadd.f32 %v2847, %v3360
        %v3362 = vpop.f32.mrf.mxu0
        %3363 = vdwg.mxu0
        %3364 = vmatpush.bf16.msra.mxu0 %v3244
        %3365 = vmatpush.bf16.msra.mxu0 %v3232
        %3366 = vmatpush.bf16.msra.mxu0 %v3220
        %3367 = vmatpush.bf16.msra.mxu0 %v3208
        %3368 = vmatpush.bf16.msra.mxu0 %v3196
        %3369 = vmatpush.bf16.msra.mxu0 %v3184
        %3370 = vmatpush.bf16.msra.mxu0 %v3172
        %3371 = vmatpush.bf16.msra.mxu0 %v3160
        %3372 = vmatmul.bf16.gmra.mxu0 %v2844
        %v3373 = vpop.f32.mrf.mxu0
        %v3374 = vadd.f32 %v2848, %v3373
        %v3375 = vpop.f32.mrf.mxu0
        %3376 = vdwg.mxu0
        %3377 = vmatpush.bf16.msra.mxu0 %v3245
        %3378 = vmatpush.bf16.msra.mxu0 %v3233
        %3379 = vmatpush.bf16.msra.mxu0 %v3221
        %3380 = vmatpush.bf16.msra.mxu0 %v3209
        %3381 = vmatpush.bf16.msra.mxu0 %v3197
        %3382 = vmatpush.bf16.msra.mxu0 %v3185
        %3383 = vmatpush.bf16.msra.mxu0 %v3173
        %3384 = vmatpush.bf16.msra.mxu0 %v3161
        %3385 = vmatmul.bf16.gmra.mxu0 %v2844
        %v3386 = vpop.f32.mrf.mxu0
        %v3387 = vadd.f32 %v2849, %v3386
        %v3388 = vpop.f32.mrf.mxu0
        %3389 = vdwg.mxu0
        %3390 = vmatpush.bf16.msra.mxu0 %v3246
        %3391 = vmatpush.bf16.msra.mxu0 %v3234
        %3392 = vmatpush.bf16.msra.mxu0 %v3222
        %3393 = vmatpush.bf16.msra.mxu0 %v3210
        %3394 = vmatpush.bf16.msra.mxu0 %v3198
        %3395 = vmatpush.bf16.msra.mxu0 %v3186
        %3396 = vmatpush.bf16.msra.mxu0 %v3174
        %3397 = vmatpush.bf16.msra.mxu0 %v3162
        %3398 = vmatmul.bf16.gmra.mxu0 %v2844
        %v3399 = vpop.f32.mrf.mxu0
        %v3400 = vadd.f32 %v2850, %v3399
        %v3401 = vpop.f32.mrf.mxu0
        %3402 = vdwg.mxu0
        %3403 = vmatpush.bf16.msra.mxu0 %v3247
        %3404 = vmatpush.bf16.msra.mxu0 %v3235
        %3405 = vmatpush.bf16.msra.mxu0 %v3223
        %3406 = vmatpush.bf16.msra.mxu0 %v3211
        %3407 = vmatpush.bf16.msra.mxu0 %v3199
        %3408 = vmatpush.bf16.msra.mxu0 %v3187
        %3409 = vmatpush.bf16.msra.mxu0 %v3175
        %3410 = vmatpush.bf16.msra.mxu0 %v3163
        %3411 = vmatmul.bf16.gmra.mxu0 %v2844
        %v3412 = vpop.f32.mrf.mxu0
        %v3413 = vadd.f32 %v2851, %v3412
        %v3414 = vpop.f32.mrf.mxu0
        %3415 = vdwg.mxu0
        %3416 = vmatpush.bf16.msra.mxu0 %v3248
        %3417 = vmatpush.bf16.msra.mxu0 %v3236
        %3418 = vmatpush.bf16.msra.mxu0 %v3224
        %3419 = vmatpush.bf16.msra.mxu0 %v3212
        %3420 = vmatpush.bf16.msra.mxu0 %v3200
        %3421 = vmatpush.bf16.msra.mxu0 %v3188
        %3422 = vmatpush.bf16.msra.mxu0 %v3176
        %3423 = vmatpush.bf16.msra.mxu0 %v3164
        %3424 = vmatmul.bf16.gmra.mxu0 %v2844
        %v3425 = vpop.f32.mrf.mxu0
        %v3426 = vadd.f32 %v2852, %v3425
        %v3427 = vpop.f32.mrf.mxu0
        %3428 = vdwg.mxu0
        %3429 = vmatpush.bf16.msra.mxu0 %v3249
        %3430 = vmatpush.bf16.msra.mxu0 %v3237
        %3431 = vmatpush.bf16.msra.mxu0 %v3225
        %3432 = vmatpush.bf16.msra.mxu0 %v3213
        %3433 = vmatpush.bf16.msra.mxu0 %v3201
        %3434 = vmatpush.bf16.msra.mxu0 %v3189
        %3435 = vmatpush.bf16.msra.mxu0 %v3177
        %3436 = vmatpush.bf16.msra.mxu0 %v3165
        %3437 = vmatmul.bf16.gmra.mxu0 %v2844
        %v3438 = vpop.f32.mrf.mxu0
        %v3439 = vadd.f32 %v2853, %v3438
        %v3440 = vpop.f32.mrf.mxu0
        %3441 = vdwg.mxu0
        %3442 = vmatpush.bf16.msra.mxu0 %v3250
        %3443 = vmatpush.bf16.msra.mxu0 %v3238
        %3444 = vmatpush.bf16.msra.mxu0 %v3226
        %3445 = vmatpush.bf16.msra.mxu0 %v3214
        %3446 = vmatpush.bf16.msra.mxu0 %v3202
        %3447 = vmatpush.bf16.msra.mxu0 %v3190
        %3448 = vmatpush.bf16.msra.mxu0 %v3178
        %3449 = vmatpush.bf16.msra.mxu0 %v3166
        %3450 = vmatmul.bf16.gmra.mxu0 %v2844
        %v3451 = vpop.f32.mrf.mxu0
        %v3452 = vadd.f32 %v2854, %v3451
        %v3453 = vpop.f32.mrf.mxu0
        %3454 = vdwg.mxu0
        %3455 = vmatpush.bf16.msra.mxu0 %v3251
        %3456 = vmatpush.bf16.msra.mxu0 %v3239
        %3457 = vmatpush.bf16.msra.mxu0 %v3227
        %3458 = vmatpush.bf16.msra.mxu0 %v3215
        %3459 = vmatpush.bf16.msra.mxu0 %v3203
        %3460 = vmatpush.bf16.msra.mxu0 %v3191
        %3461 = vmatpush.bf16.msra.mxu0 %v3179
        %3462 = vmatpush.bf16.msra.mxu0 %v3167
        %3463 = vmatmul.bf16.gmra.mxu0 %v2844
        %v3464 = vpop.f32.mrf.mxu0
        %v3465 = vadd.f32 %v2855, %v3464
        %v3466 = vpop.f32.mrf.mxu0
        %3467 = vdwg.mxu0
        %3468 = vmatpush.bf16.msra.mxu0 %v3252
        %3469 = vmatpush.bf16.msra.mxu0 %v3240
        %3470 = vmatpush.bf16.msra.mxu0 %v3228
        %3471 = vmatpush.bf16.msra.mxu0 %v3216
        %3472 = vmatpush.bf16.msra.mxu0 %v3204
        %3473 = vmatpush.bf16.msra.mxu0 %v3192
        %3474 = vmatpush.bf16.msra.mxu0 %v3180
        %3475 = vmatpush.bf16.msra.mxu0 %v3168
        %3476 = vmatmul.bf16.gmra.mxu0 %v2844
        %v3477 = vpop.f32.mrf.mxu0
        %v3478 = vadd.f32 %v2856, %v3477
        %v3479 = vpop.f32.mrf.mxu0
        %3480 = vdwg.mxu0
        %3481 = vmatpush.bf16.msra.mxu0 %v3253
        %3482 = vmatpush.bf16.msra.mxu0 %v3241
        %3483 = vmatpush.bf16.msra.mxu0 %v3229
        %3484 = vmatpush.bf16.msra.mxu0 %v3217
        %3485 = vmatpush.bf16.msra.mxu0 %v3205
        %3486 = vmatpush.bf16.msra.mxu0 %v3193
        %3487 = vmatpush.bf16.msra.mxu0 %v3181
        %3488 = vmatpush.bf16.msra.mxu0 %v3169
        %3489 = vmatmul.bf16.gmra.mxu0 %v2844
        %v3490 = vpop.f32.mrf.mxu0
        %v3491 = vadd.f32 %v2857, %v3490
        %v3492 = vpop.f32.mrf.mxu0
        %3493 = vdwg.mxu0
        %3494 = vmatpush.bf16.msra.mxu0 %v3254
        %3495 = vmatpush.bf16.msra.mxu0 %v3242
        %3496 = vmatpush.bf16.msra.mxu0 %v3230
        %3497 = vmatpush.bf16.msra.mxu0 %v3218
        %3498 = vmatpush.bf16.msra.mxu0 %v3206
        %3499 = vmatpush.bf16.msra.mxu0 %v3194
        %3500 = vmatpush.bf16.msra.mxu0 %v3182
        %3501 = vmatpush.bf16.msra.mxu0 %v3170
        %3502 = vmatmul.bf16.gmra.mxu0 %v2844
        %v3503 = vpop.f32.mrf.mxu0
        %v3504 = vadd.f32 %v2858, %v3503
        %v3505 = vpop.f32.mrf.mxu0
        %3506 = vdwg.mxu0
        %v3507 = vmul.f32 %v3361, 0.35355338
        %v3508 = vpack.c.bf16 %v3507, %v3507
        %v3509 = vpack.c.bf16 %v3413, %v3413
        %3510 = vmatpush.bf16.xpose.msra.mxu0 0
        %3511 = vmatpush.bf16.xpose.msra.mxu0 0
        %3512 = vmatpush.bf16.xpose.msra.mxu0 0
        %3513 = vmatpush.bf16.xpose.msra.mxu0 0
        %3514 = vmatpush.bf16.xpose.msra.mxu0 0
        %3515 = vmatpush.bf16.xpose.msra.mxu0 0
        %3516 = vmatpush.bf16.xpose.msra.mxu0 0
        %3517 = vmatpush.bf16.xpose.msra.mxu0 %v3509
        %3518 = vmatmul.bf16.gmra.mxu0 %v3508
        %v3519 = vpop.f32.mrf.mxu0
        %v3520 = vadd.f32 0.0, %v3519
        %v3521 = vpop.f32.mrf.mxu0
        %3522 = vdwg.mxu0
        %v3523 = vsel %vm1978, %v3520, -inf
        %3524 = vmax.xlane.f32.xlu0 %v3523
        %v3525 = vpop.xlane.xlu0 %3524
        %v3526 = vsub.f32 %v3520, %v3525
        %v3527 = vmul.f32 %v3526, 1.442695
        %v3528 = vpow.pop %v3527
        %v3529 = vsel %vm1978, %v3528, 0.0
        %3530 = vadd.xlane.f32.xlu0 %v3529
        %v3531 = vpop.xlane.xlu0 %3530
        %v3532 = vrcp.pop %v3531
        %v3533 = vmul.f32 %v3528, %v3532
        %v3534 = vpack.c.bf16 %v3533, %v3533
        %v3535 = vpack.c.bf16 %v3465, %v3465
        %v3537 = vsel %vm1992, %v3534, 0
        %v3540 = vand.u32 %v3535, %v1999
        %3542 = vmatpush.bf16.msra.mxu0 0
        %3543 = vmatpush.bf16.msra.mxu0 0
        %3544 = vmatpush.bf16.msra.mxu0 0
        %3545 = vmatpush.bf16.msra.mxu0 0
        %3546 = vmatpush.bf16.msra.mxu0 0
        %3547 = vmatpush.bf16.msra.mxu0 0
        %3548 = vmatpush.bf16.msra.mxu0 0
        %3549 = vmatpush.bf16.msra.mxu0 %v3540
        %3550 = vmatmul.bf16.gmra.mxu0 %v3537
        %v3551 = vpop.f32.mrf.mxu0
        %v3552 = vadd.f32 0.0, %v3551
        %v3553 = vpop.f32.mrf.mxu0
        %3554 = vdwg.mxu0
        %v3555 = vmul.f32 %v3374, 0.35355338
        %v3556 = vpack.c.bf16 %v3555, %v3555
        %v3557 = vpack.c.bf16 %v3426, %v3426
        %3558 = vmatpush.bf16.xpose.msra.mxu0 0
        %3559 = vmatpush.bf16.xpose.msra.mxu0 0
        %3560 = vmatpush.bf16.xpose.msra.mxu0 0
        %3561 = vmatpush.bf16.xpose.msra.mxu0 0
        %3562 = vmatpush.bf16.xpose.msra.mxu0 0
        %3563 = vmatpush.bf16.xpose.msra.mxu0 0
        %3564 = vmatpush.bf16.xpose.msra.mxu0 0
        %3565 = vmatpush.bf16.xpose.msra.mxu0 %v3557
        %3566 = vmatmul.bf16.gmra.mxu0 %v3556
        %v3567 = vpop.f32.mrf.mxu0
        %v3568 = vadd.f32 0.0, %v3567
        %v3569 = vpop.f32.mrf.mxu0
        %3570 = vdwg.mxu0
        %v3571 = vsel %vm1978, %v3568, -inf
        %3572 = vmax.xlane.f32.xlu0 %v3571
        %v3573 = vpop.xlane.xlu0 %3572
        %v3574 = vsub.f32 %v3568, %v3573
        %v3575 = vmul.f32 %v3574, 1.442695
        %v3576 = vpow.pop %v3575
        %v3577 = vsel %vm1978, %v3576, 0.0
        %3578 = vadd.xlane.f32.xlu0 %v3577
        %v3579 = vpop.xlane.xlu0 %3578
        %v3580 = vrcp.pop %v3579
        %v3581 = vmul.f32 %v3576, %v3580
        %v3582 = vpack.c.bf16 %v3581, %v3581
        %v3583 = vpack.c.bf16 %v3478, %v3478
        %v3585 = vsel %vm1992, %v3582, 0
        %v3588 = vand.u32 %v3583, %v1999
        %3590 = vmatpush.bf16.msra.mxu0 0
        %3591 = vmatpush.bf16.msra.mxu0 0
        %3592 = vmatpush.bf16.msra.mxu0 0
        %3593 = vmatpush.bf16.msra.mxu0 0
        %3594 = vmatpush.bf16.msra.mxu0 0
        %3595 = vmatpush.bf16.msra.mxu0 0
        %3596 = vmatpush.bf16.msra.mxu0 0
        %3597 = vmatpush.bf16.msra.mxu0 %v3588
        %3598 = vmatmul.bf16.gmra.mxu0 %v3585
        %v3599 = vpop.f32.mrf.mxu0
        %v3600 = vadd.f32 0.0, %v3599
        %v3601 = vpop.f32.mrf.mxu0
        %3602 = vdwg.mxu0
        %v3603 = vmul.f32 %v3387, 0.35355338
        %v3604 = vpack.c.bf16 %v3603, %v3603
        %v3605 = vpack.c.bf16 %v3439, %v3439
        %3606 = vmatpush.bf16.xpose.msra.mxu0 0
        %3607 = vmatpush.bf16.xpose.msra.mxu0 0
        %3608 = vmatpush.bf16.xpose.msra.mxu0 0
        %3609 = vmatpush.bf16.xpose.msra.mxu0 0
        %3610 = vmatpush.bf16.xpose.msra.mxu0 0
        %3611 = vmatpush.bf16.xpose.msra.mxu0 0
        %3612 = vmatpush.bf16.xpose.msra.mxu0 0
        %3613 = vmatpush.bf16.xpose.msra.mxu0 %v3605
        %3614 = vmatmul.bf16.gmra.mxu0 %v3604
        %v3615 = vpop.f32.mrf.mxu0
        %v3616 = vadd.f32 0.0, %v3615
        %v3617 = vpop.f32.mrf.mxu0
        %3618 = vdwg.mxu0
        %v3619 = vsel %vm1978, %v3616, -inf
        %3620 = vmax.xlane.f32.xlu0 %v3619
        %v3621 = vpop.xlane.xlu0 %3620
        %v3622 = vsub.f32 %v3616, %v3621
        %v3623 = vmul.f32 %v3622, 1.442695
        %v3624 = vpow.pop %v3623
        %v3625 = vsel %vm1978, %v3624, 0.0
        %3626 = vadd.xlane.f32.xlu0 %v3625
        %v3627 = vpop.xlane.xlu0 %3626
        %v3628 = vrcp.pop %v3627
        %v3629 = vmul.f32 %v3624, %v3628
        %v3630 = vpack.c.bf16 %v3629, %v3629
        %v3631 = vpack.c.bf16 %v3491, %v3491
        %v3633 = vsel %vm1992, %v3630, 0
        %v3636 = vand.u32 %v3631, %v1999
        %3638 = vmatpush.bf16.msra.mxu0 0
        %3639 = vmatpush.bf16.msra.mxu0 0
        %3640 = vmatpush.bf16.msra.mxu0 0
        %3641 = vmatpush.bf16.msra.mxu0 0
        %3642 = vmatpush.bf16.msra.mxu0 0
        %3643 = vmatpush.bf16.msra.mxu0 0
        %3644 = vmatpush.bf16.msra.mxu0 0
        %3645 = vmatpush.bf16.msra.mxu0 %v3636
        %3646 = vmatmul.bf16.gmra.mxu0 %v3633
        %v3647 = vpop.f32.mrf.mxu0
        %v3648 = vadd.f32 0.0, %v3647
        %v3649 = vpop.f32.mrf.mxu0
        %3650 = vdwg.mxu0
        %v3651 = vmul.f32 %v3400, 0.35355338
        %v3652 = vpack.c.bf16 %v3651, %v3651
        %v3653 = vpack.c.bf16 %v3452, %v3452
        %3654 = vmatpush.bf16.xpose.msra.mxu0 0
        %3655 = vmatpush.bf16.xpose.msra.mxu0 0
        %3656 = vmatpush.bf16.xpose.msra.mxu0 0
        %3657 = vmatpush.bf16.xpose.msra.mxu0 0
        %3658 = vmatpush.bf16.xpose.msra.mxu0 0
        %3659 = vmatpush.bf16.xpose.msra.mxu0 0
        %3660 = vmatpush.bf16.xpose.msra.mxu0 0
        %3661 = vmatpush.bf16.xpose.msra.mxu0 %v3653
        %3662 = vmatmul.bf16.gmra.mxu0 %v3652
        %v3663 = vpop.f32.mrf.mxu0
        %v3664 = vadd.f32 0.0, %v3663
        %v3665 = vpop.f32.mrf.mxu0
        %3666 = vdwg.mxu0
        %v3667 = vsel %vm1978, %v3664, -inf
        %3668 = vmax.xlane.f32.xlu0 %v3667
        %v3669 = vpop.xlane.xlu0 %3668
        %v3670 = vsub.f32 %v3664, %v3669
        %v3671 = vmul.f32 %v3670, 1.442695
        %v3672 = vpow.pop %v3671
        %v3673 = vsel %vm1978, %v3672, 0.0
        %3674 = vadd.xlane.f32.xlu0 %v3673
        %v3675 = vpop.xlane.xlu0 %3674
        %v3676 = vrcp.pop %v3675
        %v3677 = vmul.f32 %v3672, %v3676
        %v3678 = vpack.c.bf16 %v3677, %v3677
        %v3679 = vpack.c.bf16 %v3504, %v3504
        %v3681 = vsel %vm1992, %v3678, 0
        %v3684 = vand.u32 %v3679, %v1999
        %3686 = vmatpush.bf16.msra.mxu0 0
        %3687 = vmatpush.bf16.msra.mxu0 0
        %3688 = vmatpush.bf16.msra.mxu0 0
        %3689 = vmatpush.bf16.msra.mxu0 0
        %3690 = vmatpush.bf16.msra.mxu0 0
        %3691 = vmatpush.bf16.msra.mxu0 0
        %3692 = vmatpush.bf16.msra.mxu0 0
        %3693 = vmatpush.bf16.msra.mxu0 %v3684
        %3694 = vmatmul.bf16.gmra.mxu0 %v3681
        %v3695 = vpop.f32.mrf.mxu0
        %v3696 = vadd.f32 0.0, %v3695
        %v3697 = vpop.f32.mrf.mxu0
        %3698 = vdwg.mxu0
        %v3699 = vpack.c.bf16 %v3552, %v3552
        %v3700 = vpack.c.bf16 %v3600, %v3600
        %v3701 = vpack.c.bf16 %v3648, %v3648
        %v3702 = vpack.c.bf16 %v3696, %v3696
        %v3767 = vunpack.c.l.b16 %v2703
        %v3768 = vunpack.c.l.b16 %v2704
        %v3769 = vunpack.c.l.b16 %v2705
        %v3770 = vunpack.c.l.b16 %v2706
        %v3771 = vunpack.c.l.b16 %v2707
        %v3772 = vunpack.c.l.b16 %v2708
        %v3773 = vunpack.c.l.b16 %v2709
        %v3774 = vunpack.c.l.b16 %v2710
        %v3775 = vunpack.c.l.b16 %v2711
        %v3776 = vunpack.c.l.b16 %v2712
        %v3777 = vunpack.c.l.b16 %v2713
        %v3778 = vunpack.c.l.b16 %v2714
        %v3779 = vunpack.c.l.b16 %v2715
        %v3780 = vunpack.c.l.b16 %v2716
        %v3781 = vunpack.c.l.b16 %v2717
        %v3782 = vunpack.c.l.b16 %v2718
        %v3783 = vunpack.c.l.b16 %v2719
        %v3784 = vunpack.c.l.b16 %v2720
        %v3785 = vunpack.c.l.b16 %v2721
        %v3786 = vunpack.c.l.b16 %v2722
        %v3787 = vunpack.c.l.b16 %v2723
        %v3788 = vunpack.c.l.b16 %v2724
        %v3789 = vunpack.c.l.b16 %v2725
        %v3790 = vunpack.c.l.b16 %v2726
        %v3791 = vunpack.c.l.b16 %v2727
        %v3792 = vunpack.c.l.b16 %v2728
        %v3793 = vunpack.c.l.b16 %v2729
        %v3794 = vunpack.c.l.b16 %v2730
        %v3795 = vunpack.c.l.b16 %v2731
        %v3796 = vunpack.c.l.b16 %v2732
        %v3797 = vunpack.c.l.b16 %v2733
        %v3798 = vunpack.c.l.b16 %v2734
        %v3799 = vunpack.c.l.b16 %v2735
        %v3800 = vunpack.c.l.b16 %v2736
        %v3801 = vunpack.c.l.b16 %v2737
        %v3802 = vunpack.c.l.b16 %v2738
        %v3803 = vunpack.c.l.b16 %v2739
        %v3804 = vunpack.c.l.b16 %v2740
        %v3805 = vunpack.c.l.b16 %v2741
        %v3806 = vunpack.c.l.b16 %v2742
        %v3807 = vunpack.c.l.b16 %v2743
        %v3808 = vunpack.c.l.b16 %v2744
        %v3809 = vunpack.c.l.b16 %v2745
        %v3810 = vunpack.c.l.b16 %v2746
        %v3811 = vunpack.c.l.b16 %v2747
        %v3812 = vunpack.c.l.b16 %v2748
        %v3813 = vunpack.c.l.b16 %v2749
        %v3814 = vunpack.c.l.b16 %v2750
        %v3815 = vunpack.c.l.b16 %v2751
        %v3816 = vunpack.c.l.b16 %v2752
        %v3817 = vunpack.c.l.b16 %v2753
        %v3818 = vunpack.c.l.b16 %v2754
        %v3819 = vunpack.c.l.b16 %v2755
        %v3820 = vunpack.c.l.b16 %v2756
        %v3821 = vunpack.c.l.b16 %v2757
        %v3822 = vunpack.c.l.b16 %v2758
        %v3823 = vunpack.c.l.b16 %v2759
        %v3824 = vunpack.c.l.b16 %v2760
        %v3825 = vunpack.c.l.b16 %v2761
        %v3826 = vunpack.c.l.b16 %v2762
        %v3827 = vunpack.c.l.b16 %v2763
        %v3828 = vunpack.c.l.b16 %v2764
        %v3829 = vunpack.c.l.b16 %v2765
        %v3830 = vunpack.c.l.b16 %v2766
        %v3831 = vpack.c.b16 %v3768, %v3767
        %v3832 = vpack.c.b16 %v3770, %v3769
        %v3833 = vpack.c.b16 %v3772, %v3771
        %v3834 = vpack.c.b16 %v3774, %v3773
        %v3835 = vpack.c.b16 %v3776, %v3775
        %v3836 = vpack.c.b16 %v3778, %v3777
        %v3837 = vpack.c.b16 %v3780, %v3779
        %v3838 = vpack.c.b16 %v3782, %v3781
        %v3839 = vpack.c.b16 %v3784, %v3783
        %v3840 = vpack.c.b16 %v3786, %v3785
        %v3841 = vpack.c.b16 %v3788, %v3787
        %v3842 = vpack.c.b16 %v3790, %v3789
        %v3843 = vpack.c.b16 %v3792, %v3791
        %v3844 = vpack.c.b16 %v3794, %v3793
        %v3845 = vpack.c.b16 %v3796, %v3795
        %v3846 = vpack.c.b16 %v3798, %v3797
        %v3847 = vpack.c.b16 %v3800, %v3799
        %v3848 = vpack.c.b16 %v3802, %v3801
        %v3849 = vpack.c.b16 %v3804, %v3803
        %v3850 = vpack.c.b16 %v3806, %v3805
        %v3851 = vpack.c.b16 %v3808, %v3807
        %v3852 = vpack.c.b16 %v3810, %v3809
        %v3853 = vpack.c.b16 %v3812, %v3811
        %v3854 = vpack.c.b16 %v3814, %v3813
        %v3855 = vpack.c.b16 %v3816, %v3815
        %v3856 = vpack.c.b16 %v3818, %v3817
        %v3857 = vpack.c.b16 %v3820, %v3819
        %v3858 = vpack.c.b16 %v3822, %v3821
        %v3859 = vpack.c.b16 %v3824, %v3823
        %v3860 = vpack.c.b16 %v3826, %v3825
        %v3861 = vpack.c.b16 %v3828, %v3827
        %v3862 = vpack.c.b16 %v3830, %v3829
        %3895 = vmatpush.bf16.msra.mxu0 %v3838
        %3896 = vmatpush.bf16.msra.mxu0 %v3837
        %3897 = vmatpush.bf16.msra.mxu0 %v3836
        %3898 = vmatpush.bf16.msra.mxu0 %v3835
        %3899 = vmatpush.bf16.msra.mxu0 %v3834
        %3900 = vmatpush.bf16.msra.mxu0 %v3833
        %3901 = vmatpush.bf16.msra.mxu0 %v3832
        %3902 = vmatpush.bf16.msra.mxu0 %v3831
        %3903 = vmatmul.bf16.gmra.mxu0 %v3699
        %v3904 = vpop.f32.mrf.mxu0
        %v3905 = vadd.f32 0.0, %v3904
        %v3906 = vpop.f32.mrf.mxu0
        %3907 = vdwg.mxu0
        %3908 = vmatpush.bf16.msra.mxu0 %v3846
        %3909 = vmatpush.bf16.msra.mxu0 %v3845
        %3910 = vmatpush.bf16.msra.mxu0 %v3844
        %3911 = vmatpush.bf16.msra.mxu0 %v3843
        %3912 = vmatpush.bf16.msra.mxu0 %v3842
        %3913 = vmatpush.bf16.msra.mxu0 %v3841
        %3914 = vmatpush.bf16.msra.mxu0 %v3840
        %3915 = vmatpush.bf16.msra.mxu0 %v3839
        %3916 = vmatmul.bf16.gmra.mxu0 %v3700
        %v3917 = vpop.f32.mrf.mxu0
        %v3918 = vadd.f32 %v3905, %v3917
        %v3919 = vpop.f32.mrf.mxu0
        %3920 = vdwg.mxu0
        %3921 = vmatpush.bf16.msra.mxu0 %v3854
        %3922 = vmatpush.bf16.msra.mxu0 %v3853
        %3923 = vmatpush.bf16.msra.mxu0 %v3852
        %3924 = vmatpush.bf16.msra.mxu0 %v3851
        %3925 = vmatpush.bf16.msra.mxu0 %v3850
        %3926 = vmatpush.bf16.msra.mxu0 %v3849
        %3927 = vmatpush.bf16.msra.mxu0 %v3848
        %3928 = vmatpush.bf16.msra.mxu0 %v3847
        %3929 = vmatmul.bf16.gmra.mxu0 %v3701
        %v3930 = vpop.f32.mrf.mxu0
        %v3931 = vadd.f32 %v3918, %v3930
        %v3932 = vpop.f32.mrf.mxu0
        %3933 = vdwg.mxu0
        %3934 = vmatpush.bf16.msra.mxu0 %v3862
        %3935 = vmatpush.bf16.msra.mxu0 %v3861
        %3936 = vmatpush.bf16.msra.mxu0 %v3860
        %3937 = vmatpush.bf16.msra.mxu0 %v3859
        %3938 = vmatpush.bf16.msra.mxu0 %v3858
        %3939 = vmatpush.bf16.msra.mxu0 %v3857
        %3940 = vmatpush.bf16.msra.mxu0 %v3856
        %3941 = vmatpush.bf16.msra.mxu0 %v3855
        %3942 = vmatmul.bf16.gmra.mxu0 %v3702
        %v3943 = vpop.f32.mrf.mxu0
        %v3944 = vadd.f32 %v3931, %v3943
        %v3945 = vpop.f32.mrf.mxu0
        %3946 = vdwg.mxu0
        %v3947 = vadd.f32 %v2597, %v3944
        %v3949 = vperm.slane %v2768, 0
        %v3951 = vadd.f32 %v3947, %v3949
        %v3952 = vsel %vm1031, %v3951, 0.0
        %3953 = vadd.xlane.f32.xlu0 %v3952
        %v3954 = vpop.xlane.xlu0 %3953
        %v3955 = vmul.f32 %v3954, 0.03125
        %v3956 = vmul.f32 %v3951, %v3951
        %v3957 = vsel %vm1031, %v3956, 0.0
        %3958 = vadd.xlane.f32.xlu0 %v3957
        %v3959 = vpop.xlane.xlu0 %3958
        %v3960 = vmul.f32 %v3959, 0.03125
        %v3961 = vmul.f32 %v3955, %v3955
        %v3962 = vsub.f32 %v3960, %v3961
        %v3963 = vmax.f32 %v3962, 0.0
        %v3964 = vsub.f32 %v3951, %v3955
        %v3965 = vadd.f32 %v3963, 1e-05
        %v3966 = vrsqrt.pop %v3965
        %v3967 = vmul.f32 %v3966, %v3965
        %v3968 = vmul.f32 %v3967, %v3966
        %v3969 = vmul.f32 0.5, %v3968
        %v3970 = vsub.f32 1.5, %v3969
        %v3971 = vmul.f32 %v3966, %v3970
        %vm3972 = vweird.f32 %v3965
        %vm3973 = vweird.f32 %v3966
        %vm3974 = vmor %vm3972, %vm3973
        %v3975 = vsel %vm3974, %v3966, %v3971
        %v3976 = vmul.f32 %v3964, %v3975
        %v3978 = vperm.slane %v2770, 0
        %v3980 = vmul.f32 %v3976, %v3978
        %v3982 = vperm.slane %v2772, 0
        %v3984 = vadd.f32 %v3980, %v3982
        %v3985 = vpack.c.bf16 %v3984, %v3984
        %v3987 = vperm.slane %v2791, 0
        %v4005 = vunpack.c.l.b16 %v2774
        %v4006 = vunpack.c.l.b16 %v2775
        %v4007 = vunpack.c.l.b16 %v2776
        %v4008 = vunpack.c.l.b16 %v2777
        %v4009 = vunpack.c.l.b16 %v2778
        %v4010 = vunpack.c.l.b16 %v2779
        %v4011 = vunpack.c.l.b16 %v2780
        %v4012 = vunpack.c.l.b16 %v2781
        %v4013 = vunpack.c.l.b16 %v2782
        %v4014 = vunpack.c.l.b16 %v2783
        %v4015 = vunpack.c.l.b16 %v2784
        %v4016 = vunpack.c.l.b16 %v2785
        %v4017 = vunpack.c.l.b16 %v2786
        %v4018 = vunpack.c.l.b16 %v2787
        %v4019 = vunpack.c.l.b16 %v2788
        %v4020 = vunpack.c.l.b16 %v2789
        %v4021 = vpack.c.b16 %v4006, %v4005
        %v4022 = vpack.c.b16 %v4008, %v4007
        %v4023 = vpack.c.b16 %v4010, %v4009
        %v4024 = vpack.c.b16 %v4012, %v4011
        %v4025 = vpack.c.b16 %v4014, %v4013
        %v4026 = vpack.c.b16 %v4016, %v4015
        %v4027 = vpack.c.b16 %v4018, %v4017
        %v4028 = vpack.c.b16 %v4020, %v4019
        %4037 = vmatpush.bf16.msra.mxu0 %v4028
        %4038 = vmatpush.bf16.msra.mxu0 %v4027
        %4039 = vmatpush.bf16.msra.mxu0 %v4026
        %4040 = vmatpush.bf16.msra.mxu0 %v4025
        %4041 = vmatpush.bf16.msra.mxu0 %v4024
        %4042 = vmatpush.bf16.msra.mxu0 %v4023
        %4043 = vmatpush.bf16.msra.mxu0 %v4022
        %4044 = vmatpush.bf16.msra.mxu0 %v4021
        %4045 = vmatmul.bf16.gmra.mxu0 %v3985
        %v4046 = vpop.f32.mrf.mxu0
        %v4047 = vadd.f32 %v3987, %v4046
        %v4048 = vpop.f32.mrf.mxu0
        %4049 = vdwg.mxu0
        %v4050 = vmul.f32 %v4047, 1.702
        %v4051 = vxor.u32 %v4050, 2147483648
        %v4052 = vmul.f32 %v4051, 1.442695
        %v4053 = vpow.pop %v4052
        %v4054 = vadd.f32 %v4053, 1.0
        %v4055 = vrcp.pop %v4054
        %v4056 = vmul.f32 %v4054, %v4055
        %v4057 = vsub.f32 1.0, %v4056
        %v4058 = vmul.f32 %v4055, %v4057
        %v4059 = vadd.f32 %v4055, %v4058
        %vm4060 = vweird.f32 %v4054
        %vm4061 = vweird.f32 %v4055
        %vm4062 = vmor %vm4060, %vm4061
        %v4063 = vsel %vm4062, %v4055, %v4059
        %v4064 = vand.u32 2147483647, %v4054
        %vm4065 = vcmp.eq.f32.partialorder %v4064, 8.507059e+37
        %v4066 = vand.u32 %v4054, 2147483648
        %v4067 = vor.u32 1.1754944e-38, %v4066
        %v4068 = vsel %vm4065, %v4067, %v4063
        %v4069 = vmul.f32 1.0, %v4068
        %v4070 = vmul.f32 %v4047, %v4069
        %v4071 = vpack.c.bf16 %v4070, %v4070
        %v4073 = vperm.slane %v2810, 0
        %v4091 = vunpack.c.l.b16 %v2793
        %v4092 = vunpack.c.l.b16 %v2794
        %v4093 = vunpack.c.l.b16 %v2795
        %v4094 = vunpack.c.l.b16 %v2796
        %v4095 = vunpack.c.l.b16 %v2797
        %v4096 = vunpack.c.l.b16 %v2798
        %v4097 = vunpack.c.l.b16 %v2799
        %v4098 = vunpack.c.l.b16 %v2800
        %v4099 = vunpack.c.l.b16 %v2801
        %v4100 = vunpack.c.l.b16 %v2802
        %v4101 = vunpack.c.l.b16 %v2803
        %v4102 = vunpack.c.l.b16 %v2804
        %v4103 = vunpack.c.l.b16 %v2805
        %v4104 = vunpack.c.l.b16 %v2806
        %v4105 = vunpack.c.l.b16 %v2807
        %v4106 = vunpack.c.l.b16 %v2808
        %v4107 = vpack.c.b16 %v4092, %v4091
        %v4108 = vpack.c.b16 %v4094, %v4093
        %v4109 = vpack.c.b16 %v4096, %v4095
        %v4110 = vpack.c.b16 %v4098, %v4097
        %v4111 = vpack.c.b16 %v4100, %v4099
        %v4112 = vpack.c.b16 %v4102, %v4101
        %v4113 = vpack.c.b16 %v4104, %v4103
        %v4114 = vpack.c.b16 %v4106, %v4105
        %4123 = vmatpush.bf16.msra.mxu0 %v4114
        %4124 = vmatpush.bf16.msra.mxu0 %v4113
        %4125 = vmatpush.bf16.msra.mxu0 %v4112
        %4126 = vmatpush.bf16.msra.mxu0 %v4111
        %4127 = vmatpush.bf16.msra.mxu0 %v4110
        %4128 = vmatpush.bf16.msra.mxu0 %v4109
        %4129 = vmatpush.bf16.msra.mxu0 %v4108
        %4130 = vmatpush.bf16.msra.mxu0 %v4107
        %4131 = vmatmul.bf16.gmra.mxu0 %v4071
        %v4132 = vpop.f32.mrf.mxu0
        %v4133 = vadd.f32 %v4073, %v4132
        %v4134 = vpop.f32.mrf.mxu0
        %4135 = vdwg.mxu0
        %v4136 = vadd.f32 %v3951, %v4133
        %v4137 = vld [vmem:[#allocation14] sm:$0x1]
        %v4138 = vld [vmem:[#allocation16] sm:$0x1]
        %vm4139 = vcmask 1040384
        %v4140 = vsel %vm4139, %v4136, 0.0
        %4141 = vadd.xlane.f32.xlu0 %v4140
        %v4142 = vpop.xlane.xlu0 %4141
        %v4143 = vmul.f32 %v4142, 0.03125
        %v4144 = vmul.f32 %v4136, %v4136
        %v4145 = vsel %vm4139, %v4144, 0.0
        %4146 = vadd.xlane.f32.xlu0 %v4145
        %v4147 = vpop.xlane.xlu0 %4146
        %v4148 = vmul.f32 %v4147, 0.03125
        %v4149 = vmul.f32 %v4143, %v4143
        %v4150 = vsub.f32 %v4148, %v4149
        %v4151 = vmax.f32 %v4150, 0.0
        %v4152 = vsub.f32 %v4136, %v4143
        %v4153 = vadd.f32 %v4151, 1e-05
        %v4154 = vrsqrt.pop %v4153
        %v4155 = vmul.f32 %v4154, %v4153
        %v4156 = vmul.f32 %v4155, %v4154
        %v4157 = vmul.f32 0.5, %v4156
        %v4158 = vsub.f32 1.5, %v4157
        %v4159 = vmul.f32 %v4154, %v4158
        %vm4160 = vweird.f32 %v4153
        %vm4161 = vweird.f32 %v4154
        %vm4162 = vmor %vm4160, %vm4161
        %v4163 = vsel %vm4162, %v4154, %v4159
        %v4164 = vmul.f32 %v4152, %v4163
        %v4165 = vmul.f32 %v4164, %v4137
        %v4166 = vadd.f32 %v4165, %v4138
        %v4167 = vpack.c.bf16 %v4166, %v4166
        %v4168 = vld [vmem:[%s19] sm:$0xf]
        %v4169 = vld [vmem:[%s19 + $0x4] sm:$0xf]
        %v4170 = vld [vmem:[%s19 + $0x8] sm:$0xf]
        %v4171 = vld [vmem:[%s19 + $0xc] sm:$0xf]
        %v4172 = vld [vmem:[%s19 + $0x10] sm:$0xf]
        %v4173 = vld [vmem:[%s19 + $0x14] sm:$0xf]
        %v4174 = vld [vmem:[%s19 + $0x18] sm:$0xf]
        %v4175 = vld [vmem:[%s19 + $0x1c] sm:$0xf]
        %v4176 = vld [vmem:[%s19 + $0x20] sm:$0xf]
        %v4177 = vld [vmem:[%s19 + $0x24] sm:$0xf]
        %v4178 = vld [vmem:[%s19 + $0x28] sm:$0xf]
        %v4179 = vld [vmem:[%s19 + $0x2c] sm:$0xf]
        %v4180 = vld [vmem:[%s19 + $0x30] sm:$0xf]
        %v4181 = vld [vmem:[%s19 + $0x34] sm:$0xf]
        %v4182 = vld [vmem:[%s19 + $0x38] sm:$0xf]
        %v4183 = vld [vmem:[%s19 + $0x3c] sm:$0xf]
        %v4184 = vld [vmem:[#allocation17] sm:$0x1]
        %v4201 = vunpack.c.l.b16 %v4168
        %v4202 = vunpack.c.l.b16 %v4169
        %v4203 = vunpack.c.l.b16 %v4170
        %v4204 = vunpack.c.l.b16 %v4171
        %v4205 = vunpack.c.l.b16 %v4172
        %v4206 = vunpack.c.l.b16 %v4173
        %v4207 = vunpack.c.l.b16 %v4174
        %v4208 = vunpack.c.l.b16 %v4175
        %v4209 = vunpack.c.l.b16 %v4176
        %v4210 = vunpack.c.l.b16 %v4177
        %v4211 = vunpack.c.l.b16 %v4178
        %v4212 = vunpack.c.l.b16 %v4179
        %v4213 = vunpack.c.l.b16 %v4180
        %v4214 = vunpack.c.l.b16 %v4181
        %v4215 = vunpack.c.l.b16 %v4182
        %v4216 = vunpack.c.l.b16 %v4183
        %v4217 = vpack.c.b16 %v4202, %v4201
        %v4218 = vpack.c.b16 %v4204, %v4203
        %v4219 = vpack.c.b16 %v4206, %v4205
        %v4220 = vpack.c.b16 %v4208, %v4207
        %v4221 = vpack.c.b16 %v4210, %v4209
        %v4222 = vpack.c.b16 %v4212, %v4211
        %v4223 = vpack.c.b16 %v4214, %v4213
        %v4224 = vpack.c.b16 %v4216, %v4215
        %4233 = vmatpush.bf16.msra.mxu0 %v4224
        %4234 = vmatpush.bf16.msra.mxu0 %v4223
        %4235 = vmatpush.bf16.msra.mxu0 %v4222
        %4236 = vmatpush.bf16.msra.mxu0 %v4221
        %4237 = vmatpush.bf16.msra.mxu0 %v4220
        %4238 = vmatpush.bf16.msra.mxu0 %v4219
        %4239 = vmatpush.bf16.msra.mxu0 %v4218
        %4240 = vmatpush.bf16.msra.mxu0 %v4217
        %4241 = vmatmul.bf16.gmra.mxu0 %v4167
        %v4242 = vpop.f32.mrf.mxu0
        %v4243 = vadd.f32 %v4184, %v4242
        %v4244 = vpop.f32.mrf.mxu0
        %4245 = vdwg.mxu0
        %v4246 = vmax.f32 %v4243, 0.0
        %v4247 = vpack.c.bf16 %v4246, %v4246
        %v4248 = vld [vmem:[#allocation19] sm:$0xf]
        %v4249 = vld [vmem:[#allocation19 + $0x4] sm:$0xf]
        %v4250 = vld [vmem:[#allocation19 + $0x8] sm:$0xf]
        %v4251 = vld [vmem:[#allocation19 + $0xc] sm:$0xf]
        %v4252 = vld [vmem:[#allocation19 + $0x10] sm:$0xf]
        %v4253 = vld [vmem:[#allocation19 + $0x14] sm:$0xf]
        %v4254 = vld [vmem:[#allocation19 + $0x18] sm:$0xf]
        %v4255 = vld [vmem:[#allocation19 + $0x1c] sm:$0xf]
        %v4256 = vld [vmem:[#allocation19 + $0x20] sm:$0xf]
        %v4257 = vld [vmem:[#allocation19 + $0x24] sm:$0xf]
        %v4258 = vld [vmem:[#allocation19 + $0x28] sm:$0xf]
        %v4259 = vld [vmem:[#allocation19 + $0x2c] sm:$0xf]
        %v4260 = vld [vmem:[#allocation19 + $0x30] sm:$0xf]
        %v4261 = vld [vmem:[#allocation19 + $0x34] sm:$0xf]
        %v4262 = vld [vmem:[#allocation19 + $0x38] sm:$0xf]
        %v4263 = vld [vmem:[#allocation19 + $0x3c] sm:$0xf]
        %v4264 = vld [vmem:[#allocation20] sm:$0x1]
        %v4281 = vunpack.c.l.b16 %v4248
        %v4282 = vunpack.c.l.b16 %v4249
        %v4283 = vunpack.c.l.b16 %v4250
        %v4284 = vunpack.c.l.b16 %v4251
        %v4285 = vunpack.c.l.b16 %v4252
        %v4286 = vunpack.c.l.b16 %v4253
        %v4287 = vunpack.c.l.b16 %v4254
        %v4288 = vunpack.c.l.b16 %v4255
        %v4289 = vunpack.c.l.b16 %v4256
        %v4290 = vunpack.c.l.b16 %v4257
        %v4291 = vunpack.c.l.b16 %v4258
        %v4292 = vunpack.c.l.b16 %v4259
        %v4293 = vunpack.c.l.b16 %v4260
        %v4294 = vunpack.c.l.b16 %v4261
        %v4295 = vunpack.c.l.b16 %v4262
        %v4296 = vunpack.c.l.b16 %v4263
        %v4297 = vpack.c.b16 %v4282, %v4281
        %v4298 = vpack.c.b16 %v4284, %v4283
        %v4299 = vpack.c.b16 %v4286, %v4285
        %v4300 = vpack.c.b16 %v4288, %v4287
        %v4301 = vpack.c.b16 %v4290, %v4289
        %v4302 = vpack.c.b16 %v4292, %v4291
        %v4303 = vpack.c.b16 %v4294, %v4293
        %v4304 = vpack.c.b16 %v4296, %v4295
        %4313 = vmatpush.bf16.msra.mxu0 %v4304
        %4314 = vmatpush.bf16.msra.mxu0 %v4303
        %4315 = vmatpush.bf16.msra.mxu0 %v4302
        %4316 = vmatpush.bf16.msra.mxu0 %v4301
        %4317 = vmatpush.bf16.msra.mxu0 %v4300
        %4318 = vmatpush.bf16.msra.mxu0 %v4299
        %4319 = vmatpush.bf16.msra.mxu0 %v4298
        %4320 = vmatpush.bf16.msra.mxu0 %v4297
        %4321 = vmatmul.bf16.gmra.mxu0 %v4247
        %v4322 = vpop.f32.mrf.mxu0
        %v4323 = vadd.f32 %v4264, %v4322
        %v4324 = vpop.f32.mrf.mxu0
        %4325 = vdwg.mxu0
        %4326 = vst [vmem:[%s891] sm:$0x1] %v4323
        %s4327 = sand.u32 %s540, 1
        %s4328 = scalar_lea.sflag [#allocation4], %s4327
        %s4329 = sand.u32 %s540, 1
        %s4330 = scalar_lea.vmem [#allocation22], %s4329
        // Predicated region
        $region161: #{clip_fashion_mnist_forward.1} parent=111 // pred_check
          %p4331 = pneg %p550
        $region162: #{clip_fashion_mnist_forward.1} parent=111 // pred_check_branch
          %4333 = sbr.rel (%p4331) target = $region164
        $region163: #{clip_fashion_mnist_forward.1} parent=111 // pred_region
          %4335 = vsyncadd %s4328, 0
          %s4336 = scalar_lea.hbm %s23, %s44
          %s4338 = sshll.u32 %s4330, 4
          %s4339 = int_to_ptr.vmem [resolvable:$true] %s4338
          %s4340 = sshll.u32 %s4336, 4
          %s4341 = int_to_ptr.hbm [resolvable:$true] %s4340
          %4343 = dma.vmem_to_hbm [thread:$0]  %s4339, 16, %s4341, %s4328
        $region164: #{clip_fashion_mnist_forward.1} parent=111 // pred_fallthru
          _
      $region112: #{clip_fashion_mnist_forward.1} parent=5 // pred_fallthru
        _
      %p4344 = scmp.le.s32.totalorder 2, %s39
      // Predicated region
      $region165: #{clip_fashion_mnist_forward.1} parent=5 // pred_check
        %p4345 = pneg %p4344
      $region166: #{clip_fashion_mnist_forward.1} parent=5 // pred_check_branch
        %4347 = sbr.rel (%p4345) target = $region168
      $region167: #{clip_fashion_mnist_forward.1} parent=5 // pred_region
        %s4348 = ssub.s32 %s39, 2
        // Predicated region
        $region169: #{clip_fashion_mnist_forward.1} parent=167 // pred_check
          %p4349 = pneg %p556
        $region170: #{clip_fashion_mnist_forward.1} parent=167 // pred_check_branch
          %4351 = sbr.rel (%p4349) target = $region172
        $region171: #{clip_fashion_mnist_forward.1} parent=167 // pred_region
          %s4352 = sand.u32 %s541, 1
          %s4353 = scalar_lea.sflag [#allocation4], %s4352
          %s4354 = sand.u32 %s541, 1
          %s4355 = scalar_lea.vmem [#allocation22], %s4354
          %4357 = dma.done %s4353, 16
        $region172: #{clip_fashion_mnist_forward.1} parent=167 // pred_fallthru
          _
      $region168: #{clip_fashion_mnist_forward.1} parent=5 // pred_fallthru
        _
    $region6: #{clip_fashion_mnist_forward.1} parent=1 // loop_footer
      %s43 = sadd.s32 1, %s39
    $region7: #{clip_fashion_mnist_forward.1} parent=1 // loop_footer_branch
      %38 = sbr.rel target = $region3
    $region8: #{clip_fashion_mnist_forward.1} parent=1 // loop_exit
      _
    %4358 = vsyncpa [#allocation3], 1
    %s4359 = scalar_lea.sflag [#allocation3], 1
    %4360 = vsyncpa %s4359, 1
    %4361 = vsyncpa [#allocation6], 1
    %4362 = vsyncpa [#allocation9], 1
    %4363 = vsyncpa [#allocation12], 1
    %4364 = vsyncpa [#allocation15], 1
    %4365 = vsyncpa [#allocation18], 1
    %4366 = vsyncpa [#allocation21], 1
    %4367 = vsyncpa [#allocation4], 1
    %s4368 = scalar_lea.sflag [#allocation4], 1
    %4369 = vsyncpa %s4368, 1

</llo_original>
